<compile_context>
chip_gen: v5e
topology: v5e:2x2
jax: 0.10.0
libtpu: 0.0.40
codegen_flags: <defaults>
</compile_context>

<pallas_src>
import functools

import jax
import jax.numpy as jnp
from jax import lax
from jax.experimental import pallas as pl
from jax.experimental.pallas import tpu as pltpu

_K = 7                     # SpatialGate kernel_size
_PAD = (_K - 1) // 2       # 3


def _spatial_gate_kernel(params_ref, x_ref, o_ref, pad_ref, scale_ref, *, H, W):
    # params_ref : SMEM (2*_K*_K + 1,) f32 = [BN-folded conv taps, BN bias]
    # x_ref      : VMEM (1, C, H*W)   input block, native dtype, lane-dense
    # o_ref      : VMEM (1, C, H*W)   output block, native dtype, lane-dense
    # pad_ref    : VMEM (2, H+6, W+6) f32 scratch: zero-padded pooled maps
    # scale_ref  : VMEM (1, H*W)      f32 scratch: flat sigmoid map
    C = x_ref.shape[1]

    # ---- 1. ChannelPool: fused max + mean in one pass over <=8-channel chunks.
    # No full-block f32 copy is materialized; sums accumulate in f32.
    mx = None
    sm = None
    for c0 in range(0, C, 8):
        cc = min(8, C - c0)
        blk = x_ref[0, pl.ds(c0, cc), :]                          # (cc, HW) native
        bmax = jnp.max(blk, axis=0, keepdims=True)                # (1, HW) native
        bsum = jnp.sum(blk.astype(jnp.float32), axis=0, keepdims=True)
        mx = bmax if mx is None else jnp.maximum(mx, bmax)
        sm = bsum if sm is None else sm + bsum
    mx = mx.astype(jnp.float32)                                   # (1, HW)
    mn = sm * (1.0 / C)                                           # (1, HW)

    # ---- 2. Zero-pad the two pooled maps into the 2-D scratch (border = 0,
    # which reproduces Conv2d's zero padding of the pooled maps exactly).
    pad_ref[...] = jnp.zeros_like(pad_ref)
    pooled = (mx, mn)                                             # order: (max, mean)
    for c in range(2):
        for h in range(H):
            row = pooled[c][:, h * W:(h + 1) * W]                 # (1, W)
            pad_ref[c, pl.ds(_PAD + h, 1), pl.ds(_PAD, W)] = row

    # ---- 3. 7x7 conv with BN-folded taps read as SMEM scalars.
    # Lane shifts hoisted (7 per channel); inner loop does sublane slices only.
    # 4 independent accumulator chains for VALU ILP.
    accs = [jnp.zeros((H, W), jnp.float32) for _ in range(4)]
    t = 0
    for c in range(2):
        p = pad_ref[c]                                            # (H+6, W+6) f32
        cols = [p[:, kx:kx + W] for kx in range(_K)]              # 7 views (H+6, W)
        for ky in range(_K):
            for kx in range(_K):
                w = params_ref[(c * _K + ky) * _K + kx]           # SMEM scalar
                accs[t % 4] = accs[t % 4] + w * cols[kx][ky:ky + H, :]
                t += 1
    y = (accs[0] + accs[1]) + (accs[2] + accs[3]) + params_ref[2 * _K * _K]

    # ---- 4. Sigmoid: exp on EUP + reciprocal (exact; volume is only H*W).
    scale2d = pl.reciprocal(1.0 + jnp.exp(-y), approx=False)      # (H, W) f32

    # Scatter the tiny 2-D scale back to a flat lane-dense row.
    for h in range(H):
        scale_ref[pl.ds(0, 1), pl.ds(h * W, W)] = scale2d[h:h + 1, :]

    # ---- 5. x * scale: single lane-dense broadcast multiply from the ref in
    # the input's native dtype (keeps bf16 on the bf16-capable VALUs).
    scale_row = scale_ref[...].astype(o_ref.dtype)                # (1, HW)
    o_ref[0] = (x_ref[0] * scale_row).astype(o_ref.dtype)


@jax.jit
def spatial_gate_forward(x, conv_w, bn_gamma, bn_beta, bn_mean, bn_var):
    """SpatialGate forward (BatchNorm folded, inference mode).

    x       : (B, C, H, W)
    conv_w  : (2, 7, 7)   weight of Conv2d(2, 1, 7, padding=3, bias=False)
    bn_*    : scalars     BatchNorm2d(1) gamma / beta / running_mean / running_var
    """
    # TODO(synk): BatchNorm2d runs in inference (eval) mode; training-mode batch
    # statistics are not computed in-kernel.
    B, C, H, W = x.shape
    HW = H * W
    Hp, Wp = H + 2 * _PAD, W + 2 * _PAD
    eps = 1e-5

    # Fold BN into the conv weights and a single bias scalar.
    s = bn_gamma.astype(jnp.float32) * lax.rsqrt(bn_var.astype(jnp.float32) + eps)
    w_folded = (conv_w.astype(jnp.float32) * s).reshape(-1)                 # (98,)
    bias = jnp.reshape(
        bn_beta.astype(jnp.float32) - bn_mean.astype(jnp.float32) * s, (1,))
    params = jnp.concatenate([w_folded, bias])                              # (99,)

    # Free reshape (merges contiguous minor dims): heavy data becomes lane-dense.
    x_flat = x.reshape(B, C, HW)

    itemsize = x.dtype.itemsize
    block_bytes = C * HW * itemsize
    try:
        phys_vmem = int(pltpu.get_tpu_info().vmem_capacity_bytes)
    except Exception:
        phys_vmem = 64 << 20                                     # v7x lower bound
    vmem_cap = (phys_vmem * 7) // 8                              # headroom for Mosaic
    vmem_limit = int(max(16 << 20, min(5 * block_bytes + (4 << 20), vmem_cap)))
    # TODO(synk): for B==1 add a second parallel (spatial-tile) grid axis for
    # megacore; for C*H*W blocks beyond the VMEM cap, tile C in the multiply phase.

    cost = pl.CostEstimate(
        flops=int(B * HW * (3 * C + 4 * _K * _K)),
        transcendentals=int(B * HW),
        bytes_accessed=int(2 * B * C * HW * itemsize),           # read x + write out
    )

    out_flat = pl.pallas_call(
        functools.partial(_spatial_gate_kernel, H=H, W=W),
        out_shape=jax.ShapeDtypeStruct((B, C, HW), x.dtype),
        grid_spec=pltpu.PrefetchScalarGridSpec(
            num_scalar_prefetch=1,
            grid=(B,),
            in_specs=[pl.BlockSpec((1, C, HW), lambda b, p: (b, 0, 0))],
            out_specs=pl.BlockSpec((1, C, HW), lambda b, p: (b, 0, 0)),
            scratch_shapes=[
                pltpu.VMEM((2, Hp, Wp), jnp.float32),            # padded pooled maps
                pltpu.VMEM((1, HW), jnp.float32),                # flat sigmoid row
            ],
        ),
        compiler_params=pltpu.CompilerParams(
            dimension_semantics=("parallel",),
            vmem_limit_bytes=vmem_limit,
        ),
        cost_estimate=cost,
    )(params, x_flat)

    return out_flat.reshape(B, C, H, W)


def _reference(x, conv_w, bn_gamma, bn_beta, bn_mean, bn_var, eps=1e-5):
    """Pure-JAX reference matching the PyTorch SpatialGate forward (eval BN)."""
    mx = jnp.max(x, axis=1, keepdims=True)
    mn = jnp.mean(x, axis=1, keepdims=True)
    pooled = jnp.concatenate([mx, mn], axis=1).astype(jnp.float32)          # (B,2,H,W)
    conv = lax.conv_general_dilated(
        pooled, conv_w[None].astype(jnp.float32),
        window_strides=(1, 1), padding=((_PAD, _PAD), (_PAD, _PAD)),
        dimension_numbers=("NCHW", "OIHW", "NCHW"))                         # (B,1,H,W)
    bn = (conv - bn_mean) * (bn_gamma / jnp.sqrt(bn_var + eps)) + bn_beta
    return x * jax.nn.sigmoid(bn)


if __name__ == "__main__":
    key = jax.random.PRNGKey(0)
    kx, kw, kg, kb, km, kv = jax.random.split(key, 6)

    B, C, H, W = 2, 4, 16, 16
    x = jax.random.normal(kx, (B, C, H, W), dtype=jnp.float32)

    # Conv2d(2, 1, 7) weight init: U(-1/sqrt(fan_in), 1/sqrt(fan_in)), fan_in = 2*49.
    bound = 1.0 / (2 * _K * _K) ** 0.5
    conv_w = jax.random.uniform(kw, (2, _K, _K), jnp.float32, -bound, bound)

    # Non-trivial BatchNorm2d(1) inference parameters.
    bn_gamma = jax.random.uniform(kg, (), jnp.float32, 0.5, 1.5)
    bn_beta = jax.random.uniform(kb, (), jnp.float32, -0.5, 0.5)
    bn_mean = jax.random.uniform(km, (), jnp.float32, -0.5, 0.5)
    bn_var = jax.random.uniform(kv, (), jnp.float32, 0.5, 1.5)

    out = spatial_gate_forward(x, conv_w, bn_gamma, bn_beta, bn_mean, bn_var)
    jax.block_until_ready(out)

    ref = _reference(x, conv_w, bn_gamma, bn_beta, bn_mean, bn_var)
    assert out.shape == ref.shape
    assert jnp.allclose(out, ref, atol=1e-5, rtol=1e-5), "mismatch vs reference"

    print("KERNEL_OK")
</pallas_src>

<mosaic_0001>
module attributes {stable_mosaic.version = 11 : i64} {
  func.func @_spatial_gate_kernel(%arg0: i32, %arg1: memref<99xf32, #tpu.memory_space<smem>>, %arg2: memref<1x4x256xf32, #tpu.memory_space<vmem>>, %arg3: memref<1x4x256xf32, #tpu.memory_space<vmem>>, %arg4: memref<2x22x22xf32, #tpu.memory_space<vmem>>, %arg5: memref<1x256xf32, #tpu.memory_space<vmem>>) attributes {dimension_semantics = [#tpu.dimension_semantics<parallel>], iteration_bounds = array<i64: 2>, scalar_prefetch = 1 : i64, scratch_operands = 2 : i64, tpu.core_type = #tpu.core_type<tc>, window_params = [{transform_indices = @transform_0, window_bounds = array<i64: 1, 4, 256>}, {transform_indices = @transform_1, window_bounds = array<i64: 1, 4, 256>}]} {
    %c0 = arith.constant 0 : index
    %c0_0 = arith.constant 0 : index
    %c0_1 = arith.constant 0 : index
    %0 = vector.load %arg2[%c0, %c0_0, %c0_1] : memref<1x4x256xf32, #tpu.memory_space<vmem>>, vector<1x4x256xf32>
    %1 = vector.shape_cast %0 : vector<1x4x256xf32> to vector<4x256xf32>
    %cst = arith.constant dense<0xFF800000> : vector<256xf32>
    %2 = vector.multi_reduction <maximumf>, %1, %cst [0] : vector<4x256xf32> to vector<256xf32>
    %3 = vector.shape_cast %2 : vector<256xf32> to vector<1x256xf32>
    %cst_2 = arith.constant dense<0.000000e+00> : vector<256xf32>
    %4 = vector.multi_reduction <add>, %1, %cst_2 [0] : vector<4x256xf32> to vector<256xf32>
    %5 = vector.shape_cast %4 : vector<256xf32> to vector<1x256xf32>
    %cst_3 = arith.constant 2.500000e-01 : f32
    %6 = vector.broadcast %cst_3 : f32 to vector<1x256xf32>
    %7 = arith.mulf %5, %6 : vector<1x256xf32>
    %cst_4 = arith.constant 0.000000e+00 : f32
    %8 = vector.broadcast %cst_4 : f32 to vector<2x22x22xf32>
    %c0_5 = arith.constant 0 : index
    %c0_6 = arith.constant 0 : index
    %c0_7 = arith.constant 0 : index
    %9 = vector.load %arg4[%c0_5, %c0_6, %c0_7] : memref<2x22x22xf32, #tpu.memory_space<vmem>>, vector<2x22x22xf32>
    tpu.vector_store %arg4[%c0_5, %c0_6, %c0_7], %8 {strides = array<i32>} : memref<2x22x22xf32, #tpu.memory_space<vmem>>, vector<2x22x22xf32>,
    %10 = vector.extract_strided_slice %3 {offsets = [0, 0], sizes = [1, 16], strides = [1, 1]} : vector<1x256xf32> to vector<1x16xf32>
    %c0_8 = arith.constant 0 : index
    %c3 = arith.constant 3 : index
    %c3_9 = arith.constant 3 : index
    %11 = vector.load %arg4[%c0_8, %c3, %c3_9] : memref<2x22x22xf32, #tpu.memory_space<vmem>>, vector<1x1x16xf32>
    %12 = vector.shape_cast %11 : vector<1x1x16xf32> to vector<1x16xf32>
    %13 = vector.shape_cast %10 : vector<1x16xf32> to vector<1x1x16xf32>
    tpu.vector_store %arg4[%c0_8, %c3, %c3_9], %13 {strides = array<i32>} : memref<2x22x22xf32, #tpu.memory_space<vmem>>, vector<1x1x16xf32>,
    %14 = vector.extract_strided_slice %3 {offsets = [0, 16], sizes = [1, 16], strides = [1, 1]} : vector<1x256xf32> to vector<1x16xf32>
    %c0_10 = arith.constant 0 : index
    %c4 = arith.constant 4 : index
    %c3_11 = arith.constant 3 : index
    %15 = vector.load %arg4[%c0_10, %c4, %c3_11] : memref<2x22x22xf32, #tpu.memory_space<vmem>>, vector<1x1x16xf32>
    %16 = vector.shape_cast %15 : vector<1x1x16xf32> to vector<1x16xf32>
    %17 = vector.shape_cast %14 : vector<1x16xf32> to vector<1x1x16xf32>
    tpu.vector_store %arg4[%c0_10, %c4, %c3_11], %17 {strides = array<i32>} : memref<2x22x22xf32, #tpu.memory_space<vmem>>, vector<1x1x16xf32>,
    %18 = vector.extract_strided_slice %3 {offsets = [0, 32], sizes = [1, 16], strides = [1, 1]} : vector<1x256xf32> to vector<1x16xf32>
    %c0_12 = arith.constant 0 : index
    %c5 = arith.constant 5 : index
    %c3_13 = arith.constant 3 : index
    %19 = vector.load %arg4[%c0_12, %c5, %c3_13] : memref<2x22x22xf32, #tpu.memory_space<vmem>>, vector<1x1x16xf32>
    %20 = vector.shape_cast %19 : vector<1x1x16xf32> to vector<1x16xf32>
    %21 = vector.shape_cast %18 : vector<1x16xf32> to vector<1x1x16xf32>
    tpu.vector_store %arg4[%c0_12, %c5, %c3_13], %21 {strides = array<i32>} : memref<2x22x22xf32, #tpu.memory_space<vmem>>, vector<1x1x16xf32>,
    %22 = vector.extract_strided_slice %3 {offsets = [0, 48], sizes = [1, 16], strides = [1, 1]} : vector<1x256xf32> to vector<1x16xf32>
    %c0_14 = arith.constant 0 : index
    %c6 = arith.constant 6 : index
    %c3_15 = arith.constant 3 : index
    %23 = vector.load %arg4[%c0_14, %c6, %c3_15] : memref<2x22x22xf32, #tpu.memory_space<vmem>>, vector<1x1x16xf32>
    %24 = vector.shape_cast %23 : vector<1x1x16xf32> to vector<1x16xf32>
    %25 = vector.shape_cast %22 : vector<1x16xf32> to vector<1x1x16xf32>
    tpu.vector_store %arg4[%c0_14, %c6, %c3_15], %25 {strides = array<i32>} : memref<2x22x22xf32, #tpu.memory_space<vmem>>, vector<1x1x16xf32>,
    %26 = vector.extract_strided_slice %3 {offsets = [0, 64], sizes = [1, 16], strides = [1, 1]} : vector<1x256xf32> to vector<1x16xf32>
    %c0_16 = arith.constant 0 : index
    %c7 = arith.constant 7 : index
    %c3_17 = arith.constant 3 : index
    %27 = vector.load %arg4[%c0_16, %c7, %c3_17] : memref<2x22x22xf32, #tpu.memory_space<vmem>>, vector<1x1x16xf32>
    %28 = vector.shape_cast %27 : vector<1x1x16xf32> to vector<1x16xf32>
    %29 = vector.shape_cast %26 : vector<1x16xf32> to vector<1x1x16xf32>
    tpu.vector_store %arg4[%c0_16, %c7, %c3_17], %29 {strides = array<i32>} : memref<2x22x22xf32, #tpu.memory_space<vmem>>, vector<1x1x16xf32>,
    %30 = vector.extract_strided_slice %3 {offsets = [0, 80], sizes = [1, 16], strides = [1, 1]} : vector<1x256xf32> to vector<1x16xf32>
    %c0_18 = arith.constant 0 : index
    %c8 = arith.constant 8 : index
    %c3_19 = arith.constant 3 : index
    %31 = vector.load %arg4[%c0_18, %c8, %c3_19] : memref<2x22x22xf32, #tpu.memory_space<vmem>>, vector<1x1x16xf32>
    %32 = vector.shape_cast %31 : vector<1x1x16xf32> to vector<1x16xf32>
    %33 = vector.shape_cast %30 : vector<1x16xf32> to vector<1x1x16xf32>
    tpu.vector_store %arg4[%c0_18, %c8, %c3_19], %33 {strides = array<i32>} : memref<2x22x22xf32, #tpu.memory_space<vmem>>, vector<1x1x16xf32>,
    %34 = vector.extract_strided_slice %3 {offsets = [0, 96], sizes = [1, 16], strides = [1, 1]} : vector<1x256xf32> to vector<1x16xf32>
    %c0_20 = arith.constant 0 : index
    %c9 = arith.constant 9 : index
    %c3_21 = arith.constant 3 : index
    %35 = vector.load %arg4[%c0_20, %c9, %c3_21] : memref<2x22x22xf32, #tpu.memory_space<vmem>>, vector<1x1x16xf32>
    %36 = vector.shape_cast %35 : vector<1x1x16xf32> to vector<1x16xf32>
    %37 = vector.shape_cast %34 : vector<1x16xf32> to vector<1x1x16xf32>
    tpu.vector_store %arg4[%c0_20, %c9, %c3_21], %37 {strides = array<i32>} : memref<2x22x22xf32, #tpu.memory_space<vmem>>, vector<1x1x16xf32>,
    %38 = vector.extract_strided_slice %3 {offsets = [0, 112], sizes = [1, 16], strides = [1, 1]} : vector<1x256xf32> to vector<1x16xf32>
    %c0_22 = arith.constant 0 : index
    %c10 = arith.constant 10 : index
    %c3_23 = arith.constant 3 : index
    %39 = vector.load %arg4[%c0_22, %c10, %c3_23] : memref<2x22x22xf32, #tpu.memory_space<vmem>>, vector<1x1x16xf32>
    %40 = vector.shape_cast %39 : vector<1x1x16xf32> to vector<1x16xf32>
    %41 = vector.shape_cast %38 : vector<1x16xf32> to vector<1x1x16xf32>
    tpu.vector_store %arg4[%c0_22, %c10, %c3_23], %41 {strides = array<i32>} : memref<2x22x22xf32, #tpu.memory_space<vmem>>, vector<1x1x16xf32>,
    %42 = vector.extract_strided_slice %3 {offsets = [0, 128], sizes = [1, 16], strides = [1, 1]} : vector<1x256xf32> to vector<1x16xf32>
    %c0_24 = arith.constant 0 : index
    %c11 = arith.constant 11 : index
    %c3_25 = arith.constant 3 : index
    %43 = vector.load %arg4[%c0_24, %c11, %c3_25] : memref<2x22x22xf32, #tpu.memory_space<vmem>>, vector<1x1x16xf32>
    %44 = vector.shape_cast %43 : vector<1x1x16xf32> to vector<1x16xf32>
    %45 = vector.shape_cast %42 : vector<1x16xf32> to vector<1x1x16xf32>
    tpu.vector_store %arg4[%c0_24, %c11, %c3_25], %45 {strides = array<i32>} : memref<2x22x22xf32, #tpu.memory_space<vmem>>, vector<1x1x16xf32>,
    %46 = vector.extract_strided_slice %3 {offsets = [0, 144], sizes = [1, 16], strides = [1, 1]} : vector<1x256xf32> to vector<1x16xf32>
    %c0_26 = arith.constant 0 : index
    %c12 = arith.constant 12 : index
    %c3_27 = arith.constant 3 : index
    %47 = vector.load %arg4[%c0_26, %c12, %c3_27] : memref<2x22x22xf32, #tpu.memory_space<vmem>>, vector<1x1x16xf32>
    %48 = vector.shape_cast %47 : vector<1x1x16xf32> to vector<1x16xf32>
    %49 = vector.shape_cast %46 : vector<1x16xf32> to vector<1x1x16xf32>
    tpu.vector_store %arg4[%c0_26, %c12, %c3_27], %49 {strides = array<i32>} : memref<2x22x22xf32, #tpu.memory_space<vmem>>, vector<1x1x16xf32>,
    %50 = vector.extract_strided_slice %3 {offsets = [0, 160], sizes = [1, 16], strides = [1, 1]} : vector<1x256xf32> to vector<1x16xf32>
    %c0_28 = arith.constant 0 : index
    %c13 = arith.constant 13 : index
    %c3_29 = arith.constant 3 : index
    %51 = vector.load %arg4[%c0_28, %c13, %c3_29] : memref<2x22x22xf32, #tpu.memory_space<vmem>>, vector<1x1x16xf32>
    %52 = vector.shape_cast %51 : vector<1x1x16xf32> to vector<1x16xf32>
    %53 = vector.shape_cast %50 : vector<1x16xf32> to vector<1x1x16xf32>
    tpu.vector_store %arg4[%c0_28, %c13, %c3_29], %53 {strides = array<i32>} : memref<2x22x22xf32, #tpu.memory_space<vmem>>, vector<1x1x16xf32>,
    %54 = vector.extract_strided_slice %3 {offsets = [0, 176], sizes = [1, 16], strides = [1, 1]} : vector<1x256xf32> to vector<1x16xf32>
    %c0_30 = arith.constant 0 : index
    %c14 = arith.constant 14 : index
    %c3_31 = arith.constant 3 : index
    %55 = vector.load %arg4[%c0_30, %c14, %c3_31] : memref<2x22x22xf32, #tpu.memory_space<vmem>>, vector<1x1x16xf32>
    %56 = vector.shape_cast %55 : vector<1x1x16xf32> to vector<1x16xf32>
    %57 = vector.shape_cast %54 : vector<1x16xf32> to vector<1x1x16xf32>
    tpu.vector_store %arg4[%c0_30, %c14, %c3_31], %57 {strides = array<i32>} : memref<2x22x22xf32, #tpu.memory_space<vmem>>, vector<1x1x16xf32>,
    %58 = vector.extract_strided_slice %3 {offsets = [0, 192], sizes = [1, 16], strides = [1, 1]} : vector<1x256xf32> to vector<1x16xf32>
    %c0_32 = arith.constant 0 : index
    %c15 = arith.constant 15 : index
    %c3_33 = arith.constant 3 : index
    %59 = vector.load %arg4[%c0_32, %c15, %c3_33] : memref<2x22x22xf32, #tpu.memory_space<vmem>>, vector<1x1x16xf32>
    %60 = vector.shape_cast %59 : vector<1x1x16xf32> to vector<1x16xf32>
    %61 = vector.shape_cast %58 : vector<1x16xf32> to vector<1x1x16xf32>
    tpu.vector_store %arg4[%c0_32, %c15, %c3_33], %61 {strides = array<i32>} : memref<2x22x22xf32, #tpu.memory_space<vmem>>, vector<1x1x16xf32>,
    %62 = vector.extract_strided_slice %3 {offsets = [0, 208], sizes = [1, 16], strides = [1, 1]} : vector<1x256xf32> to vector<1x16xf32>
    %c0_34 = arith.constant 0 : index
    %c16 = arith.constant 16 : index
    %c3_35 = arith.constant 3 : index
    %63 = vector.load %arg4[%c0_34, %c16, %c3_35] : memref<2x22x22xf32, #tpu.memory_space<vmem>>, vector<1x1x16xf32>
    %64 = vector.shape_cast %63 : vector<1x1x16xf32> to vector<1x16xf32>
    %65 = vector.shape_cast %62 : vector<1x16xf32> to vector<1x1x16xf32>
    tpu.vector_store %arg4[%c0_34, %c16, %c3_35], %65 {strides = array<i32>} : memref<2x22x22xf32, #tpu.memory_space<vmem>>, vector<1x1x16xf32>,
    %66 = vector.extract_strided_slice %3 {offsets = [0, 224], sizes = [1, 16], strides = [1, 1]} : vector<1x256xf32> to vector<1x16xf32>
    %c0_36 = arith.constant 0 : index
    %c17 = arith.constant 17 : index
    %c3_37 = arith.constant 3 : index
    %67 = vector.load %arg4[%c0_36, %c17, %c3_37] : memref<2x22x22xf32, #tpu.memory_space<vmem>>, vector<1x1x16xf32>
    %68 = vector.shape_cast %67 : vector<1x1x16xf32> to vector<1x16xf32>
    %69 = vector.shape_cast %66 : vector<1x16xf32> to vector<1x1x16xf32>
    tpu.vector_store %arg4[%c0_36, %c17, %c3_37], %69 {strides = array<i32>} : memref<2x22x22xf32, #tpu.memory_space<vmem>>, vector<1x1x16xf32>,
    %70 = vector.extract_strided_slice %3 {offsets = [0, 240], sizes = [1, 16], strides = [1, 1]} : vector<1x256xf32> to vector<1x16xf32>
    %c0_38 = arith.constant 0 : index
    %c18 = arith.constant 18 : index
    %c3_39 = arith.constant 3 : index
    %71 = vector.load %arg4[%c0_38, %c18, %c3_39] : memref<2x22x22xf32, #tpu.memory_space<vmem>>, vector<1x1x16xf32>
    %72 = vector.shape_cast %71 : vector<1x1x16xf32> to vector<1x16xf32>
    %73 = vector.shape_cast %70 : vector<1x16xf32> to vector<1x1x16xf32>
    tpu.vector_store %arg4[%c0_38, %c18, %c3_39], %73 {strides = array<i32>} : memref<2x22x22xf32, #tpu.memory_space<vmem>>, vector<1x1x16xf32>,
    %74 = vector.extract_strided_slice %7 {offsets = [0, 0], sizes = [1, 16], strides = [1, 1]} : vector<1x256xf32> to vector<1x16xf32>
    %c1 = arith.constant 1 : index
    %c3_40 = arith.constant 3 : index
    %c3_41 = arith.constant 3 : index
    %75 = vector.load %arg4[%c1, %c3_40, %c3_41] : memref<2x22x22xf32, #tpu.memory_space<vmem>>, vector<1x1x16xf32>
    %76 = vector.shape_cast %75 : vector<1x1x16xf32> to vector<1x16xf32>
    %77 = vector.shape_cast %74 : vector<1x16xf32> to vector<1x1x16xf32>
    tpu.vector_store %arg4[%c1, %c3_40, %c3_41], %77 {strides = array<i32>} : memref<2x22x22xf32, #tpu.memory_space<vmem>>, vector<1x1x16xf32>,
    %78 = vector.extract_strided_slice %7 {offsets = [0, 16], sizes = [1, 16], strides = [1, 1]} : vector<1x256xf32> to vector<1x16xf32>
    %c1_42 = arith.constant 1 : index
    %c4_43 = arith.constant 4 : index
    %c3_44 = arith.constant 3 : index
    %79 = vector.load %arg4[%c1_42, %c4_43, %c3_44] : memref<2x22x22xf32, #tpu.memory_space<vmem>>, vector<1x1x16xf32>
    %80 = vector.shape_cast %79 : vector<1x1x16xf32> to vector<1x16xf32>
    %81 = vector.shape_cast %78 : vector<1x16xf32> to vector<1x1x16xf32>
    tpu.vector_store %arg4[%c1_42, %c4_43, %c3_44], %81 {strides = array<i32>} : memref<2x22x22xf32, #tpu.memory_space<vmem>>, vector<1x1x16xf32>,
    %82 = vector.extract_strided_slice %7 {offsets = [0, 32], sizes = [1, 16], strides = [1, 1]} : vector<1x256xf32> to vector<1x16xf32>
    %c1_45 = arith.constant 1 : index
    %c5_46 = arith.constant 5 : index
    %c3_47 = arith.constant 3 : index
    %83 = vector.load %arg4[%c1_45, %c5_46, %c3_47] : memref<2x22x22xf32, #tpu.memory_space<vmem>>, vector<1x1x16xf32>
    %84 = vector.shape_cast %83 : vector<1x1x16xf32> to vector<1x16xf32>
    %85 = vector.shape_cast %82 : vector<1x16xf32> to vector<1x1x16xf32>
    tpu.vector_store %arg4[%c1_45, %c5_46, %c3_47], %85 {strides = array<i32>} : memref<2x22x22xf32, #tpu.memory_space<vmem>>, vector<1x1x16xf32>,
    %86 = vector.extract_strided_slice %7 {offsets = [0, 48], sizes = [1, 16], strides = [1, 1]} : vector<1x256xf32> to vector<1x16xf32>
    %c1_48 = arith.constant 1 : index
    %c6_49 = arith.constant 6 : index
    %c3_50 = arith.constant 3 : index
    %87 = vector.load %arg4[%c1_48, %c6_49, %c3_50] : memref<2x22x22xf32, #tpu.memory_space<vmem>>, vector<1x1x16xf32>
    %88 = vector.shape_cast %87 : vector<1x1x16xf32> to vector<1x16xf32>
    %89 = vector.shape_cast %86 : vector<1x16xf32> to vector<1x1x16xf32>
    tpu.vector_store %arg4[%c1_48, %c6_49, %c3_50], %89 {strides = array<i32>} : memref<2x22x22xf32, #tpu.memory_space<vmem>>, vector<1x1x16xf32>,
    %90 = vector.extract_strided_slice %7 {offsets = [0, 64], sizes = [1, 16], strides = [1, 1]} : vector<1x256xf32> to vector<1x16xf32>
    %c1_51 = arith.constant 1 : index
    %c7_52 = arith.constant 7 : index
    %c3_53 = arith.constant 3 : index
    %91 = vector.load %arg4[%c1_51, %c7_52, %c3_53] : memref<2x22x22xf32, #tpu.memory_space<vmem>>, vector<1x1x16xf32>
    %92 = vector.shape_cast %91 : vector<1x1x16xf32> to vector<1x16xf32>
    %93 = vector.shape_cast %90 : vector<1x16xf32> to vector<1x1x16xf32>
    tpu.vector_store %arg4[%c1_51, %c7_52, %c3_53], %93 {strides = array<i32>} : memref<2x22x22xf32, #tpu.memory_space<vmem>>, vector<1x1x16xf32>,
    %94 = vector.extract_strided_slice %7 {offsets = [0, 80], sizes = [1, 16], strides = [1, 1]} : vector<1x256xf32> to vector<1x16xf32>
    %c1_54 = arith.constant 1 : index
    %c8_55 = arith.constant 8 : index
    %c3_56 = arith.constant 3 : index
    %95 = vector.load %arg4[%c1_54, %c8_55, %c3_56] : memref<2x22x22xf32, #tpu.memory_space<vmem>>, vector<1x1x16xf32>
    %96 = vector.shape_cast %95 : vector<1x1x16xf32> to vector<1x16xf32>
    %97 = vector.shape_cast %94 : vector<1x16xf32> to vector<1x1x16xf32>
    tpu.vector_store %arg4[%c1_54, %c8_55, %c3_56], %97 {strides = array<i32>} : memref<2x22x22xf32, #tpu.memory_space<vmem>>, vector<1x1x16xf32>,
    %98 = vector.extract_strided_slice %7 {offsets = [0, 96], sizes = [1, 16], strides = [1, 1]} : vector<1x256xf32> to vector<1x16xf32>
    %c1_57 = arith.constant 1 : index
    %c9_58 = arith.constant 9 : index
    %c3_59 = arith.constant 3 : index
    %99 = vector.load %arg4[%c1_57, %c9_58, %c3_59] : memref<2x22x22xf32, #tpu.memory_space<vmem>>, vector<1x1x16xf32>
    %100 = vector.shape_cast %99 : vector<1x1x16xf32> to vector<1x16xf32>
    %101 = vector.shape_cast %98 : vector<1x16xf32> to vector<1x1x16xf32>
    tpu.vector_store %arg4[%c1_57, %c9_58, %c3_59], %101 {strides = array<i32>} : memref<2x22x22xf32, #tpu.memory_space<vmem>>, vector<1x1x16xf32>,
    %102 = vector.extract_strided_slice %7 {offsets = [0, 112], sizes = [1, 16], strides = [1, 1]} : vector<1x256xf32> to vector<1x16xf32>
    %c1_60 = arith.constant 1 : index
    %c10_61 = arith.constant 10 : index
    %c3_62 = arith.constant 3 : index
    %103 = vector.load %arg4[%c1_60, %c10_61, %c3_62] : memref<2x22x22xf32, #tpu.memory_space<vmem>>, vector<1x1x16xf32>
    %104 = vector.shape_cast %103 : vector<1x1x16xf32> to vector<1x16xf32>
    %105 = vector.shape_cast %102 : vector<1x16xf32> to vector<1x1x16xf32>
    tpu.vector_store %arg4[%c1_60, %c10_61, %c3_62], %105 {strides = array<i32>} : memref<2x22x22xf32, #tpu.memory_space<vmem>>, vector<1x1x16xf32>,
    %106 = vector.extract_strided_slice %7 {offsets = [0, 128], sizes = [1, 16], strides = [1, 1]} : vector<1x256xf32> to vector<1x16xf32>
    %c1_63 = arith.constant 1 : index
    %c11_64 = arith.constant 11 : index
    %c3_65 = arith.constant 3 : index
    %107 = vector.load %arg4[%c1_63, %c11_64, %c3_65] : memref<2x22x22xf32, #tpu.memory_space<vmem>>, vector<1x1x16xf32>
    %108 = vector.shape_cast %107 : vector<1x1x16xf32> to vector<1x16xf32>
    %109 = vector.shape_cast %106 : vector<1x16xf32> to vector<1x1x16xf32>
    tpu.vector_store %arg4[%c1_63, %c11_64, %c3_65], %109 {strides = array<i32>} : memref<2x22x22xf32, #tpu.memory_space<vmem>>, vector<1x1x16xf32>,
    %110 = vector.extract_strided_slice %7 {offsets = [0, 144], sizes = [1, 16], strides = [1, 1]} : vector<1x256xf32> to vector<1x16xf32>
    %c1_66 = arith.constant 1 : index
    %c12_67 = arith.constant 12 : index
    %c3_68 = arith.constant 3 : index
    %111 = vector.load %arg4[%c1_66, %c12_67, %c3_68] : memref<2x22x22xf32, #tpu.memory_space<vmem>>, vector<1x1x16xf32>
    %112 = vector.shape_cast %111 : vector<1x1x16xf32> to vector<1x16xf32>
    %113 = vector.shape_cast %110 : vector<1x16xf32> to vector<1x1x16xf32>
    tpu.vector_store %arg4[%c1_66, %c12_67, %c3_68], %113 {strides = array<i32>} : memref<2x22x22xf32, #tpu.memory_space<vmem>>, vector<1x1x16xf32>,
    %114 = vector.extract_strided_slice %7 {offsets = [0, 160], sizes = [1, 16], strides = [1, 1]} : vector<1x256xf32> to vector<1x16xf32>
    %c1_69 = arith.constant 1 : index
    %c13_70 = arith.constant 13 : index
    %c3_71 = arith.constant 3 : index
    %115 = vector.load %arg4[%c1_69, %c13_70, %c3_71] : memref<2x22x22xf32, #tpu.memory_space<vmem>>, vector<1x1x16xf32>
    %116 = vector.shape_cast %115 : vector<1x1x16xf32> to vector<1x16xf32>
    %117 = vector.shape_cast %114 : vector<1x16xf32> to vector<1x1x16xf32>
    tpu.vector_store %arg4[%c1_69, %c13_70, %c3_71], %117 {strides = array<i32>} : memref<2x22x22xf32, #tpu.memory_space<vmem>>, vector<1x1x16xf32>,
    %118 = vector.extract_strided_slice %7 {offsets = [0, 176], sizes = [1, 16], strides = [1, 1]} : vector<1x256xf32> to vector<1x16xf32>
    %c1_72 = arith.constant 1 : index
    %c14_73 = arith.constant 14 : index
    %c3_74 = arith.constant 3 : index
    %119 = vector.load %arg4[%c1_72, %c14_73, %c3_74] : memref<2x22x22xf32, #tpu.memory_space<vmem>>, vector<1x1x16xf32>
    %120 = vector.shape_cast %119 : vector<1x1x16xf32> to vector<1x16xf32>
    %121 = vector.shape_cast %118 : vector<1x16xf32> to vector<1x1x16xf32>
    tpu.vector_store %arg4[%c1_72, %c14_73, %c3_74], %121 {strides = array<i32>} : memref<2x22x22xf32, #tpu.memory_space<vmem>>, vector<1x1x16xf32>,
    %122 = vector.extract_strided_slice %7 {offsets = [0, 192], sizes = [1, 16], strides = [1, 1]} : vector<1x256xf32> to vector<1x16xf32>
    %c1_75 = arith.constant 1 : index
    %c15_76 = arith.constant 15 : index
    %c3_77 = arith.constant 3 : index
    %123 = vector.load %arg4[%c1_75, %c15_76, %c3_77] : memref<2x22x22xf32, #tpu.memory_space<vmem>>, vector<1x1x16xf32>
    %124 = vector.shape_cast %123 : vector<1x1x16xf32> to vector<1x16xf32>
    %125 = vector.shape_cast %122 : vector<1x16xf32> to vector<1x1x16xf32>
    tpu.vector_store %arg4[%c1_75, %c15_76, %c3_77], %125 {strides = array<i32>} : memref<2x22x22xf32, #tpu.memory_space<vmem>>, vector<1x1x16xf32>,
    %126 = vector.extract_strided_slice %7 {offsets = [0, 208], sizes = [1, 16], strides = [1, 1]} : vector<1x256xf32> to vector<1x16xf32>
    %c1_78 = arith.constant 1 : index
    %c16_79 = arith.constant 16 : index
    %c3_80 = arith.constant 3 : index
    %127 = vector.load %arg4[%c1_78, %c16_79, %c3_80] : memref<2x22x22xf32, #tpu.memory_space<vmem>>, vector<1x1x16xf32>
    %128 = vector.shape_cast %127 : vector<1x1x16xf32> to vector<1x16xf32>
    %129 = vector.shape_cast %126 : vector<1x16xf32> to vector<1x1x16xf32>
    tpu.vector_store %arg4[%c1_78, %c16_79, %c3_80], %129 {strides = array<i32>} : memref<2x22x22xf32, #tpu.memory_space<vmem>>, vector<1x1x16xf32>,
    %130 = vector.extract_strided_slice %7 {offsets = [0, 224], sizes = [1, 16], strides = [1, 1]} : vector<1x256xf32> to vector<1x16xf32>
    %c1_81 = arith.constant 1 : index
    %c17_82 = arith.constant 17 : index
    %c3_83 = arith.constant 3 : index
    %131 = vector.load %arg4[%c1_81, %c17_82, %c3_83] : memref<2x22x22xf32, #tpu.memory_space<vmem>>, vector<1x1x16xf32>
    %132 = vector.shape_cast %131 : vector<1x1x16xf32> to vector<1x16xf32>
    %133 = vector.shape_cast %130 : vector<1x16xf32> to vector<1x1x16xf32>
    tpu.vector_store %arg4[%c1_81, %c17_82, %c3_83], %133 {strides = array<i32>} : memref<2x22x22xf32, #tpu.memory_space<vmem>>, vector<1x1x16xf32>,
    %134 = vector.extract_strided_slice %7 {offsets = [0, 240], sizes = [1, 16], strides = [1, 1]} : vector<1x256xf32> to vector<1x16xf32>
    %c1_84 = arith.constant 1 : index
    %c18_85 = arith.constant 18 : index
    %c3_86 = arith.constant 3 : index
    %135 = vector.load %arg4[%c1_84, %c18_85, %c3_86] : memref<2x22x22xf32, #tpu.memory_space<vmem>>, vector<1x1x16xf32>
    %136 = vector.shape_cast %135 : vector<1x1x16xf32> to vector<1x16xf32>
    %137 = vector.shape_cast %134 : vector<1x16xf32> to vector<1x1x16xf32>
    tpu.vector_store %arg4[%c1_84, %c18_85, %c3_86], %137 {strides = array<i32>} : memref<2x22x22xf32, #tpu.memory_space<vmem>>, vector<1x1x16xf32>,
    %cst_87 = arith.constant 0.000000e+00 : f32
    %138 = vector.broadcast %cst_87 : f32 to vector<16x16xf32>
    %cst_88 = arith.constant 0.000000e+00 : f32
    %139 = vector.broadcast %cst_88 : f32 to vector<16x16xf32>
    %cst_89 = arith.constant 0.000000e+00 : f32
    %140 = vector.broadcast %cst_89 : f32 to vector<16x16xf32>
    %cst_90 = arith.constant 0.000000e+00 : f32
    %141 = vector.broadcast %cst_90 : f32 to vector<16x16xf32>
    %c0_91 = arith.constant 0 : index
    %c0_92 = arith.constant 0 : index
    %c0_93 = arith.constant 0 : index
    %142 = vector.load %arg4[%c0_91, %c0_92, %c0_93] : memref<2x22x22xf32, #tpu.memory_space<vmem>>, vector<1x22x22xf32>
    %143 = vector.shape_cast %142 : vector<1x22x22xf32> to vector<22x22xf32>
    %144 = vector.extract_strided_slice %143 {offsets = [0, 0], sizes = [22, 16], strides = [1, 1]} : vector<22x22xf32> to vector<22x16xf32>
    %145 = vector.extract_strided_slice %143 {offsets = [0, 1], sizes = [22, 16], strides = [1, 1]} : vector<22x22xf32> to vector<22x16xf32>
    %146 = vector.extract_strided_slice %143 {offsets = [0, 2], sizes = [22, 16], strides = [1, 1]} : vector<22x22xf32> to vector<22x16xf32>
    %147 = vector.extract_strided_slice %143 {offsets = [0, 3], sizes = [22, 16], strides = [1, 1]} : vector<22x22xf32> to vector<22x16xf32>
    %148 = vector.extract_strided_slice %143 {offsets = [0, 4], sizes = [22, 16], strides = [1, 1]} : vector<22x22xf32> to vector<22x16xf32>
    %149 = vector.extract_strided_slice %143 {offsets = [0, 5], sizes = [22, 16], strides = [1, 1]} : vector<22x22xf32> to vector<22x16xf32>
    %150 = vector.extract_strided_slice %143 {offsets = [0, 6], sizes = [22, 16], strides = [1, 1]} : vector<22x22xf32> to vector<22x16xf32>
    %c0_94 = arith.constant 0 : index
    %151 = memref.load %arg1[%c0_94] : memref<99xf32, #tpu.memory_space<smem>>
    %152 = vector.extract_strided_slice %144 {offsets = [0, 0], sizes = [16, 16], strides = [1, 1]} : vector<22x16xf32> to vector<16x16xf32>
    %153 = vector.broadcast %151 : f32 to vector<16x16xf32>
    %154 = arith.mulf %153, %152 : vector<16x16xf32>
    %155 = arith.addf %138, %154 : vector<16x16xf32>
    %c1_95 = arith.constant 1 : index
    %156 = memref.load %arg1[%c1_95] : memref<99xf32, #tpu.memory_space<smem>>
    %157 = vector.extract_strided_slice %145 {offsets = [0, 0], sizes = [16, 16], strides = [1, 1]} : vector<22x16xf32> to vector<16x16xf32>
    %158 = vector.broadcast %156 : f32 to vector<16x16xf32>
    %159 = arith.mulf %158, %157 : vector<16x16xf32>
    %160 = arith.addf %139, %159 : vector<16x16xf32>
    %c2 = arith.constant 2 : index
    %161 = memref.load %arg1[%c2] : memref<99xf32, #tpu.memory_space<smem>>
    %162 = vector.extract_strided_slice %146 {offsets = [0, 0], sizes = [16, 16], strides = [1, 1]} : vector<22x16xf32> to vector<16x16xf32>
    %163 = vector.broadcast %161 : f32 to vector<16x16xf32>
    %164 = arith.mulf %163, %162 : vector<16x16xf32>
    %165 = arith.addf %140, %164 : vector<16x16xf32>
    %c3_96 = arith.constant 3 : index
    %166 = memref.load %arg1[%c3_96] : memref<99xf32, #tpu.memory_space<smem>>
    %167 = vector.extract_strided_slice %147 {offsets = [0, 0], sizes = [16, 16], strides = [1, 1]} : vector<22x16xf32> to vector<16x16xf32>
    %168 = vector.broadcast %166 : f32 to vector<16x16xf32>
    %169 = arith.mulf %168, %167 : vector<16x16xf32>
    %170 = arith.addf %141, %169 : vector<16x16xf32>
    %c4_97 = arith.constant 4 : index
    %171 = memref.load %arg1[%c4_97] : memref<99xf32, #tpu.memory_space<smem>>
    %172 = vector.extract_strided_slice %148 {offsets = [0, 0], sizes = [16, 16], strides = [1, 1]} : vector<22x16xf32> to vector<16x16xf32>
    %173 = vector.broadcast %171 : f32 to vector<16x16xf32>
    %174 = arith.mulf %173, %172 : vector<16x16xf32>
    %175 = arith.addf %155, %174 : vector<16x16xf32>
    %c5_98 = arith.constant 5 : index
    %176 = memref.load %arg1[%c5_98] : memref<99xf32, #tpu.memory_space<smem>>
    %177 = vector.extract_strided_slice %149 {offsets = [0, 0], sizes = [16, 16], strides = [1, 1]} : vector<22x16xf32> to vector<16x16xf32>
    %178 = vector.broadcast %176 : f32 to vector<16x16xf32>
    %179 = arith.mulf %178, %177 : vector<16x16xf32>
    %180 = arith.addf %160, %179 : vector<16x16xf32>
    %c6_99 = arith.constant 6 : index
    %181 = memref.load %arg1[%c6_99] : memref<99xf32, #tpu.memory_space<smem>>
    %182 = vector.extract_strided_slice %150 {offsets = [0, 0], sizes = [16, 16], strides = [1, 1]} : vector<22x16xf32> to vector<16x16xf32>
    %183 = vector.broadcast %181 : f32 to vector<16x16xf32>
    %184 = arith.mulf %183, %182 : vector<16x16xf32>
    %185 = arith.addf %165, %184 : vector<16x16xf32>
    %c7_100 = arith.constant 7 : index
    %186 = memref.load %arg1[%c7_100] : memref<99xf32, #tpu.memory_space<smem>>
    %187 = vector.extract_strided_slice %144 {offsets = [1, 0], sizes = [16, 16], strides = [1, 1]} : vector<22x16xf32> to vector<16x16xf32>
    %188 = vector.broadcast %186 : f32 to vector<16x16xf32>
    %189 = arith.mulf %188, %187 : vector<16x16xf32>
    %190 = arith.addf %170, %189 : vector<16x16xf32>
    %c8_101 = arith.constant 8 : index
    %191 = memref.load %arg1[%c8_101] : memref<99xf32, #tpu.memory_space<smem>>
    %192 = vector.extract_strided_slice %145 {offsets = [1, 0], sizes = [16, 16], strides = [1, 1]} : vector<22x16xf32> to vector<16x16xf32>
    %193 = vector.broadcast %191 : f32 to vector<16x16xf32>
    %194 = arith.mulf %193, %192 : vector<16x16xf32>
    %195 = arith.addf %175, %194 : vector<16x16xf32>
    %c9_102 = arith.constant 9 : index
    %196 = memref.load %arg1[%c9_102] : memref<99xf32, #tpu.memory_space<smem>>
    %197 = vector.extract_strided_slice %146 {offsets = [1, 0], sizes = [16, 16], strides = [1, 1]} : vector<22x16xf32> to vector<16x16xf32>
    %198 = vector.broadcast %196 : f32 to vector<16x16xf32>
    %199 = arith.mulf %198, %197 : vector<16x16xf32>
    %200 = arith.addf %180, %199 : vector<16x16xf32>
    %c10_103 = arith.constant 10 : index
    %201 = memref.load %arg1[%c10_103] : memref<99xf32, #tpu.memory_space<smem>>
    %202 = vector.extract_strided_slice %147 {offsets = [1, 0], sizes = [16, 16], strides = [1, 1]} : vector<22x16xf32> to vector<16x16xf32>
    %203 = vector.broadcast %201 : f32 to vector<16x16xf32>
    %204 = arith.mulf %203, %202 : vector<16x16xf32>
    %205 = arith.addf %185, %204 : vector<16x16xf32>
    %c11_104 = arith.constant 11 : index
    %206 = memref.load %arg1[%c11_104] : memref<99xf32, #tpu.memory_space<smem>>
    %207 = vector.extract_strided_slice %148 {offsets = [1, 0], sizes = [16, 16], strides = [1, 1]} : vector<22x16xf32> to vector<16x16xf32>
    %208 = vector.broadcast %206 : f32 to vector<16x16xf32>
    %209 = arith.mulf %208, %207 : vector<16x16xf32>
    %210 = arith.addf %190, %209 : vector<16x16xf32>
    %c12_105 = arith.constant 12 : index
    %211 = memref.load %arg1[%c12_105] : memref<99xf32, #tpu.memory_space<smem>>
    %212 = vector.extract_strided_slice %149 {offsets = [1, 0], sizes = [16, 16], strides = [1, 1]} : vector<22x16xf32> to vector<16x16xf32>
    %213 = vector.broadcast %211 : f32 to vector<16x16xf32>
    %214 = arith.mulf %213, %212 : vector<16x16xf32>
    %215 = arith.addf %195, %214 : vector<16x16xf32>
    %c13_106 = arith.constant 13 : index
    %216 = memref.load %arg1[%c13_106] : memref<99xf32, #tpu.memory_space<smem>>
    %217 = vector.extract_strided_slice %150 {offsets = [1, 0], sizes = [16, 16], strides = [1, 1]} : vector<22x16xf32> to vector<16x16xf32>
    %218 = vector.broadcast %216 : f32 to vector<16x16xf32>
    %219 = arith.mulf %218, %217 : vector<16x16xf32>
    %220 = arith.addf %200, %219 : vector<16x16xf32>
    %c14_107 = arith.constant 14 : index
    %221 = memref.load %arg1[%c14_107] : memref<99xf32, #tpu.memory_space<smem>>
    %222 = vector.extract_strided_slice %144 {offsets = [2, 0], sizes = [16, 16], strides = [1, 1]} : vector<22x16xf32> to vector<16x16xf32>
    %223 = vector.broadcast %221 : f32 to vector<16x16xf32>
    %224 = arith.mulf %223, %222 : vector<16x16xf32>
    %225 = arith.addf %205, %224 : vector<16x16xf32>
    %c15_108 = arith.constant 15 : index
    %226 = memref.load %arg1[%c15_108] : memref<99xf32, #tpu.memory_space<smem>>
    %227 = vector.extract_strided_slice %145 {offsets = [2, 0], sizes = [16, 16], strides = [1, 1]} : vector<22x16xf32> to vector<16x16xf32>
    %228 = vector.broadcast %226 : f32 to vector<16x16xf32>
    %229 = arith.mulf %228, %227 : vector<16x16xf32>
    %230 = arith.addf %210, %229 : vector<16x16xf32>
    %c16_109 = arith.constant 16 : index
    %231 = memref.load %arg1[%c16_109] : memref<99xf32, #tpu.memory_space<smem>>
    %232 = vector.extract_strided_slice %146 {offsets = [2, 0], sizes = [16, 16], strides = [1, 1]} : vector<22x16xf32> to vector<16x16xf32>
    %233 = vector.broadcast %231 : f32 to vector<16x16xf32>
    %234 = arith.mulf %233, %232 : vector<16x16xf32>
    %235 = arith.addf %215, %234 : vector<16x16xf32>
    %c17_110 = arith.constant 17 : index
    %236 = memref.load %arg1[%c17_110] : memref<99xf32, #tpu.memory_space<smem>>
    %237 = vector.extract_strided_slice %147 {offsets = [2, 0], sizes = [16, 16], strides = [1, 1]} : vector<22x16xf32> to vector<16x16xf32>
    %238 = vector.broadcast %236 : f32 to vector<16x16xf32>
    %239 = arith.mulf %238, %237 : vector<16x16xf32>
    %240 = arith.addf %220, %239 : vector<16x16xf32>
    %c18_111 = arith.constant 18 : index
    %241 = memref.load %arg1[%c18_111] : memref<99xf32, #tpu.memory_space<smem>>
    %242 = vector.extract_strided_slice %148 {offsets = [2, 0], sizes = [16, 16], strides = [1, 1]} : vector<22x16xf32> to vector<16x16xf32>
    %243 = vector.broadcast %241 : f32 to vector<16x16xf32>
    %244 = arith.mulf %243, %242 : vector<16x16xf32>
    %245 = arith.addf %225, %244 : vector<16x16xf32>
    %c19 = arith.constant 19 : index
    %246 = memref.load %arg1[%c19] : memref<99xf32, #tpu.memory_space<smem>>
    %247 = vector.extract_strided_slice %149 {offsets = [2, 0], sizes = [16, 16], strides = [1, 1]} : vector<22x16xf32> to vector<16x16xf32>
    %248 = vector.broadcast %246 : f32 to vector<16x16xf32>
    %249 = arith.mulf %248, %247 : vector<16x16xf32>
    %250 = arith.addf %230, %249 : vector<16x16xf32>
    %c20 = arith.constant 20 : index
    %251 = memref.load %arg1[%c20] : memref<99xf32, #tpu.memory_space<smem>>
    %252 = vector.extract_strided_slice %150 {offsets = [2, 0], sizes = [16, 16], strides = [1, 1]} : vector<22x16xf32> to vector<16x16xf32>
    %253 = vector.broadcast %251 : f32 to vector<16x16xf32>
    %254 = arith.mulf %253, %252 : vector<16x16xf32>
    %255 = arith.addf %235, %254 : vector<16x16xf32>
    %c21 = arith.constant 21 : index
    %256 = memref.load %arg1[%c21] : memref<99xf32, #tpu.memory_space<smem>>
    %257 = vector.extract_strided_slice %144 {offsets = [3, 0], sizes = [16, 16], strides = [1, 1]} : vector<22x16xf32> to vector<16x16xf32>
    %258 = vector.broadcast %256 : f32 to vector<16x16xf32>
    %259 = arith.mulf %258, %257 : vector<16x16xf32>
    %260 = arith.addf %240, %259 : vector<16x16xf32>
    %c22 = arith.constant 22 : index
    %261 = memref.load %arg1[%c22] : memref<99xf32, #tpu.memory_space<smem>>
    %262 = vector.extract_strided_slice %145 {offsets = [3, 0], sizes = [16, 16], strides = [1, 1]} : vector<22x16xf32> to vector<16x16xf32>
    %263 = vector.broadcast %261 : f32 to vector<16x16xf32>
    %264 = arith.mulf %263, %262 : vector<16x16xf32>
    %265 = arith.addf %245, %264 : vector<16x16xf32>
    %c23 = arith.constant 23 : index
    %266 = memref.load %arg1[%c23] : memref<99xf32, #tpu.memory_space<smem>>
    %267 = vector.extract_strided_slice %146 {offsets = [3, 0], sizes = [16, 16], strides = [1, 1]} : vector<22x16xf32> to vector<16x16xf32>
    %268 = vector.broadcast %266 : f32 to vector<16x16xf32>
    %269 = arith.mulf %268, %267 : vector<16x16xf32>
    %270 = arith.addf %250, %269 : vector<16x16xf32>
    %c24 = arith.constant 24 : index
    %271 = memref.load %arg1[%c24] : memref<99xf32, #tpu.memory_space<smem>>
    %272 = vector.extract_strided_slice %147 {offsets = [3, 0], sizes = [16, 16], strides = [1, 1]} : vector<22x16xf32> to vector<16x16xf32>
    %273 = vector.broadcast %271 : f32 to vector<16x16xf32>
    %274 = arith.mulf %273, %272 : vector<16x16xf32>
    %275 = arith.addf %255, %274 : vector<16x16xf32>
    %c25 = arith.constant 25 : index
    %276 = memref.load %arg1[%c25] : memref<99xf32, #tpu.memory_space<smem>>
    %277 = vector.extract_strided_slice %148 {offsets = [3, 0], sizes = [16, 16], strides = [1, 1]} : vector<22x16xf32> to vector<16x16xf32>
    %278 = vector.broadcast %276 : f32 to vector<16x16xf32>
    %279 = arith.mulf %278, %277 : vector<16x16xf32>
    %280 = arith.addf %260, %279 : vector<16x16xf32>
    %c26 = arith.constant 26 : index
    %281 = memref.load %arg1[%c26] : memref<99xf32, #tpu.memory_space<smem>>
    %282 = vector.extract_strided_slice %149 {offsets = [3, 0], sizes = [16, 16], strides = [1, 1]} : vector<22x16xf32> to vector<16x16xf32>
    %283 = vector.broadcast %281 : f32 to vector<16x16xf32>
    %284 = arith.mulf %283, %282 : vector<16x16xf32>
    %285 = arith.addf %265, %284 : vector<16x16xf32>
    %c27 = arith.constant 27 : index
    %286 = memref.load %arg1[%c27] : memref<99xf32, #tpu.memory_space<smem>>
    %287 = vector.extract_strided_slice %150 {offsets = [3, 0], sizes = [16, 16], strides = [1, 1]} : vector<22x16xf32> to vector<16x16xf32>
    %288 = vector.broadcast %286 : f32 to vector<16x16xf32>
    %289 = arith.mulf %288, %287 : vector<16x16xf32>
    %290 = arith.addf %270, %289 : vector<16x16xf32>
    %c28 = arith.constant 28 : index
    %291 = memref.load %arg1[%c28] : memref<99xf32, #tpu.memory_space<smem>>
    %292 = vector.extract_strided_slice %144 {offsets = [4, 0], sizes = [16, 16], strides = [1, 1]} : vector<22x16xf32> to vector<16x16xf32>
    %293 = vector.broadcast %291 : f32 to vector<16x16xf32>
    %294 = arith.mulf %293, %292 : vector<16x16xf32>
    %295 = arith.addf %275, %294 : vector<16x16xf32>
    %c29 = arith.constant 29 : index
    %296 = memref.load %arg1[%c29] : memref<99xf32, #tpu.memory_space<smem>>
    %297 = vector.extract_strided_slice %145 {offsets = [4, 0], sizes = [16, 16], strides = [1, 1]} : vector<22x16xf32> to vector<16x16xf32>
    %298 = vector.broadcast %296 : f32 to vector<16x16xf32>
    %299 = arith.mulf %298, %297 : vector<16x16xf32>
    %300 = arith.addf %280, %299 : vector<16x16xf32>
    %c30 = arith.constant 30 : index
    %301 = memref.load %arg1[%c30] : memref<99xf32, #tpu.memory_space<smem>>
    %302 = vector.extract_strided_slice %146 {offsets = [4, 0], sizes = [16, 16], strides = [1, 1]} : vector<22x16xf32> to vector<16x16xf32>
    %303 = vector.broadcast %301 : f32 to vector<16x16xf32>
    %304 = arith.mulf %303, %302 : vector<16x16xf32>
    %305 = arith.addf %285, %304 : vector<16x16xf32>
    %c31 = arith.constant 31 : index
    %306 = memref.load %arg1[%c31] : memref<99xf32, #tpu.memory_space<smem>>
    %307 = vector.extract_strided_slice %147 {offsets = [4, 0], sizes = [16, 16], strides = [1, 1]} : vector<22x16xf32> to vector<16x16xf32>
    %308 = vector.broadcast %306 : f32 to vector<16x16xf32>
    %309 = arith.mulf %308, %307 : vector<16x16xf32>
    %310 = arith.addf %290, %309 : vector<16x16xf32>
    %c32 = arith.constant 32 : index
    %311 = memref.load %arg1[%c32] : memref<99xf32, #tpu.memory_space<smem>>
    %312 = vector.extract_strided_slice %148 {offsets = [4, 0], sizes = [16, 16], strides = [1, 1]} : vector<22x16xf32> to vector<16x16xf32>
    %313 = vector.broadcast %311 : f32 to vector<16x16xf32>
    %314 = arith.mulf %313, %312 : vector<16x16xf32>
    %315 = arith.addf %295, %314 : vector<16x16xf32>
    %c33 = arith.constant 33 : index
    %316 = memref.load %arg1[%c33] : memref<99xf32, #tpu.memory_space<smem>>
    %317 = vector.extract_strided_slice %149 {offsets = [4, 0], sizes = [16, 16], strides = [1, 1]} : vector<22x16xf32> to vector<16x16xf32>
    %318 = vector.broadcast %316 : f32 to vector<16x16xf32>
    %319 = arith.mulf %318, %317 : vector<16x16xf32>
    %320 = arith.addf %300, %319 : vector<16x16xf32>
    %c34 = arith.constant 34 : index
    %321 = memref.load %arg1[%c34] : memref<99xf32, #tpu.memory_space<smem>>
    %322 = vector.extract_strided_slice %150 {offsets = [4, 0], sizes = [16, 16], strides = [1, 1]} : vector<22x16xf32> to vector<16x16xf32>
    %323 = vector.broadcast %321 : f32 to vector<16x16xf32>
    %324 = arith.mulf %323, %322 : vector<16x16xf32>
    %325 = arith.addf %305, %324 : vector<16x16xf32>
    %c35 = arith.constant 35 : index
    %326 = memref.load %arg1[%c35] : memref<99xf32, #tpu.memory_space<smem>>
    %327 = vector.extract_strided_slice %144 {offsets = [5, 0], sizes = [16, 16], strides = [1, 1]} : vector<22x16xf32> to vector<16x16xf32>
    %328 = vector.broadcast %326 : f32 to vector<16x16xf32>
    %329 = arith.mulf %328, %327 : vector<16x16xf32>
    %330 = arith.addf %310, %329 : vector<16x16xf32>
    %c36 = arith.constant 36 : index
    %331 = memref.load %arg1[%c36] : memref<99xf32, #tpu.memory_space<smem>>
    %332 = vector.extract_strided_slice %145 {offsets = [5, 0], sizes = [16, 16], strides = [1, 1]} : vector<22x16xf32> to vector<16x16xf32>
    %333 = vector.broadcast %331 : f32 to vector<16x16xf32>
    %334 = arith.mulf %333, %332 : vector<16x16xf32>
    %335 = arith.addf %315, %334 : vector<16x16xf32>
    %c37 = arith.constant 37 : index
    %336 = memref.load %arg1[%c37] : memref<99xf32, #tpu.memory_space<smem>>
    %337 = vector.extract_strided_slice %146 {offsets = [5, 0], sizes = [16, 16], strides = [1, 1]} : vector<22x16xf32> to vector<16x16xf32>
    %338 = vector.broadcast %336 : f32 to vector<16x16xf32>
    %339 = arith.mulf %338, %337 : vector<16x16xf32>
    %340 = arith.addf %320, %339 : vector<16x16xf32>
    %c38 = arith.constant 38 : index
    %341 = memref.load %arg1[%c38] : memref<99xf32, #tpu.memory_space<smem>>
    %342 = vector.extract_strided_slice %147 {offsets = [5, 0], sizes = [16, 16], strides = [1, 1]} : vector<22x16xf32> to vector<16x16xf32>
    %343 = vector.broadcast %341 : f32 to vector<16x16xf32>
    %344 = arith.mulf %343, %342 : vector<16x16xf32>
    %345 = arith.addf %325, %344 : vector<16x16xf32>
    %c39 = arith.constant 39 : index
    %346 = memref.load %arg1[%c39] : memref<99xf32, #tpu.memory_space<smem>>
    %347 = vector.extract_strided_slice %148 {offsets = [5, 0], sizes = [16, 16], strides = [1, 1]} : vector<22x16xf32> to vector<16x16xf32>
    %348 = vector.broadcast %346 : f32 to vector<16x16xf32>
    %349 = arith.mulf %348, %347 : vector<16x16xf32>
    %350 = arith.addf %330, %349 : vector<16x16xf32>
    %c40 = arith.constant 40 : index
    %351 = memref.load %arg1[%c40] : memref<99xf32, #tpu.memory_space<smem>>
    %352 = vector.extract_strided_slice %149 {offsets = [5, 0], sizes = [16, 16], strides = [1, 1]} : vector<22x16xf32> to vector<16x16xf32>
    %353 = vector.broadcast %351 : f32 to vector<16x16xf32>
    %354 = arith.mulf %353, %352 : vector<16x16xf32>
    %355 = arith.addf %335, %354 : vector<16x16xf32>
    %c41 = arith.constant 41 : index
    %356 = memref.load %arg1[%c41] : memref<99xf32, #tpu.memory_space<smem>>
    %357 = vector.extract_strided_slice %150 {offsets = [5, 0], sizes = [16, 16], strides = [1, 1]} : vector<22x16xf32> to vector<16x16xf32>
    %358 = vector.broadcast %356 : f32 to vector<16x16xf32>
    %359 = arith.mulf %358, %357 : vector<16x16xf32>
    %360 = arith.addf %340, %359 : vector<16x16xf32>
    %c42 = arith.constant 42 : index
    %361 = memref.load %arg1[%c42] : memref<99xf32, #tpu.memory_space<smem>>
    %362 = vector.extract_strided_slice %144 {offsets = [6, 0], sizes = [16, 16], strides = [1, 1]} : vector<22x16xf32> to vector<16x16xf32>
    %363 = vector.broadcast %361 : f32 to vector<16x16xf32>
    %364 = arith.mulf %363, %362 : vector<16x16xf32>
    %365 = arith.addf %345, %364 : vector<16x16xf32>
    %c43 = arith.constant 43 : index
    %366 = memref.load %arg1[%c43] : memref<99xf32, #tpu.memory_space<smem>>
    %367 = vector.extract_strided_slice %145 {offsets = [6, 0], sizes = [16, 16], strides = [1, 1]} : vector<22x16xf32> to vector<16x16xf32>
    %368 = vector.broadcast %366 : f32 to vector<16x16xf32>
    %369 = arith.mulf %368, %367 : vector<16x16xf32>
    %370 = arith.addf %350, %369 : vector<16x16xf32>
    %c44 = arith.constant 44 : index
    %371 = memref.load %arg1[%c44] : memref<99xf32, #tpu.memory_space<smem>>
    %372 = vector.extract_strided_slice %146 {offsets = [6, 0], sizes = [16, 16], strides = [1, 1]} : vector<22x16xf32> to vector<16x16xf32>
    %373 = vector.broadcast %371 : f32 to vector<16x16xf32>
    %374 = arith.mulf %373, %372 : vector<16x16xf32>
    %375 = arith.addf %355, %374 : vector<16x16xf32>
    %c45 = arith.constant 45 : index
    %376 = memref.load %arg1[%c45] : memref<99xf32, #tpu.memory_space<smem>>
    %377 = vector.extract_strided_slice %147 {offsets = [6, 0], sizes = [16, 16], strides = [1, 1]} : vector<22x16xf32> to vector<16x16xf32>
    %378 = vector.broadcast %376 : f32 to vector<16x16xf32>
    %379 = arith.mulf %378, %377 : vector<16x16xf32>
    %380 = arith.addf %360, %379 : vector<16x16xf32>
    %c46 = arith.constant 46 : index
    %381 = memref.load %arg1[%c46] : memref<99xf32, #tpu.memory_space<smem>>
    %382 = vector.extract_strided_slice %148 {offsets = [6, 0], sizes = [16, 16], strides = [1, 1]} : vector<22x16xf32> to vector<16x16xf32>
    %383 = vector.broadcast %381 : f32 to vector<16x16xf32>
    %384 = arith.mulf %383, %382 : vector<16x16xf32>
    %385 = arith.addf %365, %384 : vector<16x16xf32>
    %c47 = arith.constant 47 : index
    %386 = memref.load %arg1[%c47] : memref<99xf32, #tpu.memory_space<smem>>
    %387 = vector.extract_strided_slice %149 {offsets = [6, 0], sizes = [16, 16], strides = [1, 1]} : vector<22x16xf32> to vector<16x16xf32>
    %388 = vector.broadcast %386 : f32 to vector<16x16xf32>
    %389 = arith.mulf %388, %387 : vector<16x16xf32>
    %390 = arith.addf %370, %389 : vector<16x16xf32>
    %c48 = arith.constant 48 : index
    %391 = memref.load %arg1[%c48] : memref<99xf32, #tpu.memory_space<smem>>
    %392 = vector.extract_strided_slice %150 {offsets = [6, 0], sizes = [16, 16], strides = [1, 1]} : vector<22x16xf32> to vector<16x16xf32>
    %393 = vector.broadcast %391 : f32 to vector<16x16xf32>
    %394 = arith.mulf %393, %392 : vector<16x16xf32>
    %395 = arith.addf %375, %394 : vector<16x16xf32>
    %c1_112 = arith.constant 1 : index
    %c0_113 = arith.constant 0 : index
    %c0_114 = arith.constant 0 : index
    %396 = vector.load %arg4[%c1_112, %c0_113, %c0_114] : memref<2x22x22xf32, #tpu.memory_space<vmem>>, vector<1x22x22xf32>
    %397 = vector.shape_cast %396 : vector<1x22x22xf32> to vector<22x22xf32>
    %398 = vector.extract_strided_slice %397 {offsets = [0, 0], sizes = [22, 16], strides = [1, 1]} : vector<22x22xf32> to vector<22x16xf32>
    %399 = vector.extract_strided_slice %397 {offsets = [0, 1], sizes = [22, 16], strides = [1, 1]} : vector<22x22xf32> to vector<22x16xf32>
    %400 = vector.extract_strided_slice %397 {offsets = [0, 2], sizes = [22, 16], strides = [1, 1]} : vector<22x22xf32> to vector<22x16xf32>
    %401 = vector.extract_strided_slice %397 {offsets = [0, 3], sizes = [22, 16], strides = [1, 1]} : vector<22x22xf32> to vector<22x16xf32>
    %402 = vector.extract_strided_slice %397 {offsets = [0, 4], sizes = [22, 16], strides = [1, 1]} : vector<22x22xf32> to vector<22x16xf32>
    %403 = vector.extract_strided_slice %397 {offsets = [0, 5], sizes = [22, 16], strides = [1, 1]} : vector<22x22xf32> to vector<22x16xf32>
    %404 = vector.extract_strided_slice %397 {offsets = [0, 6], sizes = [22, 16], strides = [1, 1]} : vector<22x22xf32> to vector<22x16xf32>
    %c49 = arith.constant 49 : index
    %405 = memref.load %arg1[%c49] : memref<99xf32, #tpu.memory_space<smem>>
    %406 = vector.extract_strided_slice %398 {offsets = [0, 0], sizes = [16, 16], strides = [1, 1]} : vector<22x16xf32> to vector<16x16xf32>
    %407 = vector.broadcast %405 : f32 to vector<16x16xf32>
    %408 = arith.mulf %407, %406 : vector<16x16xf32>
    %409 = arith.addf %380, %408 : vector<16x16xf32>
    %c50 = arith.constant 50 : index
    %410 = memref.load %arg1[%c50] : memref<99xf32, #tpu.memory_space<smem>>
    %411 = vector.extract_strided_slice %399 {offsets = [0, 0], sizes = [16, 16], strides = [1, 1]} : vector<22x16xf32> to vector<16x16xf32>
    %412 = vector.broadcast %410 : f32 to vector<16x16xf32>
    %413 = arith.mulf %412, %411 : vector<16x16xf32>
    %414 = arith.addf %385, %413 : vector<16x16xf32>
    %c51 = arith.constant 51 : index
    %415 = memref.load %arg1[%c51] : memref<99xf32, #tpu.memory_space<smem>>
    %416 = vector.extract_strided_slice %400 {offsets = [0, 0], sizes = [16, 16], strides = [1, 1]} : vector<22x16xf32> to vector<16x16xf32>
    %417 = vector.broadcast %415 : f32 to vector<16x16xf32>
    %418 = arith.mulf %417, %416 : vector<16x16xf32>
    %419 = arith.addf %390, %418 : vector<16x16xf32>
    %c52 = arith.constant 52 : index
    %420 = memref.load %arg1[%c52] : memref<99xf32, #tpu.memory_space<smem>>
    %421 = vector.extract_strided_slice %401 {offsets = [0, 0], sizes = [16, 16], strides = [1, 1]} : vector<22x16xf32> to vector<16x16xf32>
    %422 = vector.broadcast %420 : f32 to vector<16x16xf32>
    %423 = arith.mulf %422, %421 : vector<16x16xf32>
    %424 = arith.addf %395, %423 : vector<16x16xf32>
    %c53 = arith.constant 53 : index
    %425 = memref.load %arg1[%c53] : memref<99xf32, #tpu.memory_space<smem>>
    %426 = vector.extract_strided_slice %402 {offsets = [0, 0], sizes = [16, 16], strides = [1, 1]} : vector<22x16xf32> to vector<16x16xf32>
    %427 = vector.broadcast %425 : f32 to vector<16x16xf32>
    %428 = arith.mulf %427, %426 : vector<16x16xf32>
    %429 = arith.addf %409, %428 : vector<16x16xf32>
    %c54 = arith.constant 54 : index
    %430 = memref.load %arg1[%c54] : memref<99xf32, #tpu.memory_space<smem>>
    %431 = vector.extract_strided_slice %403 {offsets = [0, 0], sizes = [16, 16], strides = [1, 1]} : vector<22x16xf32> to vector<16x16xf32>
    %432 = vector.broadcast %430 : f32 to vector<16x16xf32>
    %433 = arith.mulf %432, %431 : vector<16x16xf32>
    %434 = arith.addf %414, %433 : vector<16x16xf32>
    %c55 = arith.constant 55 : index
    %435 = memref.load %arg1[%c55] : memref<99xf32, #tpu.memory_space<smem>>
    %436 = vector.extract_strided_slice %404 {offsets = [0, 0], sizes = [16, 16], strides = [1, 1]} : vector<22x16xf32> to vector<16x16xf32>
    %437 = vector.broadcast %435 : f32 to vector<16x16xf32>
    %438 = arith.mulf %437, %436 : vector<16x16xf32>
    %439 = arith.addf %419, %438 : vector<16x16xf32>
    %c56 = arith.constant 56 : index
    %440 = memref.load %arg1[%c56] : memref<99xf32, #tpu.memory_space<smem>>
    %441 = vector.extract_strided_slice %398 {offsets = [1, 0], sizes = [16, 16], strides = [1, 1]} : vector<22x16xf32> to vector<16x16xf32>
    %442 = vector.broadcast %440 : f32 to vector<16x16xf32>
    %443 = arith.mulf %442, %441 : vector<16x16xf32>
    %444 = arith.addf %424, %443 : vector<16x16xf32>
    %c57 = arith.constant 57 : index
    %445 = memref.load %arg1[%c57] : memref<99xf32, #tpu.memory_space<smem>>
    %446 = vector.extract_strided_slice %399 {offsets = [1, 0], sizes = [16, 16], strides = [1, 1]} : vector<22x16xf32> to vector<16x16xf32>
    %447 = vector.broadcast %445 : f32 to vector<16x16xf32>
    %448 = arith.mulf %447, %446 : vector<16x16xf32>
    %449 = arith.addf %429, %448 : vector<16x16xf32>
    %c58 = arith.constant 58 : index
    %450 = memref.load %arg1[%c58] : memref<99xf32, #tpu.memory_space<smem>>
    %451 = vector.extract_strided_slice %400 {offsets = [1, 0], sizes = [16, 16], strides = [1, 1]} : vector<22x16xf32> to vector<16x16xf32>
    %452 = vector.broadcast %450 : f32 to vector<16x16xf32>
    %453 = arith.mulf %452, %451 : vector<16x16xf32>
    %454 = arith.addf %434, %453 : vector<16x16xf32>
    %c59 = arith.constant 59 : index
    %455 = memref.load %arg1[%c59] : memref<99xf32, #tpu.memory_space<smem>>
    %456 = vector.extract_strided_slice %401 {offsets = [1, 0], sizes = [16, 16], strides = [1, 1]} : vector<22x16xf32> to vector<16x16xf32>
    %457 = vector.broadcast %455 : f32 to vector<16x16xf32>
    %458 = arith.mulf %457, %456 : vector<16x16xf32>
    %459 = arith.addf %439, %458 : vector<16x16xf32>
    %c60 = arith.constant 60 : index
    %460 = memref.load %arg1[%c60] : memref<99xf32, #tpu.memory_space<smem>>
    %461 = vector.extract_strided_slice %402 {offsets = [1, 0], sizes = [16, 16], strides = [1, 1]} : vector<22x16xf32> to vector<16x16xf32>
    %462 = vector.broadcast %460 : f32 to vector<16x16xf32>
    %463 = arith.mulf %462, %461 : vector<16x16xf32>
    %464 = arith.addf %444, %463 : vector<16x16xf32>
    %c61 = arith.constant 61 : index
    %465 = memref.load %arg1[%c61] : memref<99xf32, #tpu.memory_space<smem>>
    %466 = vector.extract_strided_slice %403 {offsets = [1, 0], sizes = [16, 16], strides = [1, 1]} : vector<22x16xf32> to vector<16x16xf32>
    %467 = vector.broadcast %465 : f32 to vector<16x16xf32>
    %468 = arith.mulf %467, %466 : vector<16x16xf32>
    %469 = arith.addf %449, %468 : vector<16x16xf32>
    %c62 = arith.constant 62 : index
    %470 = memref.load %arg1[%c62] : memref<99xf32, #tpu.memory_space<smem>>
    %471 = vector.extract_strided_slice %404 {offsets = [1, 0], sizes = [16, 16], strides = [1, 1]} : vector<22x16xf32> to vector<16x16xf32>
    %472 = vector.broadcast %470 : f32 to vector<16x16xf32>
    %473 = arith.mulf %472, %471 : vector<16x16xf32>
    %474 = arith.addf %454, %473 : vector<16x16xf32>
    %c63 = arith.constant 63 : index
    %475 = memref.load %arg1[%c63] : memref<99xf32, #tpu.memory_space<smem>>
    %476 = vector.extract_strided_slice %398 {offsets = [2, 0], sizes = [16, 16], strides = [1, 1]} : vector<22x16xf32> to vector<16x16xf32>
    %477 = vector.broadcast %475 : f32 to vector<16x16xf32>
    %478 = arith.mulf %477, %476 : vector<16x16xf32>
    %479 = arith.addf %459, %478 : vector<16x16xf32>
    %c64 = arith.constant 64 : index
    %480 = memref.load %arg1[%c64] : memref<99xf32, #tpu.memory_space<smem>>
    %481 = vector.extract_strided_slice %399 {offsets = [2, 0], sizes = [16, 16], strides = [1, 1]} : vector<22x16xf32> to vector<16x16xf32>
    %482 = vector.broadcast %480 : f32 to vector<16x16xf32>
    %483 = arith.mulf %482, %481 : vector<16x16xf32>
    %484 = arith.addf %464, %483 : vector<16x16xf32>
    %c65 = arith.constant 65 : index
    %485 = memref.load %arg1[%c65] : memref<99xf32, #tpu.memory_space<smem>>
    %486 = vector.extract_strided_slice %400 {offsets = [2, 0], sizes = [16, 16], strides = [1, 1]} : vector<22x16xf32> to vector<16x16xf32>
    %487 = vector.broadcast %485 : f32 to vector<16x16xf32>
    %488 = arith.mulf %487, %486 : vector<16x16xf32>
    %489 = arith.addf %469, %488 : vector<16x16xf32>
    %c66 = arith.constant 66 : index
    %490 = memref.load %arg1[%c66] : memref<99xf32, #tpu.memory_space<smem>>
    %491 = vector.extract_strided_slice %401 {offsets = [2, 0], sizes = [16, 16], strides = [1, 1]} : vector<22x16xf32> to vector<16x16xf32>
    %492 = vector.broadcast %490 : f32 to vector<16x16xf32>
    %493 = arith.mulf %492, %491 : vector<16x16xf32>
    %494 = arith.addf %474, %493 : vector<16x16xf32>
    %c67 = arith.constant 67 : index
    %495 = memref.load %arg1[%c67] : memref<99xf32, #tpu.memory_space<smem>>
    %496 = vector.extract_strided_slice %402 {offsets = [2, 0], sizes = [16, 16], strides = [1, 1]} : vector<22x16xf32> to vector<16x16xf32>
    %497 = vector.broadcast %495 : f32 to vector<16x16xf32>
    %498 = arith.mulf %497, %496 : vector<16x16xf32>
    %499 = arith.addf %479, %498 : vector<16x16xf32>
    %c68 = arith.constant 68 : index
    %500 = memref.load %arg1[%c68] : memref<99xf32, #tpu.memory_space<smem>>
    %501 = vector.extract_strided_slice %403 {offsets = [2, 0], sizes = [16, 16], strides = [1, 1]} : vector<22x16xf32> to vector<16x16xf32>
    %502 = vector.broadcast %500 : f32 to vector<16x16xf32>
    %503 = arith.mulf %502, %501 : vector<16x16xf32>
    %504 = arith.addf %484, %503 : vector<16x16xf32>
    %c69 = arith.constant 69 : index
    %505 = memref.load %arg1[%c69] : memref<99xf32, #tpu.memory_space<smem>>
    %506 = vector.extract_strided_slice %404 {offsets = [2, 0], sizes = [16, 16], strides = [1, 1]} : vector<22x16xf32> to vector<16x16xf32>
    %507 = vector.broadcast %505 : f32 to vector<16x16xf32>
    %508 = arith.mulf %507, %506 : vector<16x16xf32>
    %509 = arith.addf %489, %508 : vector<16x16xf32>
    %c70 = arith.constant 70 : index
    %510 = memref.load %arg1[%c70] : memref<99xf32, #tpu.memory_space<smem>>
    %511 = vector.extract_strided_slice %398 {offsets = [3, 0], sizes = [16, 16], strides = [1, 1]} : vector<22x16xf32> to vector<16x16xf32>
    %512 = vector.broadcast %510 : f32 to vector<16x16xf32>
    %513 = arith.mulf %512, %511 : vector<16x16xf32>
    %514 = arith.addf %494, %513 : vector<16x16xf32>
    %c71 = arith.constant 71 : index
    %515 = memref.load %arg1[%c71] : memref<99xf32, #tpu.memory_space<smem>>
    %516 = vector.extract_strided_slice %399 {offsets = [3, 0], sizes = [16, 16], strides = [1, 1]} : vector<22x16xf32> to vector<16x16xf32>
    %517 = vector.broadcast %515 : f32 to vector<16x16xf32>
    %518 = arith.mulf %517, %516 : vector<16x16xf32>
    %519 = arith.addf %499, %518 : vector<16x16xf32>
    %c72 = arith.constant 72 : index
    %520 = memref.load %arg1[%c72] : memref<99xf32, #tpu.memory_space<smem>>
    %521 = vector.extract_strided_slice %400 {offsets = [3, 0], sizes = [16, 16], strides = [1, 1]} : vector<22x16xf32> to vector<16x16xf32>
    %522 = vector.broadcast %520 : f32 to vector<16x16xf32>
    %523 = arith.mulf %522, %521 : vector<16x16xf32>
    %524 = arith.addf %504, %523 : vector<16x16xf32>
    %c73 = arith.constant 73 : index
    %525 = memref.load %arg1[%c73] : memref<99xf32, #tpu.memory_space<smem>>
    %526 = vector.extract_strided_slice %401 {offsets = [3, 0], sizes = [16, 16], strides = [1, 1]} : vector<22x16xf32> to vector<16x16xf32>
    %527 = vector.broadcast %525 : f32 to vector<16x16xf32>
    %528 = arith.mulf %527, %526 : vector<16x16xf32>
    %529 = arith.addf %509, %528 : vector<16x16xf32>
    %c74 = arith.constant 74 : index
    %530 = memref.load %arg1[%c74] : memref<99xf32, #tpu.memory_space<smem>>
    %531 = vector.extract_strided_slice %402 {offsets = [3, 0], sizes = [16, 16], strides = [1, 1]} : vector<22x16xf32> to vector<16x16xf32>
    %532 = vector.broadcast %530 : f32 to vector<16x16xf32>
    %533 = arith.mulf %532, %531 : vector<16x16xf32>
    %534 = arith.addf %514, %533 : vector<16x16xf32>
    %c75 = arith.constant 75 : index
    %535 = memref.load %arg1[%c75] : memref<99xf32, #tpu.memory_space<smem>>
    %536 = vector.extract_strided_slice %403 {offsets = [3, 0], sizes = [16, 16], strides = [1, 1]} : vector<22x16xf32> to vector<16x16xf32>
    %537 = vector.broadcast %535 : f32 to vector<16x16xf32>
    %538 = arith.mulf %537, %536 : vector<16x16xf32>
    %539 = arith.addf %519, %538 : vector<16x16xf32>
    %c76 = arith.constant 76 : index
    %540 = memref.load %arg1[%c76] : memref<99xf32, #tpu.memory_space<smem>>
    %541 = vector.extract_strided_slice %404 {offsets = [3, 0], sizes = [16, 16], strides = [1, 1]} : vector<22x16xf32> to vector<16x16xf32>
    %542 = vector.broadcast %540 : f32 to vector<16x16xf32>
    %543 = arith.mulf %542, %541 : vector<16x16xf32>
    %544 = arith.addf %524, %543 : vector<16x16xf32>
    %c77 = arith.constant 77 : index
    %545 = memref.load %arg1[%c77] : memref<99xf32, #tpu.memory_space<smem>>
    %546 = vector.extract_strided_slice %398 {offsets = [4, 0], sizes = [16, 16], strides = [1, 1]} : vector<22x16xf32> to vector<16x16xf32>
    %547 = vector.broadcast %545 : f32 to vector<16x16xf32>
    %548 = arith.mulf %547, %546 : vector<16x16xf32>
    %549 = arith.addf %529, %548 : vector<16x16xf32>
    %c78 = arith.constant 78 : index
    %550 = memref.load %arg1[%c78] : memref<99xf32, #tpu.memory_space<smem>>
    %551 = vector.extract_strided_slice %399 {offsets = [4, 0], sizes = [16, 16], strides = [1, 1]} : vector<22x16xf32> to vector<16x16xf32>
    %552 = vector.broadcast %550 : f32 to vector<16x16xf32>
    %553 = arith.mulf %552, %551 : vector<16x16xf32>
    %554 = arith.addf %534, %553 : vector<16x16xf32>
    %c79 = arith.constant 79 : index
    %555 = memref.load %arg1[%c79] : memref<99xf32, #tpu.memory_space<smem>>
    %556 = vector.extract_strided_slice %400 {offsets = [4, 0], sizes = [16, 16], strides = [1, 1]} : vector<22x16xf32> to vector<16x16xf32>
    %557 = vector.broadcast %555 : f32 to vector<16x16xf32>
    %558 = arith.mulf %557, %556 : vector<16x16xf32>
    %559 = arith.addf %539, %558 : vector<16x16xf32>
    %c80 = arith.constant 80 : index
    %560 = memref.load %arg1[%c80] : memref<99xf32, #tpu.memory_space<smem>>
    %561 = vector.extract_strided_slice %401 {offsets = [4, 0], sizes = [16, 16], strides = [1, 1]} : vector<22x16xf32> to vector<16x16xf32>
    %562 = vector.broadcast %560 : f32 to vector<16x16xf32>
    %563 = arith.mulf %562, %561 : vector<16x16xf32>
    %564 = arith.addf %544, %563 : vector<16x16xf32>
    %c81 = arith.constant 81 : index
    %565 = memref.load %arg1[%c81] : memref<99xf32, #tpu.memory_space<smem>>
    %566 = vector.extract_strided_slice %402 {offsets = [4, 0], sizes = [16, 16], strides = [1, 1]} : vector<22x16xf32> to vector<16x16xf32>
    %567 = vector.broadcast %565 : f32 to vector<16x16xf32>
    %568 = arith.mulf %567, %566 : vector<16x16xf32>
    %569 = arith.addf %549, %568 : vector<16x16xf32>
    %c82 = arith.constant 82 : index
    %570 = memref.load %arg1[%c82] : memref<99xf32, #tpu.memory_space<smem>>
    %571 = vector.extract_strided_slice %403 {offsets = [4, 0], sizes = [16, 16], strides = [1, 1]} : vector<22x16xf32> to vector<16x16xf32>
    %572 = vector.broadcast %570 : f32 to vector<16x16xf32>
    %573 = arith.mulf %572, %571 : vector<16x16xf32>
    %574 = arith.addf %554, %573 : vector<16x16xf32>
    %c83 = arith.constant 83 : index
    %575 = memref.load %arg1[%c83] : memref<99xf32, #tpu.memory_space<smem>>
    %576 = vector.extract_strided_slice %404 {offsets = [4, 0], sizes = [16, 16], strides = [1, 1]} : vector<22x16xf32> to vector<16x16xf32>
    %577 = vector.broadcast %575 : f32 to vector<16x16xf32>
    %578 = arith.mulf %577, %576 : vector<16x16xf32>
    %579 = arith.addf %559, %578 : vector<16x16xf32>
    %c84 = arith.constant 84 : index
    %580 = memref.load %arg1[%c84] : memref<99xf32, #tpu.memory_space<smem>>
    %581 = vector.extract_strided_slice %398 {offsets = [5, 0], sizes = [16, 16], strides = [1, 1]} : vector<22x16xf32> to vector<16x16xf32>
    %582 = vector.broadcast %580 : f32 to vector<16x16xf32>
    %583 = arith.mulf %582, %581 : vector<16x16xf32>
    %584 = arith.addf %564, %583 : vector<16x16xf32>
    %c85 = arith.constant 85 : index
    %585 = memref.load %arg1[%c85] : memref<99xf32, #tpu.memory_space<smem>>
    %586 = vector.extract_strided_slice %399 {offsets = [5, 0], sizes = [16, 16], strides = [1, 1]} : vector<22x16xf32> to vector<16x16xf32>
    %587 = vector.broadcast %585 : f32 to vector<16x16xf32>
    %588 = arith.mulf %587, %586 : vector<16x16xf32>
    %589 = arith.addf %569, %588 : vector<16x16xf32>
    %c86 = arith.constant 86 : index
    %590 = memref.load %arg1[%c86] : memref<99xf32, #tpu.memory_space<smem>>
    %591 = vector.extract_strided_slice %400 {offsets = [5, 0], sizes = [16, 16], strides = [1, 1]} : vector<22x16xf32> to vector<16x16xf32>
    %592 = vector.broadcast %590 : f32 to vector<16x16xf32>
    %593 = arith.mulf %592, %591 : vector<16x16xf32>
    %594 = arith.addf %574, %593 : vector<16x16xf32>
    %c87 = arith.constant 87 : index
    %595 = memref.load %arg1[%c87] : memref<99xf32, #tpu.memory_space<smem>>
    %596 = vector.extract_strided_slice %401 {offsets = [5, 0], sizes = [16, 16], strides = [1, 1]} : vector<22x16xf32> to vector<16x16xf32>
    %597 = vector.broadcast %595 : f32 to vector<16x16xf32>
    %598 = arith.mulf %597, %596 : vector<16x16xf32>
    %599 = arith.addf %579, %598 : vector<16x16xf32>
    %c88 = arith.constant 88 : index
    %600 = memref.load %arg1[%c88] : memref<99xf32, #tpu.memory_space<smem>>
    %601 = vector.extract_strided_slice %402 {offsets = [5, 0], sizes = [16, 16], strides = [1, 1]} : vector<22x16xf32> to vector<16x16xf32>
    %602 = vector.broadcast %600 : f32 to vector<16x16xf32>
    %603 = arith.mulf %602, %601 : vector<16x16xf32>
    %604 = arith.addf %584, %603 : vector<16x16xf32>
    %c89 = arith.constant 89 : index
    %605 = memref.load %arg1[%c89] : memref<99xf32, #tpu.memory_space<smem>>
    %606 = vector.extract_strided_slice %403 {offsets = [5, 0], sizes = [16, 16], strides = [1, 1]} : vector<22x16xf32> to vector<16x16xf32>
    %607 = vector.broadcast %605 : f32 to vector<16x16xf32>
    %608 = arith.mulf %607, %606 : vector<16x16xf32>
    %609 = arith.addf %589, %608 : vector<16x16xf32>
    %c90 = arith.constant 90 : index
    %610 = memref.load %arg1[%c90] : memref<99xf32, #tpu.memory_space<smem>>
    %611 = vector.extract_strided_slice %404 {offsets = [5, 0], sizes = [16, 16], strides = [1, 1]} : vector<22x16xf32> to vector<16x16xf32>
    %612 = vector.broadcast %610 : f32 to vector<16x16xf32>
    %613 = arith.mulf %612, %611 : vector<16x16xf32>
    %614 = arith.addf %594, %613 : vector<16x16xf32>
    %c91 = arith.constant 91 : index
    %615 = memref.load %arg1[%c91] : memref<99xf32, #tpu.memory_space<smem>>
    %616 = vector.extract_strided_slice %398 {offsets = [6, 0], sizes = [16, 16], strides = [1, 1]} : vector<22x16xf32> to vector<16x16xf32>
    %617 = vector.broadcast %615 : f32 to vector<16x16xf32>
    %618 = arith.mulf %617, %616 : vector<16x16xf32>
    %619 = arith.addf %599, %618 : vector<16x16xf32>
    %c92 = arith.constant 92 : index
    %620 = memref.load %arg1[%c92] : memref<99xf32, #tpu.memory_space<smem>>
    %621 = vector.extract_strided_slice %399 {offsets = [6, 0], sizes = [16, 16], strides = [1, 1]} : vector<22x16xf32> to vector<16x16xf32>
    %622 = vector.broadcast %620 : f32 to vector<16x16xf32>
    %623 = arith.mulf %622, %621 : vector<16x16xf32>
    %624 = arith.addf %604, %623 : vector<16x16xf32>
    %c93 = arith.constant 93 : index
    %625 = memref.load %arg1[%c93] : memref<99xf32, #tpu.memory_space<smem>>
    %626 = vector.extract_strided_slice %400 {offsets = [6, 0], sizes = [16, 16], strides = [1, 1]} : vector<22x16xf32> to vector<16x16xf32>
    %627 = vector.broadcast %625 : f32 to vector<16x16xf32>
    %628 = arith.mulf %627, %626 : vector<16x16xf32>
    %629 = arith.addf %609, %628 : vector<16x16xf32>
    %c94 = arith.constant 94 : index
    %630 = memref.load %arg1[%c94] : memref<99xf32, #tpu.memory_space<smem>>
    %631 = vector.extract_strided_slice %401 {offsets = [6, 0], sizes = [16, 16], strides = [1, 1]} : vector<22x16xf32> to vector<16x16xf32>
    %632 = vector.broadcast %630 : f32 to vector<16x16xf32>
    %633 = arith.mulf %632, %631 : vector<16x16xf32>
    %634 = arith.addf %614, %633 : vector<16x16xf32>
    %c95 = arith.constant 95 : index
    %635 = memref.load %arg1[%c95] : memref<99xf32, #tpu.memory_space<smem>>
    %636 = vector.extract_strided_slice %402 {offsets = [6, 0], sizes = [16, 16], strides = [1, 1]} : vector<22x16xf32> to vector<16x16xf32>
    %637 = vector.broadcast %635 : f32 to vector<16x16xf32>
    %638 = arith.mulf %637, %636 : vector<16x16xf32>
    %639 = arith.addf %619, %638 : vector<16x16xf32>
    %c96 = arith.constant 96 : index
    %640 = memref.load %arg1[%c96] : memref<99xf32, #tpu.memory_space<smem>>
    %641 = vector.extract_strided_slice %403 {offsets = [6, 0], sizes = [16, 16], strides = [1, 1]} : vector<22x16xf32> to vector<16x16xf32>
    %642 = vector.broadcast %640 : f32 to vector<16x16xf32>
    %643 = arith.mulf %642, %641 : vector<16x16xf32>
    %644 = arith.addf %624, %643 : vector<16x16xf32>
    %c97 = arith.constant 97 : index
    %645 = memref.load %arg1[%c97] : memref<99xf32, #tpu.memory_space<smem>>
    %646 = vector.extract_strided_slice %404 {offsets = [6, 0], sizes = [16, 16], strides = [1, 1]} : vector<22x16xf32> to vector<16x16xf32>
    %647 = vector.broadcast %645 : f32 to vector<16x16xf32>
    %648 = arith.mulf %647, %646 : vector<16x16xf32>
    %649 = arith.addf %629, %648 : vector<16x16xf32>
    %650 = arith.addf %644, %649 : vector<16x16xf32>
    %651 = arith.addf %634, %639 : vector<16x16xf32>
    %652 = arith.addf %650, %651 : vector<16x16xf32>
    %c98 = arith.constant 98 : index
    %653 = memref.load %arg1[%c98] : memref<99xf32, #tpu.memory_space<smem>>
    %654 = vector.broadcast %653 : f32 to vector<16x16xf32>
    %655 = arith.addf %652, %654 : vector<16x16xf32>
    %cst_115 = arith.constant 0.000000e+00 : f32
    %656 = vector.broadcast %cst_115 : f32 to vector<16x16xf32>
    %657 = arith.subf %656, %655 : vector<16x16xf32>
    %658 = math.exp %657 : vector<16x16xf32>
    %cst_116 = arith.constant 1.000000e+00 : f32
    %659 = vector.broadcast %cst_116 : f32 to vector<16x16xf32>
    %660 = arith.addf %659, %658 : vector<16x16xf32>
    %661 = tpu.reciprocal %660 : vector<16x16xf32> -> vector<16x16xf32>
    %662 = vector.extract_strided_slice %661 {offsets = [0, 0], sizes = [1, 16], strides = [1, 1]} : vector<16x16xf32> to vector<1x16xf32>
    %c0_117 = arith.constant 0 : index
    %c0_118 = arith.constant 0 : index
    %663 = vector.load %arg5[%c0_117, %c0_118] : memref<1x256xf32, #tpu.memory_space<vmem>>, vector<1x16xf32>
    tpu.vector_store %arg5[%c0_117, %c0_118], %662 {strides = array<i32>} : memref<1x256xf32, #tpu.memory_space<vmem>>, vector<1x16xf32>,
    %664 = vector.extract_strided_slice %661 {offsets = [1, 0], sizes = [1, 16], strides = [1, 1]} : vector<16x16xf32> to vector<1x16xf32>
    %c0_119 = arith.constant 0 : index
    %c16_120 = arith.constant 16 : index
    %665 = vector.load %arg5[%c0_119, %c16_120] : memref<1x256xf32, #tpu.memory_space<vmem>>, vector<1x16xf32>
    tpu.vector_store %arg5[%c0_119, %c16_120], %664 {strides = array<i32>} : memref<1x256xf32, #tpu.memory_space<vmem>>, vector<1x16xf32>,
    %666 = vector.extract_strided_slice %661 {offsets = [2, 0], sizes = [1, 16], strides = [1, 1]} : vector<16x16xf32> to vector<1x16xf32>
    %c0_121 = arith.constant 0 : index
    %c32_122 = arith.constant 32 : index
    %667 = vector.load %arg5[%c0_121, %c32_122] : memref<1x256xf32, #tpu.memory_space<vmem>>, vector<1x16xf32>
    tpu.vector_store %arg5[%c0_121, %c32_122], %666 {strides = array<i32>} : memref<1x256xf32, #tpu.memory_space<vmem>>, vector<1x16xf32>,
    %668 = vector.extract_strided_slice %661 {offsets = [3, 0], sizes = [1, 16], strides = [1, 1]} : vector<16x16xf32> to vector<1x16xf32>
    %c0_123 = arith.constant 0 : index
    %c48_124 = arith.constant 48 : index
    %669 = vector.load %arg5[%c0_123, %c48_124] : memref<1x256xf32, #tpu.memory_space<vmem>>, vector<1x16xf32>
    tpu.vector_store %arg5[%c0_123, %c48_124], %668 {strides = array<i32>} : memref<1x256xf32, #tpu.memory_space<vmem>>, vector<1x16xf32>,
    %670 = vector.extract_strided_slice %661 {offsets = [4, 0], sizes = [1, 16], strides = [1, 1]} : vector<16x16xf32> to vector<1x16xf32>
    %c0_125 = arith.constant 0 : index
    %c64_126 = arith.constant 64 : index
    %671 = vector.load %arg5[%c0_125, %c64_126] : memref<1x256xf32, #tpu.memory_space<vmem>>, vector<1x16xf32>
    tpu.vector_store %arg5[%c0_125, %c64_126], %670 {strides = array<i32>} : memref<1x256xf32, #tpu.memory_space<vmem>>, vector<1x16xf32>,
    %672 = vector.extract_strided_slice %661 {offsets = [5, 0], sizes = [1, 16], strides = [1, 1]} : vector<16x16xf32> to vector<1x16xf32>
    %c0_127 = arith.constant 0 : index
    %c80_128 = arith.constant 80 : index
    %673 = vector.load %arg5[%c0_127, %c80_128] : memref<1x256xf32, #tpu.memory_space<vmem>>, vector<1x16xf32>
    tpu.vector_store %arg5[%c0_127, %c80_128], %672 {strides = array<i32>} : memref<1x256xf32, #tpu.memory_space<vmem>>, vector<1x16xf32>,
    %674 = vector.extract_strided_slice %661 {offsets = [6, 0], sizes = [1, 16], strides = [1, 1]} : vector<16x16xf32> to vector<1x16xf32>
    %c0_129 = arith.constant 0 : index
    %c96_130 = arith.constant 96 : index
    %675 = vector.load %arg5[%c0_129, %c96_130] : memref<1x256xf32, #tpu.memory_space<vmem>>, vector<1x16xf32>
    tpu.vector_store %arg5[%c0_129, %c96_130], %674 {strides = array<i32>} : memref<1x256xf32, #tpu.memory_space<vmem>>, vector<1x16xf32>,
    %676 = vector.extract_strided_slice %661 {offsets = [7, 0], sizes = [1, 16], strides = [1, 1]} : vector<16x16xf32> to vector<1x16xf32>
    %c0_131 = arith.constant 0 : index
    %c112 = arith.constant 112 : index
    %677 = vector.load %arg5[%c0_131, %c112] : memref<1x256xf32, #tpu.memory_space<vmem>>, vector<1x16xf32>
    tpu.vector_store %arg5[%c0_131, %c112], %676 {strides = array<i32>} : memref<1x256xf32, #tpu.memory_space<vmem>>, vector<1x16xf32>,
    %678 = vector.extract_strided_slice %661 {offsets = [8, 0], sizes = [1, 16], strides = [1, 1]} : vector<16x16xf32> to vector<1x16xf32>
    %c0_132 = arith.constant 0 : index
    %c128 = arith.constant 128 : index
    %679 = vector.load %arg5[%c0_132, %c128] : memref<1x256xf32, #tpu.memory_space<vmem>>, vector<1x16xf32>
    tpu.vector_store %arg5[%c0_132, %c128], %678 {strides = array<i32>} : memref<1x256xf32, #tpu.memory_space<vmem>>, vector<1x16xf32>,
    %680 = vector.extract_strided_slice %661 {offsets = [9, 0], sizes = [1, 16], strides = [1, 1]} : vector<16x16xf32> to vector<1x16xf32>
    %c0_133 = arith.constant 0 : index
    %c144 = arith.constant 144 : index
    %681 = vector.load %arg5[%c0_133, %c144] : memref<1x256xf32, #tpu.memory_space<vmem>>, vector<1x16xf32>
    tpu.vector_store %arg5[%c0_133, %c144], %680 {strides = array<i32>} : memref<1x256xf32, #tpu.memory_space<vmem>>, vector<1x16xf32>,
    %682 = vector.extract_strided_slice %661 {offsets = [10, 0], sizes = [1, 16], strides = [1, 1]} : vector<16x16xf32> to vector<1x16xf32>
    %c0_134 = arith.constant 0 : index
    %c160 = arith.constant 160 : index
    %683 = vector.load %arg5[%c0_134, %c160] : memref<1x256xf32, #tpu.memory_space<vmem>>, vector<1x16xf32>
    tpu.vector_store %arg5[%c0_134, %c160], %682 {strides = array<i32>} : memref<1x256xf32, #tpu.memory_space<vmem>>, vector<1x16xf32>,
    %684 = vector.extract_strided_slice %661 {offsets = [11, 0], sizes = [1, 16], strides = [1, 1]} : vector<16x16xf32> to vector<1x16xf32>
    %c0_135 = arith.constant 0 : index
    %c176 = arith.constant 176 : index
    %685 = vector.load %arg5[%c0_135, %c176] : memref<1x256xf32, #tpu.memory_space<vmem>>, vector<1x16xf32>
    tpu.vector_store %arg5[%c0_135, %c176], %684 {strides = array<i32>} : memref<1x256xf32, #tpu.memory_space<vmem>>, vector<1x16xf32>,
    %686 = vector.extract_strided_slice %661 {offsets = [12, 0], sizes = [1, 16], strides = [1, 1]} : vector<16x16xf32> to vector<1x16xf32>
    %c0_136 = arith.constant 0 : index
    %c192 = arith.constant 192 : index
    %687 = vector.load %arg5[%c0_136, %c192] : memref<1x256xf32, #tpu.memory_space<vmem>>, vector<1x16xf32>
    tpu.vector_store %arg5[%c0_136, %c192], %686 {strides = array<i32>} : memref<1x256xf32, #tpu.memory_space<vmem>>, vector<1x16xf32>,
    %688 = vector.extract_strided_slice %661 {offsets = [13, 0], sizes = [1, 16], strides = [1, 1]} : vector<16x16xf32> to vector<1x16xf32>
    %c0_137 = arith.constant 0 : index
    %c208 = arith.constant 208 : index
    %689 = vector.load %arg5[%c0_137, %c208] : memref<1x256xf32, #tpu.memory_space<vmem>>, vector<1x16xf32>
    tpu.vector_store %arg5[%c0_137, %c208], %688 {strides = array<i32>} : memref<1x256xf32, #tpu.memory_space<vmem>>, vector<1x16xf32>,
    %690 = vector.extract_strided_slice %661 {offsets = [14, 0], sizes = [1, 16], strides = [1, 1]} : vector<16x16xf32> to vector<1x16xf32>
    %c0_138 = arith.constant 0 : index
    %c224 = arith.constant 224 : index
    %691 = vector.load %arg5[%c0_138, %c224] : memref<1x256xf32, #tpu.memory_space<vmem>>, vector<1x16xf32>
    tpu.vector_store %arg5[%c0_138, %c224], %690 {strides = array<i32>} : memref<1x256xf32, #tpu.memory_space<vmem>>, vector<1x16xf32>,
    %692 = vector.extract_strided_slice %661 {offsets = [15, 0], sizes = [1, 16], strides = [1, 1]} : vector<16x16xf32> to vector<1x16xf32>
    %c0_139 = arith.constant 0 : index
    %c240 = arith.constant 240 : index
    %693 = vector.load %arg5[%c0_139, %c240] : memref<1x256xf32, #tpu.memory_space<vmem>>, vector<1x16xf32>
    tpu.vector_store %arg5[%c0_139, %c240], %692 {strides = array<i32>} : memref<1x256xf32, #tpu.memory_space<vmem>>, vector<1x16xf32>,
    %c0_140 = arith.constant 0 : index
    %c0_141 = arith.constant 0 : index
    %694 = vector.load %arg5[%c0_140, %c0_141] : memref<1x256xf32, #tpu.memory_space<vmem>>, vector<1x256xf32>
    %c0_142 = arith.constant 0 : index
    %c0_143 = arith.constant 0 : index
    %c0_144 = arith.constant 0 : index
    %695 = vector.load %arg2[%c0_142, %c0_143, %c0_144] : memref<1x4x256xf32, #tpu.memory_space<vmem>>, vector<1x4x256xf32>
    %696 = vector.shape_cast %695 : vector<1x4x256xf32> to vector<4x256xf32>
    %697 = vector.broadcast %694 : vector<1x256xf32> to vector<4x256xf32>
    %698 = arith.mulf %696, %697 : vector<4x256xf32>
    %c0_145 = arith.constant 0 : index
    %c0_146 = arith.constant 0 : index
    %c0_147 = arith.constant 0 : index
    %699 = vector.load %arg3[%c0_145, %c0_146, %c0_147] : memref<1x4x256xf32, #tpu.memory_space<vmem>>, vector<1x4x256xf32>
    %700 = vector.shape_cast %699 : vector<1x4x256xf32> to vector<4x256xf32>
    %701 = vector.shape_cast %698 : vector<4x256xf32> to vector<1x4x256xf32>
    tpu.vector_store %arg3[%c0_145, %c0_146, %c0_147], %701 {strides = array<i32>} : memref<1x4x256xf32, #tpu.memory_space<vmem>>, vector<1x4x256xf32>,
    return
  }
  func.func @transform_0(%arg0: i32, %arg1: memref<99xf32, #tpu.memory_space<smem>>) -> (i32, i32, i32) {
    %c0_i32 = arith.constant 0 : i32
    %c0_i32_0 = arith.constant 0 : i32
    %c0_i32_1 = arith.constant 0 : i32
    return %arg0, %c0_i32, %c0_i32_0 : i32, i32, i32
  }
  func.func @transform_1(%arg0: i32, %arg1: memref<99xf32, #tpu.memory_space<smem>>) -> (i32, i32, i32) {
    %c0_i32 = arith.constant 0 : i32
    %c0_i32_0 = arith.constant 0 : i32
    %c0_i32_1 = arith.constant 0 : i32
    return %arg0, %c0_i32, %c0_i32_0 : i32, i32, i32
  }
}

</mosaic_0001>

<llo_original>
// kernel: spatial_gate_forward.1
$region0: #{spatial_gate_forward.1}
  #allocation0 [shape = 'u32[]', space=smem, size = 0x4, offset = 0x4, fixed_abs, tag = 'smem constant byte address 0x4 - core index']
  #allocation1 [shape = 'u32[72,128]{1,0:T(1,128)}', space=vmem, size = 0x9000, scoped, tag = 'internal scratch']
  #allocation2 [shape = 'f32[2,22,22]{2,1,0:T(8,128)}', space=vmem, size = 0x6000, scoped, tag = 'scratch operand']
  #allocation3 [shape = 'f32[1,256]{1,0:T(1,128)}', space=vmem, size = 0x400, scoped, tag = 'scratch operand']
  #allocation4 [shape = 's32[1]{0}', space=sflag, size = 0x4, scoped, tag = 'scoped memory for spatial_gate_forward.1']
  #allocation5 [shape = 'u8[512]{0}', space=smem, size = 0x200, scoped, tag = 'prefetched SMEM operand 0']
  %s0 = inlined_call_operand.vmem [shape: f32[99], index: 0, kind: input, shape index: {}]
  %s1 = inlined_call_operand.vmem [shape: f32[2,4,256], index: 1, kind: input, shape index: {}]
  %s2 = inlined_call_operand.vmem [shape: f32[2,4,256], index: 2, kind: output, shape index: {}]
  %s3 = sld [smem:[#allocation0]]
  $region37: #{spatial_gate_forward.1} parent=0
    _
  %s5 = ssub.s32 1, %s3
  %s6 = scalar_select 0, %s5, %s3
  %s8 = sshll.u32 %s0, 4
  %s9 = int_to_ptr.vmem [resolvable:$true] %s8
  %11 = dma.vmem_to_smem %s9, 16, [#allocation5], [#allocation4]
  %13 = dma.done [#allocation4], 16
  %14 = sfence
  loop: start=0, step=1, limit=4
  $region2: #{spatial_gate_forward.1} parent=0 // loop_pre_header
    _
  $region3: #{spatial_gate_forward.1} parent=0 // loop_header
    %s16 = sphi 0, %s20
    %p17 = scmp.ge.s32.totalorder %s16, 4
    %s26 = sphi 0, %s28
    %s29 = sphi 0, %s26
    %s30 = sphi 0, %s29
    %s46 = sphi 0, %s30
    %s52 = sphi 0, %s54
    %s55 = sphi 0, %s52
    %s56 = sphi 0, %s55
    %s72 = sphi 0, %s56
  $region4: #{spatial_gate_forward.1} parent=0 // loop_header_branch
    %19 = sbr.rel (%p17) target = $region8
  $region5: #{spatial_gate_forward.1} parent=0 // loop_body
    %s21 = ssub.s32 %s16, 1
    %s22 = ssub.s32 %s16, 2
    %s23 = sadd.s32 %s16, 1
    %s24 = ssub.s32 %s16, %s23
    %p25 = scmp.eq.s32.totalorder %s24, 0
    %s27 = sadd.s32 %s26, 1
    %s28 = scalar_select %p25, %s26, %s27
    %p31 = pneg %p25
    %p32 = scmp.eq.s32.totalorder %s16, 1
    %p33 = por %p31, %p32
    %p34 = scmp.ne.s32.totalorder %s26, %s29
    %p35 = scmp.eq.s32.totalorder %s16, 0
    %p36 = por %p34, %p35
    %p37 = scmp.ne.s32.totalorder %s26, %s29
    %p38 = scmp.eq.s32.totalorder %s21, 1
    %p39 = por %p37, %p38
    %p40 = scmp.ne.s32.totalorder %s29, %s30
    %p41 = scmp.eq.s32.totalorder %s21, 0
    %p42 = por %p40, %p41
    %p43 = scmp.ne.s32.totalorder %s29, %s30
    %p44 = scmp.eq.s32.totalorder %s22, 1
    %p45 = por %p43, %p44
    %p47 = scmp.ne.s32.totalorder %s30, %s46
    %p48 = scmp.eq.s32.totalorder %s22, 0
    %p49 = por %p47, %p48
    %s50 = ssub.s32 %s16, %s23
    %p51 = scmp.eq.s32.totalorder %s50, 0
    %s53 = sadd.s32 %s52, 1
    %s54 = scalar_select %p51, %s52, %s53
    %p57 = pneg %p51
    %p58 = scmp.eq.s32.totalorder %s16, 1
    %p59 = por %p57, %p58
    %p60 = scmp.ne.s32.totalorder %s52, %s55
    %p61 = scmp.eq.s32.totalorder %s16, 0
    %p62 = por %p60, %p61
    %p63 = scmp.ne.s32.totalorder %s52, %s55
    %p64 = scmp.eq.s32.totalorder %s21, 1
    %p65 = por %p63, %p64
    %p66 = scmp.ne.s32.totalorder %s55, %s56
    %p67 = scmp.eq.s32.totalorder %s21, 0
    %p68 = por %p66, %p67
    %p69 = scmp.ne.s32.totalorder %s55, %s56
    %p70 = scmp.eq.s32.totalorder %s22, 1
    %p71 = por %p69, %p70
    %p73 = scmp.ne.s32.totalorder %s56, %s72
    %p74 = scmp.eq.s32.totalorder %s22, 0
    %p75 = por %p73, %p74
    %p76 = scmp.le.s32.totalorder 1, %s16
    %p77 = scmp.lt.s32.totalorder %s16, 3
    %p78 = pnand %p76, %p77
    %p79 = pneg %p78
    // Predicated region
    $region9: #{spatial_gate_forward.1} parent=5 // pred_check
      _
    $region10: #{spatial_gate_forward.1} parent=5 // pred_check_branch
      %81 = sbr.rel (%p78) target = $region12
    $region11: #{spatial_gate_forward.1} parent=5 // pred_region
      %s82 = ssub.s32 %s16, 1
    $region12: #{spatial_gate_forward.1} parent=5 // pred_fallthru
      _
    %p83 = scmp.lt.s32.totalorder %s16, 2
    // Predicated region
    $region13: #{spatial_gate_forward.1} parent=5 // pred_check
      %p84 = pneg %p83
    $region14: #{spatial_gate_forward.1} parent=5 // pred_check_branch
      %86 = sbr.rel (%p84) target = $region16
    $region15: #{spatial_gate_forward.1} parent=5 // pred_region
      // Predicated region
      $region17: #{spatial_gate_forward.1} parent=15 // pred_check
        %p87 = pneg %p36
      $region18: #{spatial_gate_forward.1} parent=15 // pred_check_branch
        %89 = sbr.rel (%p87) target = $region20
      $region19: #{spatial_gate_forward.1} parent=15 // pred_region
        %p90 = scmp.lt.s32.totalorder %s16, 1
        %s91 = scalar_select %p90, %s16, 1
        %s92 = smul.addr %s91, 2
        %s93 = smul.addr %s92, 4
        %s94 = scalar_lea.vmem %s1, %s93
      $region20: #{spatial_gate_forward.1} parent=15 // pred_fallthru
        _
    $region16: #{spatial_gate_forward.1} parent=5 // pred_fallthru
      _
    %p95 = scmp.le.s32.totalorder 1, %s16
    %p96 = scmp.lt.s32.totalorder %s16, 3
    %p97 = pnand %p95, %p96
    %p98 = pneg %p97
    // Predicated region
    $region21: #{spatial_gate_forward.1} parent=5 // pred_check
      _
    $region22: #{spatial_gate_forward.1} parent=5 // pred_check_branch
      %100 = sbr.rel (%p97) target = $region24
    $region23: #{spatial_gate_forward.1} parent=5 // pred_region
      %s101 = ssub.s32 %s16, 1
      %p102 = scmp.lt.s32.totalorder %s21, 1
      %s103 = scalar_select %p102, %s21, 1
      %s104 = smul.addr %s103, 2
      %s105 = smul.addr %s104, 4
      %s106 = scalar_lea.vmem %s1, %s105
      %p107 = pneg %p42
      %p108 = pneg %p39
      %p109 = pneg %p68
      %p110 = pneg %p65
      %p111 = scmp.lt.s32.totalorder %s21, 1
      %s112 = scalar_select %p111, %s21, 1
      %s113 = smul.addr %s112, 2
      %s114 = smul.addr %s113, 4
      %s115 = scalar_lea.vmem %s2, %s114
      %p116 = scmp.lt.s32.totalorder %s21, 1
      %s117 = scalar_select %p116, %s21, 1
      %s118 = smul.addr %s117, 2
      %s119 = smul.addr %s118, 4
      %s120 = scalar_lea.vmem %s1, %s119
      %p121 = scmp.lt.s32.totalorder %s21, 1
      %s122 = scalar_select %p121, %s21, 1
      %s123 = smul.addr %s122, 2
      %s124 = smul.addr %s123, 4
      %s125 = scalar_lea.vmem %s2, %s124
      %v126 = vld [vmem:[%s120] sm:$0xff]
      %128 = vst [vmem:[#allocation1] ss:$2 sm:$0xff] %v126
      %v129 = vld.sshfl [vmem:[#allocation1] sm:$0xff pattern:$0x75316420]
      %v130 = vld.sshfl [vmem:[#allocation1 + $0x8] sm:$0xff pattern:$0x75316420]
      %vm133 = vcmask 1043456
      %v134 = vsel %vm133, %v129, -inf
      %v135 = vrot.slane %v134, 4
      %v136 = vmax.f32 %v134, %v135
      %v137 = vrot.slane %v136, 2
      %v138 = vmax.f32 %v136, %v137
      %v139 = vrot.slane %v138, 1
      %v140 = vmax.f32 %v138, %v139
      %v141 = vsel %vm133, %v130, -inf
      %v142 = vrot.slane %v141, 4
      %v143 = vmax.f32 %v141, %v142
      %v144 = vrot.slane %v143, 2
      %v145 = vmax.f32 %v143, %v144
      %v146 = vrot.slane %v145, 1
      %v147 = vmax.f32 %v145, %v146
      %148 = vst [vmem:[#allocation1] ss:$2 sm:$0xff] %v126
      %v149 = vld.sshfl [vmem:[#allocation1] sm:$0xff pattern:$0x75316420]
      %v150 = vld.sshfl [vmem:[#allocation1 + $0x8] sm:$0xff pattern:$0x75316420]
      %v153 = vsel %vm133, %v149, 0.0
      %v154 = vrot.slane %v153, 4
      %v155 = vadd.f32 %v153, %v154
      %v156 = vrot.slane %v155, 2
      %v157 = vadd.f32 %v155, %v156
      %v158 = vrot.slane %v157, 1
      %v159 = vadd.f32 %v157, %v158
      %v160 = vsel %vm133, %v150, 0.0
      %v161 = vrot.slane %v160, 4
      %v162 = vadd.f32 %v160, %v161
      %v163 = vrot.slane %v162, 2
      %v164 = vadd.f32 %v162, %v163
      %v165 = vrot.slane %v164, 1
      %v166 = vadd.f32 %v164, %v165
      %v167 = vmul.f32 %v159, 0.25
      %v168 = vmul.f32 %v166, 0.25
      %vm169 = vcmask 179200
      %170 = vst.msk [vmem:[#allocation2] sm:$0xff] %vm169, 0.0
      %171 = vst.msk [vmem:[#allocation2 + $0x8] sm:$0xff] %vm169, 0.0
      %vm172 = vcmask 177152
      %173 = vst.msk [vmem:[#allocation2 + $0x10] sm:$0x3f] %vm172, 0.0
      %174 = vst.msk [vmem:[#allocation2 + $0x18] sm:$0xff] %vm169, 0.0
      %175 = vst.msk [vmem:[#allocation2 + $0x20] sm:$0xff] %vm169, 0.0
      %176 = vst.msk [vmem:[#allocation2 + $0x28] sm:$0x3f] %vm172, 0.0
      %178 = vrot.lane.b32.xlu0 %v140, 3
      %v179 = vpop.permute.xlu0 %178
      %vm181 = vcmask 147480
      %182 = vst.msk [vmem:[#allocation2 + $0x3] sm:$0x1] %vm181, %v179
      %183 = vrot.lane.b32.xlu0 %v140, 115
      %v184 = vpop.permute.xlu0 %183
      %186 = vst.msk [vmem:[#allocation2 + $0x4] sm:$0x1] %vm181, %v184
      %187 = vrot.lane.b32.xlu0 %v140, 99
      %v188 = vpop.permute.xlu0 %187
      %190 = vst.msk [vmem:[#allocation2 + $0x5] sm:$0x1] %vm181, %v188
      %191 = vrot.lane.b32.xlu0 %v140, 83
      %v192 = vpop.permute.xlu0 %191
      %194 = vst.msk [vmem:[#allocation2 + $0x6] sm:$0x1] %vm181, %v192
      %195 = vrot.lane.b32.xlu0 %v140, 67
      %v196 = vpop.permute.xlu0 %195
      %198 = vst.msk [vmem:[#allocation2 + $0x7] sm:$0x1] %vm181, %v196
      %199 = vrot.lane.b32.xlu0 %v140, 51
      %v200 = vpop.permute.xlu0 %199
      %202 = vst.msk [vmem:[#allocation2 + $0x8] sm:$0x1] %vm181, %v200
      %203 = vrot.lane.b32.xlu0 %v140, 35
      %v204 = vpop.permute.xlu0 %203
      %206 = vst.msk [vmem:[#allocation2 + $0x9] sm:$0x1] %vm181, %v204
      %207 = vrot.lane.b32.xlu0 %v140, 19
      %v208 = vpop.permute.xlu0 %207
      %210 = vst.msk [vmem:[#allocation2 + $0xa] sm:$0x1] %vm181, %v208
      %212 = vrot.lane.b32.xlu0 %v147, 3
      %v213 = vpop.permute.xlu0 %212
      %215 = vst.msk [vmem:[#allocation2 + $0xb] sm:$0x1] %vm181, %v213
      %216 = vrot.lane.b32.xlu0 %v147, 115
      %v217 = vpop.permute.xlu0 %216
      %219 = vst.msk [vmem:[#allocation2 + $0xc] sm:$0x1] %vm181, %v217
      %220 = vrot.lane.b32.xlu0 %v147, 99
      %v221 = vpop.permute.xlu0 %220
      %223 = vst.msk [vmem:[#allocation2 + $0xd] sm:$0x1] %vm181, %v221
      %224 = vrot.lane.b32.xlu0 %v147, 83
      %v225 = vpop.permute.xlu0 %224
      %227 = vst.msk [vmem:[#allocation2 + $0xe] sm:$0x1] %vm181, %v225
      %228 = vrot.lane.b32.xlu0 %v147, 67
      %v229 = vpop.permute.xlu0 %228
      %231 = vst.msk [vmem:[#allocation2 + $0xf] sm:$0x1] %vm181, %v229
      %232 = vrot.lane.b32.xlu0 %v147, 51
      %v233 = vpop.permute.xlu0 %232
      %235 = vst.msk [vmem:[#allocation2 + $0x10] sm:$0x1] %vm181, %v233
      %236 = vrot.lane.b32.xlu0 %v147, 35
      %v237 = vpop.permute.xlu0 %236
      %239 = vst.msk [vmem:[#allocation2 + $0x11] sm:$0x1] %vm181, %v237
      %240 = vrot.lane.b32.xlu0 %v147, 19
      %v241 = vpop.permute.xlu0 %240
      %243 = vst.msk [vmem:[#allocation2 + $0x12] sm:$0x1] %vm181, %v241
      %245 = vrot.lane.b32.xlu0 %v167, 3
      %v246 = vpop.permute.xlu0 %245
      %s248 = scalar_lea.vmem [#allocation2], 24
      %249 = vst.msk [vmem:[%s248 + $0x3] sm:$0x1] %vm181, %v246
      %250 = vrot.lane.b32.xlu0 %v167, 115
      %v251 = vpop.permute.xlu0 %250
      %253 = vst.msk [vmem:[%s248 + $0x4] sm:$0x1] %vm181, %v251
      %254 = vrot.lane.b32.xlu0 %v167, 99
      %v255 = vpop.permute.xlu0 %254
      %257 = vst.msk [vmem:[%s248 + $0x5] sm:$0x1] %vm181, %v255
      %258 = vrot.lane.b32.xlu0 %v167, 83
      %v259 = vpop.permute.xlu0 %258
      %261 = vst.msk [vmem:[%s248 + $0x6] sm:$0x1] %vm181, %v259
      %262 = vrot.lane.b32.xlu0 %v167, 67
      %v263 = vpop.permute.xlu0 %262
      %265 = vst.msk [vmem:[%s248 + $0x7] sm:$0x1] %vm181, %v263
      %266 = vrot.lane.b32.xlu0 %v167, 51
      %v267 = vpop.permute.xlu0 %266
      %269 = vst.msk [vmem:[%s248 + $0x8] sm:$0x1] %vm181, %v267
      %270 = vrot.lane.b32.xlu0 %v167, 35
      %v271 = vpop.permute.xlu0 %270
      %273 = vst.msk [vmem:[%s248 + $0x9] sm:$0x1] %vm181, %v271
      %274 = vrot.lane.b32.xlu0 %v167, 19
      %v275 = vpop.permute.xlu0 %274
      %277 = vst.msk [vmem:[%s248 + $0xa] sm:$0x1] %vm181, %v275
      %279 = vrot.lane.b32.xlu0 %v168, 3
      %v280 = vpop.permute.xlu0 %279
      %282 = vst.msk [vmem:[%s248 + $0xb] sm:$0x1] %vm181, %v280
      %283 = vrot.lane.b32.xlu0 %v168, 115
      %v284 = vpop.permute.xlu0 %283
      %286 = vst.msk [vmem:[%s248 + $0xc] sm:$0x1] %vm181, %v284
      %287 = vrot.lane.b32.xlu0 %v168, 99
      %v288 = vpop.permute.xlu0 %287
      %290 = vst.msk [vmem:[%s248 + $0xd] sm:$0x1] %vm181, %v288
      %291 = vrot.lane.b32.xlu0 %v168, 83
      %v292 = vpop.permute.xlu0 %291
      %294 = vst.msk [vmem:[%s248 + $0xe] sm:$0x1] %vm181, %v292
      %295 = vrot.lane.b32.xlu0 %v168, 67
      %v296 = vpop.permute.xlu0 %295
      %298 = vst.msk [vmem:[%s248 + $0xf] sm:$0x1] %vm181, %v296
      %299 = vrot.lane.b32.xlu0 %v168, 51
      %v300 = vpop.permute.xlu0 %299
      %302 = vst.msk [vmem:[%s248 + $0x10] sm:$0x1] %vm181, %v300
      %303 = vrot.lane.b32.xlu0 %v168, 35
      %v304 = vpop.permute.xlu0 %303
      %306 = vst.msk [vmem:[%s248 + $0x11] sm:$0x1] %vm181, %v304
      %307 = vrot.lane.b32.xlu0 %v168, 19
      %v308 = vpop.permute.xlu0 %307
      %310 = vst.msk [vmem:[%s248 + $0x12] sm:$0x1] %vm181, %v308
      %v311 = vld [vmem:[#allocation2] sm:$0xff]
      %v312 = vld [vmem:[#allocation2 + $0x8] sm:$0xff]
      %v313 = vld [vmem:[#allocation2 + $0x10] sm:$0x3f]
      %s314 = sld [smem:[#allocation5]]
      %v315 = vstv %s314
      %v316 = vmul.f32 %v315, %v311
      %v317 = vmul.f32 %v315, %v312
      %v318 = vadd.f32 %v316, 0.0
      %v319 = vadd.f32 %v317, 0.0
      %s320 = sld [smem:[#allocation5 + $0x1]]
      %v321 = vstv %s320
      %v322 = vmul.f32 %v321, %v311
      %v323 = vmul.f32 %v321, %v312
      %v324 = vadd.f32 %v322, 0.0
      %v325 = vadd.f32 %v323, 0.0
      %s326 = sld [smem:[#allocation5 + $0x2]]
      %v327 = vstv %s326
      %v328 = vmul.f32 %v327, %v311
      %v329 = vmul.f32 %v327, %v312
      %v330 = vadd.f32 %v328, 0.0
      %v331 = vadd.f32 %v329, 0.0
      %s332 = sld [smem:[#allocation5 + $0x3]]
      %v333 = vstv %s332
      %v334 = vmul.f32 %v333, %v311
      %v335 = vmul.f32 %v333, %v312
      %v336 = vadd.f32 %v334, 0.0
      %v337 = vadd.f32 %v335, 0.0
      %s338 = sld [smem:[#allocation5 + $0x4]]
      %v339 = vstv %s338
      %v340 = vmul.f32 %v339, %v311
      %v341 = vmul.f32 %v339, %v312
      %344 = vrot.lane.b32.xlu0 %v340, 124
      %v345 = vpop.permute.xlu0 %344
      %346 = vrot.lane.b32.xlu0 %v341, 124
      %v347 = vpop.permute.xlu0 %346
      %v350 = vadd.f32 %v318, %v345
      %v351 = vadd.f32 %v319, %v347
      %s352 = sld [smem:[#allocation5 + $0x5]]
      %v353 = vstv %s352
      %v354 = vmul.f32 %v353, %v311
      %v355 = vmul.f32 %v353, %v312
      %358 = vrot.lane.b32.xlu0 %v354, 124
      %v359 = vpop.permute.xlu0 %358
      %360 = vrot.lane.b32.xlu0 %v355, 124
      %v361 = vpop.permute.xlu0 %360
      %v364 = vadd.f32 %v324, %v359
      %v365 = vadd.f32 %v325, %v361
      %s366 = sld [smem:[#allocation5 + $0x6]]
      %v367 = vstv %s366
      %v368 = vmul.f32 %v367, %v311
      %v369 = vmul.f32 %v367, %v312
      %372 = vrot.lane.b32.xlu0 %v368, 124
      %v373 = vpop.permute.xlu0 %372
      %374 = vrot.lane.b32.xlu0 %v369, 124
      %v375 = vpop.permute.xlu0 %374
      %v378 = vadd.f32 %v330, %v373
      %v379 = vadd.f32 %v331, %v375
      %s380 = sld [smem:[#allocation5 + $0x7]]
      %v381 = vstv %s380
      %v382 = vmul.f32 %v381, %v311
      %v383 = vmul.f32 %v381, %v312
      %v384 = vmul.f32 %v381, %v313
      %vm388 = vcmask 1046528
      %v389 = vrot.slane %v382, 1
      %v390 = vrot.slane %v383, 1
      %v391 = vsel %vm388, %v389, %v390
      %v392 = vrot.slane %v384, 1
      %v393 = vsel %vm388, %v390, %v392
      %394 = vrot.lane.b32.xlu0 %v391, 3
      %v395 = vpop.permute.xlu0 %394
      %396 = vrot.lane.b32.xlu0 %v393, 3
      %v397 = vpop.permute.xlu0 %396
      %v400 = vadd.f32 %v336, %v395
      %v401 = vadd.f32 %v337, %v397
      %s402 = sld [smem:[#allocation5 + $0x8]]
      %v403 = vstv %s402
      %v404 = vmul.f32 %v403, %v311
      %v405 = vmul.f32 %v403, %v312
      %v406 = vmul.f32 %v403, %v313
      %v410 = vrot.slane %v404, 1
      %v411 = vrot.slane %v405, 1
      %v412 = vsel %vm388, %v410, %v411
      %v413 = vrot.slane %v406, 1
      %v414 = vsel %vm388, %v411, %v413
      %415 = vrot.lane.b32.xlu0 %v412, 127
      %v416 = vpop.permute.xlu0 %415
      %417 = vrot.lane.b32.xlu0 %v414, 127
      %v418 = vpop.permute.xlu0 %417
      %v421 = vadd.f32 %v350, %v416
      %v422 = vadd.f32 %v351, %v418
      %s423 = sld [smem:[#allocation5 + $0x9]]
      %v424 = vstv %s423
      %v425 = vmul.f32 %v424, %v311
      %v426 = vmul.f32 %v424, %v312
      %v427 = vmul.f32 %v424, %v313
      %v431 = vrot.slane %v425, 1
      %v432 = vrot.slane %v426, 1
      %v433 = vsel %vm388, %v431, %v432
      %v434 = vrot.slane %v427, 1
      %v435 = vsel %vm388, %v432, %v434
      %436 = vrot.lane.b32.xlu0 %v433, 127
      %v437 = vpop.permute.xlu0 %436
      %438 = vrot.lane.b32.xlu0 %v435, 127
      %v439 = vpop.permute.xlu0 %438
      %v442 = vadd.f32 %v364, %v437
      %v443 = vadd.f32 %v365, %v439
      %s444 = sld [smem:[#allocation5 + $0xa]]
      %v445 = vstv %s444
      %v446 = vmul.f32 %v445, %v311
      %v447 = vmul.f32 %v445, %v312
      %v448 = vmul.f32 %v445, %v313
      %v452 = vrot.slane %v446, 1
      %v453 = vrot.slane %v447, 1
      %v454 = vsel %vm388, %v452, %v453
      %v455 = vrot.slane %v448, 1
      %v456 = vsel %vm388, %v453, %v455
      %457 = vrot.lane.b32.xlu0 %v454, 127
      %v458 = vpop.permute.xlu0 %457
      %459 = vrot.lane.b32.xlu0 %v456, 127
      %v460 = vpop.permute.xlu0 %459
      %v463 = vadd.f32 %v378, %v458
      %v464 = vadd.f32 %v379, %v460
      %s465 = sld [smem:[#allocation5 + $0xb]]
      %v466 = vstv %s465
      %v467 = vmul.f32 %v466, %v311
      %v468 = vmul.f32 %v466, %v312
      %v469 = vmul.f32 %v466, %v313
      %v473 = vrot.slane %v467, 1
      %v474 = vrot.slane %v468, 1
      %v475 = vsel %vm388, %v473, %v474
      %v476 = vrot.slane %v469, 1
      %v477 = vsel %vm388, %v474, %v476
      %478 = vrot.lane.b32.xlu0 %v475, 127
      %v479 = vpop.permute.xlu0 %478
      %480 = vrot.lane.b32.xlu0 %v477, 127
      %v481 = vpop.permute.xlu0 %480
      %v484 = vadd.f32 %v400, %v479
      %v485 = vadd.f32 %v401, %v481
      %s486 = sld [smem:[#allocation5 + $0xc]]
      %v487 = vstv %s486
      %v488 = vmul.f32 %v487, %v311
      %v489 = vmul.f32 %v487, %v312
      %v490 = vmul.f32 %v487, %v313
      %v494 = vrot.slane %v488, 1
      %v495 = vrot.slane %v489, 1
      %v496 = vsel %vm388, %v494, %v495
      %v497 = vrot.slane %v490, 1
      %v498 = vsel %vm388, %v495, %v497
      %499 = vrot.lane.b32.xlu0 %v496, 123
      %v500 = vpop.permute.xlu0 %499
      %501 = vrot.lane.b32.xlu0 %v498, 123
      %v502 = vpop.permute.xlu0 %501
      %v505 = vadd.f32 %v421, %v500
      %v506 = vadd.f32 %v422, %v502
      %s507 = sld [smem:[#allocation5 + $0xd]]
      %v508 = vstv %s507
      %v509 = vmul.f32 %v508, %v311
      %v510 = vmul.f32 %v508, %v312
      %v511 = vmul.f32 %v508, %v313
      %v515 = vrot.slane %v509, 1
      %v516 = vrot.slane %v510, 1
      %v517 = vsel %vm388, %v515, %v516
      %v518 = vrot.slane %v511, 1
      %v519 = vsel %vm388, %v516, %v518
      %520 = vrot.lane.b32.xlu0 %v517, 123
      %v521 = vpop.permute.xlu0 %520
      %522 = vrot.lane.b32.xlu0 %v519, 123
      %v523 = vpop.permute.xlu0 %522
      %v526 = vadd.f32 %v442, %v521
      %v527 = vadd.f32 %v443, %v523
      %s528 = sld [smem:[#allocation5 + $0xe]]
      %v529 = vstv %s528
      %v530 = vmul.f32 %v529, %v311
      %v531 = vmul.f32 %v529, %v312
      %v532 = vmul.f32 %v529, %v313
      %vm536 = vcmask 1045504
      %v537 = vrot.slane %v530, 2
      %v538 = vrot.slane %v531, 2
      %v539 = vsel %vm536, %v537, %v538
      %v540 = vrot.slane %v532, 2
      %v541 = vsel %vm536, %v538, %v540
      %542 = vrot.lane.b32.xlu0 %v539, 2
      %v543 = vpop.permute.xlu0 %542
      %544 = vrot.lane.b32.xlu0 %v541, 2
      %v545 = vpop.permute.xlu0 %544
      %v548 = vadd.f32 %v463, %v543
      %v549 = vadd.f32 %v464, %v545
      %s550 = sld [smem:[#allocation5 + $0xf]]
      %v551 = vstv %s550
      %v552 = vmul.f32 %v551, %v311
      %v553 = vmul.f32 %v551, %v312
      %v554 = vmul.f32 %v551, %v313
      %v558 = vrot.slane %v552, 2
      %v559 = vrot.slane %v553, 2
      %v560 = vsel %vm536, %v558, %v559
      %v561 = vrot.slane %v554, 2
      %v562 = vsel %vm536, %v559, %v561
      %563 = vrot.lane.b32.xlu0 %v560, 2
      %v564 = vpop.permute.xlu0 %563
      %565 = vrot.lane.b32.xlu0 %v562, 2
      %v566 = vpop.permute.xlu0 %565
      %v569 = vadd.f32 %v484, %v564
      %v570 = vadd.f32 %v485, %v566
      %s571 = sld [smem:[#allocation5 + $0x10]]
      %v572 = vstv %s571
      %v573 = vmul.f32 %v572, %v311
      %v574 = vmul.f32 %v572, %v312
      %v575 = vmul.f32 %v572, %v313
      %v579 = vrot.slane %v573, 2
      %v580 = vrot.slane %v574, 2
      %v581 = vsel %vm536, %v579, %v580
      %v582 = vrot.slane %v575, 2
      %v583 = vsel %vm536, %v580, %v582
      %584 = vrot.lane.b32.xlu0 %v581, 126
      %v585 = vpop.permute.xlu0 %584
      %586 = vrot.lane.b32.xlu0 %v583, 126
      %v587 = vpop.permute.xlu0 %586
      %v590 = vadd.f32 %v505, %v585
      %v591 = vadd.f32 %v506, %v587
      %s592 = sld [smem:[#allocation5 + $0x11]]
      %v593 = vstv %s592
      %v594 = vmul.f32 %v593, %v311
      %v595 = vmul.f32 %v593, %v312
      %v596 = vmul.f32 %v593, %v313
      %v600 = vrot.slane %v594, 2
      %v601 = vrot.slane %v595, 2
      %v602 = vsel %vm536, %v600, %v601
      %v603 = vrot.slane %v596, 2
      %v604 = vsel %vm536, %v601, %v603
      %605 = vrot.lane.b32.xlu0 %v602, 126
      %v606 = vpop.permute.xlu0 %605
      %607 = vrot.lane.b32.xlu0 %v604, 126
      %v608 = vpop.permute.xlu0 %607
      %v611 = vadd.f32 %v526, %v606
      %v612 = vadd.f32 %v527, %v608
      %s613 = sld [smem:[#allocation5 + $0x12]]
      %v614 = vstv %s613
      %v615 = vmul.f32 %v614, %v311
      %v616 = vmul.f32 %v614, %v312
      %v617 = vmul.f32 %v614, %v313
      %v621 = vrot.slane %v615, 2
      %v622 = vrot.slane %v616, 2
      %v623 = vsel %vm536, %v621, %v622
      %v624 = vrot.slane %v617, 2
      %v625 = vsel %vm536, %v622, %v624
      %626 = vrot.lane.b32.xlu0 %v623, 126
      %v627 = vpop.permute.xlu0 %626
      %628 = vrot.lane.b32.xlu0 %v625, 126
      %v629 = vpop.permute.xlu0 %628
      %v632 = vadd.f32 %v548, %v627
      %v633 = vadd.f32 %v549, %v629
      %s634 = sld [smem:[#allocation5 + $0x13]]
      %v635 = vstv %s634
      %v636 = vmul.f32 %v635, %v311
      %v637 = vmul.f32 %v635, %v312
      %v638 = vmul.f32 %v635, %v313
      %v642 = vrot.slane %v636, 2
      %v643 = vrot.slane %v637, 2
      %v644 = vsel %vm536, %v642, %v643
      %v645 = vrot.slane %v638, 2
      %v646 = vsel %vm536, %v643, %v645
      %647 = vrot.lane.b32.xlu0 %v644, 126
      %v648 = vpop.permute.xlu0 %647
      %649 = vrot.lane.b32.xlu0 %v646, 126
      %v650 = vpop.permute.xlu0 %649
      %v653 = vadd.f32 %v569, %v648
      %v654 = vadd.f32 %v570, %v650
      %s655 = sld [smem:[#allocation5 + $0x14]]
      %v656 = vstv %s655
      %v657 = vmul.f32 %v656, %v311
      %v658 = vmul.f32 %v656, %v312
      %v659 = vmul.f32 %v656, %v313
      %v663 = vrot.slane %v657, 2
      %v664 = vrot.slane %v658, 2
      %v665 = vsel %vm536, %v663, %v664
      %v666 = vrot.slane %v659, 2
      %v667 = vsel %vm536, %v664, %v666
      %668 = vrot.lane.b32.xlu0 %v665, 122
      %v669 = vpop.permute.xlu0 %668
      %670 = vrot.lane.b32.xlu0 %v667, 122
      %v671 = vpop.permute.xlu0 %670
      %v674 = vadd.f32 %v590, %v669
      %v675 = vadd.f32 %v591, %v671
      %s676 = sld [smem:[#allocation5 + $0x15]]
      %v677 = vstv %s676
      %v678 = vmul.f32 %v677, %v311
      %v679 = vmul.f32 %v677, %v312
      %v680 = vmul.f32 %v677, %v313
      %vm684 = vcmask 1044480
      %v685 = vrot.slane %v678, 3
      %v686 = vrot.slane %v679, 3
      %v687 = vsel %vm684, %v685, %v686
      %v688 = vrot.slane %v680, 3
      %v689 = vsel %vm684, %v686, %v688
      %690 = vrot.lane.b32.xlu0 %v687, 1
      %v691 = vpop.permute.xlu0 %690
      %692 = vrot.lane.b32.xlu0 %v689, 1
      %v693 = vpop.permute.xlu0 %692
      %v696 = vadd.f32 %v611, %v691
      %v697 = vadd.f32 %v612, %v693
      %s698 = sld [smem:[#allocation5 + $0x16]]
      %v699 = vstv %s698
      %v700 = vmul.f32 %v699, %v311
      %v701 = vmul.f32 %v699, %v312
      %v702 = vmul.f32 %v699, %v313
      %v706 = vrot.slane %v700, 3
      %v707 = vrot.slane %v701, 3
      %v708 = vsel %vm684, %v706, %v707
      %v709 = vrot.slane %v702, 3
      %v710 = vsel %vm684, %v707, %v709
      %711 = vrot.lane.b32.xlu0 %v708, 1
      %v712 = vpop.permute.xlu0 %711
      %713 = vrot.lane.b32.xlu0 %v710, 1
      %v714 = vpop.permute.xlu0 %713
      %v717 = vadd.f32 %v632, %v712
      %v718 = vadd.f32 %v633, %v714
      %s719 = sld [smem:[#allocation5 + $0x17]]
      %v720 = vstv %s719
      %v721 = vmul.f32 %v720, %v311
      %v722 = vmul.f32 %v720, %v312
      %v723 = vmul.f32 %v720, %v313
      %v727 = vrot.slane %v721, 3
      %v728 = vrot.slane %v722, 3
      %v729 = vsel %vm684, %v727, %v728
      %v730 = vrot.slane %v723, 3
      %v731 = vsel %vm684, %v728, %v730
      %732 = vrot.lane.b32.xlu0 %v729, 1
      %v733 = vpop.permute.xlu0 %732
      %734 = vrot.lane.b32.xlu0 %v731, 1
      %v735 = vpop.permute.xlu0 %734
      %v738 = vadd.f32 %v653, %v733
      %v739 = vadd.f32 %v654, %v735
      %s740 = sld [smem:[#allocation5 + $0x18]]
      %v741 = vstv %s740
      %v742 = vmul.f32 %v741, %v311
      %v743 = vmul.f32 %v741, %v312
      %v744 = vmul.f32 %v741, %v313
      %v748 = vrot.slane %v742, 3
      %v749 = vrot.slane %v743, 3
      %v750 = vsel %vm684, %v748, %v749
      %v751 = vrot.slane %v744, 3
      %v752 = vsel %vm684, %v749, %v751
      %753 = vrot.lane.b32.xlu0 %v750, 125
      %v754 = vpop.permute.xlu0 %753
      %755 = vrot.lane.b32.xlu0 %v752, 125
      %v756 = vpop.permute.xlu0 %755
      %v759 = vadd.f32 %v674, %v754
      %v760 = vadd.f32 %v675, %v756
      %s761 = sld [smem:[#allocation5 + $0x19]]
      %v762 = vstv %s761
      %v763 = vmul.f32 %v762, %v311
      %v764 = vmul.f32 %v762, %v312
      %v765 = vmul.f32 %v762, %v313
      %v769 = vrot.slane %v763, 3
      %v770 = vrot.slane %v764, 3
      %v771 = vsel %vm684, %v769, %v770
      %v772 = vrot.slane %v765, 3
      %v773 = vsel %vm684, %v770, %v772
      %774 = vrot.lane.b32.xlu0 %v771, 125
      %v775 = vpop.permute.xlu0 %774
      %776 = vrot.lane.b32.xlu0 %v773, 125
      %v777 = vpop.permute.xlu0 %776
      %v780 = vadd.f32 %v696, %v775
      %v781 = vadd.f32 %v697, %v777
      %s782 = sld [smem:[#allocation5 + $0x1a]]
      %v783 = vstv %s782
      %v784 = vmul.f32 %v783, %v311
      %v785 = vmul.f32 %v783, %v312
      %v786 = vmul.f32 %v783, %v313
      %v790 = vrot.slane %v784, 3
      %v791 = vrot.slane %v785, 3
      %v792 = vsel %vm684, %v790, %v791
      %v793 = vrot.slane %v786, 3
      %v794 = vsel %vm684, %v791, %v793
      %795 = vrot.lane.b32.xlu0 %v792, 125
      %v796 = vpop.permute.xlu0 %795
      %797 = vrot.lane.b32.xlu0 %v794, 125
      %v798 = vpop.permute.xlu0 %797
      %v801 = vadd.f32 %v717, %v796
      %v802 = vadd.f32 %v718, %v798
      %s803 = sld [smem:[#allocation5 + $0x1b]]
      %v804 = vstv %s803
      %v805 = vmul.f32 %v804, %v311
      %v806 = vmul.f32 %v804, %v312
      %v807 = vmul.f32 %v804, %v313
      %v811 = vrot.slane %v805, 3
      %v812 = vrot.slane %v806, 3
      %v813 = vsel %vm684, %v811, %v812
      %v814 = vrot.slane %v807, 3
      %v815 = vsel %vm684, %v812, %v814
      %816 = vrot.lane.b32.xlu0 %v813, 125
      %v817 = vpop.permute.xlu0 %816
      %818 = vrot.lane.b32.xlu0 %v815, 125
      %v819 = vpop.permute.xlu0 %818
      %v822 = vadd.f32 %v738, %v817
      %v823 = vadd.f32 %v739, %v819
      %s824 = sld [smem:[#allocation5 + $0x1c]]
      %v825 = vstv %s824
      %v826 = vmul.f32 %v825, %v311
      %v827 = vmul.f32 %v825, %v312
      %v828 = vmul.f32 %v825, %v313
      %v832 = vrot.slane %v826, 4
      %v833 = vrot.slane %v827, 4
      %v834 = vsel %vm133, %v832, %v833
      %v835 = vrot.slane %v828, 4
      %v836 = vsel %vm133, %v833, %v835
      %v839 = vadd.f32 %v759, %v834
      %v840 = vadd.f32 %v760, %v836
      %s841 = sld [smem:[#allocation5 + $0x1d]]
      %v842 = vstv %s841
      %v843 = vmul.f32 %v842, %v311
      %v844 = vmul.f32 %v842, %v312
      %v845 = vmul.f32 %v842, %v313
      %v849 = vrot.slane %v843, 4
      %v850 = vrot.slane %v844, 4
      %v851 = vsel %vm133, %v849, %v850
      %v852 = vrot.slane %v845, 4
      %v853 = vsel %vm133, %v850, %v852
      %v856 = vadd.f32 %v780, %v851
      %v857 = vadd.f32 %v781, %v853
      %s858 = sld [smem:[#allocation5 + $0x1e]]
      %v859 = vstv %s858
      %v860 = vmul.f32 %v859, %v311
      %v861 = vmul.f32 %v859, %v312
      %v862 = vmul.f32 %v859, %v313
      %v866 = vrot.slane %v860, 4
      %v867 = vrot.slane %v861, 4
      %v868 = vsel %vm133, %v866, %v867
      %v869 = vrot.slane %v862, 4
      %v870 = vsel %vm133, %v867, %v869
      %v873 = vadd.f32 %v801, %v868
      %v874 = vadd.f32 %v802, %v870
      %s875 = sld [smem:[#allocation5 + $0x1f]]
      %v876 = vstv %s875
      %v877 = vmul.f32 %v876, %v311
      %v878 = vmul.f32 %v876, %v312
      %v879 = vmul.f32 %v876, %v313
      %v883 = vrot.slane %v877, 4
      %v884 = vrot.slane %v878, 4
      %v885 = vsel %vm133, %v883, %v884
      %v886 = vrot.slane %v879, 4
      %v887 = vsel %vm133, %v884, %v886
      %v890 = vadd.f32 %v822, %v885
      %v891 = vadd.f32 %v823, %v887
      %s892 = sld [smem:[#allocation5 + $0x20]]
      %v893 = vstv %s892
      %v894 = vmul.f32 %v893, %v311
      %v895 = vmul.f32 %v893, %v312
      %v896 = vmul.f32 %v893, %v313
      %v900 = vrot.slane %v894, 4
      %v901 = vrot.slane %v895, 4
      %v902 = vsel %vm133, %v900, %v901
      %v903 = vrot.slane %v896, 4
      %v904 = vsel %vm133, %v901, %v903
      %905 = vrot.lane.b32.xlu0 %v902, 124
      %v906 = vpop.permute.xlu0 %905
      %907 = vrot.lane.b32.xlu0 %v904, 124
      %v908 = vpop.permute.xlu0 %907
      %v911 = vadd.f32 %v839, %v906
      %v912 = vadd.f32 %v840, %v908
      %s913 = sld [smem:[#allocation5 + $0x21]]
      %v914 = vstv %s913
      %v915 = vmul.f32 %v914, %v311
      %v916 = vmul.f32 %v914, %v312
      %v917 = vmul.f32 %v914, %v313
      %v921 = vrot.slane %v915, 4
      %v922 = vrot.slane %v916, 4
      %v923 = vsel %vm133, %v921, %v922
      %v924 = vrot.slane %v917, 4
      %v925 = vsel %vm133, %v922, %v924
      %926 = vrot.lane.b32.xlu0 %v923, 124
      %v927 = vpop.permute.xlu0 %926
      %928 = vrot.lane.b32.xlu0 %v925, 124
      %v929 = vpop.permute.xlu0 %928
      %v932 = vadd.f32 %v856, %v927
      %v933 = vadd.f32 %v857, %v929
      %s934 = sld [smem:[#allocation5 + $0x22]]
      %v935 = vstv %s934
      %v936 = vmul.f32 %v935, %v311
      %v937 = vmul.f32 %v935, %v312
      %v938 = vmul.f32 %v935, %v313
      %v942 = vrot.slane %v936, 4
      %v943 = vrot.slane %v937, 4
      %v944 = vsel %vm133, %v942, %v943
      %v945 = vrot.slane %v938, 4
      %v946 = vsel %vm133, %v943, %v945
      %947 = vrot.lane.b32.xlu0 %v944, 124
      %v948 = vpop.permute.xlu0 %947
      %949 = vrot.lane.b32.xlu0 %v946, 124
      %v950 = vpop.permute.xlu0 %949
      %v953 = vadd.f32 %v873, %v948
      %v954 = vadd.f32 %v874, %v950
      %s955 = sld [smem:[#allocation5 + $0x23]]
      %v956 = vstv %s955
      %v957 = vmul.f32 %v956, %v311
      %v958 = vmul.f32 %v956, %v312
      %v959 = vmul.f32 %v956, %v313
      %vm963 = vcmask 1042432
      %v964 = vrot.slane %v957, 5
      %v965 = vrot.slane %v958, 5
      %v966 = vsel %vm963, %v964, %v965
      %v967 = vrot.slane %v959, 5
      %v968 = vsel %vm963, %v965, %v967
      %969 = vrot.lane.b32.xlu0 %v966, 3
      %v970 = vpop.permute.xlu0 %969
      %971 = vrot.lane.b32.xlu0 %v968, 3
      %v972 = vpop.permute.xlu0 %971
      %v975 = vadd.f32 %v890, %v970
      %v976 = vadd.f32 %v891, %v972
      %s977 = sld [smem:[#allocation5 + $0x24]]
      %v978 = vstv %s977
      %v979 = vmul.f32 %v978, %v311
      %v980 = vmul.f32 %v978, %v312
      %v981 = vmul.f32 %v978, %v313
      %v985 = vrot.slane %v979, 5
      %v986 = vrot.slane %v980, 5
      %v987 = vsel %vm963, %v985, %v986
      %v988 = vrot.slane %v981, 5
      %v989 = vsel %vm963, %v986, %v988
      %990 = vrot.lane.b32.xlu0 %v987, 127
      %v991 = vpop.permute.xlu0 %990
      %992 = vrot.lane.b32.xlu0 %v989, 127
      %v993 = vpop.permute.xlu0 %992
      %v996 = vadd.f32 %v911, %v991
      %v997 = vadd.f32 %v912, %v993
      %s998 = sld [smem:[#allocation5 + $0x25]]
      %v999 = vstv %s998
      %v1000 = vmul.f32 %v999, %v311
      %v1001 = vmul.f32 %v999, %v312
      %v1002 = vmul.f32 %v999, %v313
      %v1006 = vrot.slane %v1000, 5
      %v1007 = vrot.slane %v1001, 5
      %v1008 = vsel %vm963, %v1006, %v1007
      %v1009 = vrot.slane %v1002, 5
      %v1010 = vsel %vm963, %v1007, %v1009
      %1011 = vrot.lane.b32.xlu0 %v1008, 127
      %v1012 = vpop.permute.xlu0 %1011
      %1013 = vrot.lane.b32.xlu0 %v1010, 127
      %v1014 = vpop.permute.xlu0 %1013
      %v1017 = vadd.f32 %v932, %v1012
      %v1018 = vadd.f32 %v933, %v1014
      %s1019 = sld [smem:[#allocation5 + $0x26]]
      %v1020 = vstv %s1019
      %v1021 = vmul.f32 %v1020, %v311
      %v1022 = vmul.f32 %v1020, %v312
      %v1023 = vmul.f32 %v1020, %v313
      %v1027 = vrot.slane %v1021, 5
      %v1028 = vrot.slane %v1022, 5
      %v1029 = vsel %vm963, %v1027, %v1028
      %v1030 = vrot.slane %v1023, 5
      %v1031 = vsel %vm963, %v1028, %v1030
      %1032 = vrot.lane.b32.xlu0 %v1029, 127
      %v1033 = vpop.permute.xlu0 %1032
      %1034 = vrot.lane.b32.xlu0 %v1031, 127
      %v1035 = vpop.permute.xlu0 %1034
      %v1038 = vadd.f32 %v953, %v1033
      %v1039 = vadd.f32 %v954, %v1035
      %s1040 = sld [smem:[#allocation5 + $0x27]]
      %v1041 = vstv %s1040
      %v1042 = vmul.f32 %v1041, %v311
      %v1043 = vmul.f32 %v1041, %v312
      %v1044 = vmul.f32 %v1041, %v313
      %v1048 = vrot.slane %v1042, 5
      %v1049 = vrot.slane %v1043, 5
      %v1050 = vsel %vm963, %v1048, %v1049
      %v1051 = vrot.slane %v1044, 5
      %v1052 = vsel %vm963, %v1049, %v1051
      %1053 = vrot.lane.b32.xlu0 %v1050, 127
      %v1054 = vpop.permute.xlu0 %1053
      %1055 = vrot.lane.b32.xlu0 %v1052, 127
      %v1056 = vpop.permute.xlu0 %1055
      %v1059 = vadd.f32 %v975, %v1054
      %v1060 = vadd.f32 %v976, %v1056
      %s1061 = sld [smem:[#allocation5 + $0x28]]
      %v1062 = vstv %s1061
      %v1063 = vmul.f32 %v1062, %v311
      %v1064 = vmul.f32 %v1062, %v312
      %v1065 = vmul.f32 %v1062, %v313
      %v1069 = vrot.slane %v1063, 5
      %v1070 = vrot.slane %v1064, 5
      %v1071 = vsel %vm963, %v1069, %v1070
      %v1072 = vrot.slane %v1065, 5
      %v1073 = vsel %vm963, %v1070, %v1072
      %1074 = vrot.lane.b32.xlu0 %v1071, 123
      %v1075 = vpop.permute.xlu0 %1074
      %1076 = vrot.lane.b32.xlu0 %v1073, 123
      %v1077 = vpop.permute.xlu0 %1076
      %v1080 = vadd.f32 %v996, %v1075
      %v1081 = vadd.f32 %v997, %v1077
      %s1082 = sld [smem:[#allocation5 + $0x29]]
      %v1083 = vstv %s1082
      %v1084 = vmul.f32 %v1083, %v311
      %v1085 = vmul.f32 %v1083, %v312
      %v1086 = vmul.f32 %v1083, %v313
      %v1090 = vrot.slane %v1084, 5
      %v1091 = vrot.slane %v1085, 5
      %v1092 = vsel %vm963, %v1090, %v1091
      %v1093 = vrot.slane %v1086, 5
      %v1094 = vsel %vm963, %v1091, %v1093
      %1095 = vrot.lane.b32.xlu0 %v1092, 123
      %v1096 = vpop.permute.xlu0 %1095
      %1097 = vrot.lane.b32.xlu0 %v1094, 123
      %v1098 = vpop.permute.xlu0 %1097
      %v1101 = vadd.f32 %v1017, %v1096
      %v1102 = vadd.f32 %v1018, %v1098
      %s1103 = sld [smem:[#allocation5 + $0x2a]]
      %v1104 = vstv %s1103
      %v1105 = vmul.f32 %v1104, %v311
      %v1106 = vmul.f32 %v1104, %v312
      %v1107 = vmul.f32 %v1104, %v313
      %vm1111 = vcmask 1041408
      %v1112 = vrot.slane %v1105, 6
      %v1113 = vrot.slane %v1106, 6
      %v1114 = vsel %vm1111, %v1112, %v1113
      %v1115 = vrot.slane %v1107, 6
      %v1116 = vsel %vm1111, %v1113, %v1115
      %1117 = vrot.lane.b32.xlu0 %v1114, 2
      %v1118 = vpop.permute.xlu0 %1117
      %1119 = vrot.lane.b32.xlu0 %v1116, 2
      %v1120 = vpop.permute.xlu0 %1119
      %v1123 = vadd.f32 %v1038, %v1118
      %v1124 = vadd.f32 %v1039, %v1120
      %s1125 = sld [smem:[#allocation5 + $0x2b]]
      %v1126 = vstv %s1125
      %v1127 = vmul.f32 %v1126, %v311
      %v1128 = vmul.f32 %v1126, %v312
      %v1129 = vmul.f32 %v1126, %v313
      %v1133 = vrot.slane %v1127, 6
      %v1134 = vrot.slane %v1128, 6
      %v1135 = vsel %vm1111, %v1133, %v1134
      %v1136 = vrot.slane %v1129, 6
      %v1137 = vsel %vm1111, %v1134, %v1136
      %1138 = vrot.lane.b32.xlu0 %v1135, 2
      %v1139 = vpop.permute.xlu0 %1138
      %1140 = vrot.lane.b32.xlu0 %v1137, 2
      %v1141 = vpop.permute.xlu0 %1140
      %v1144 = vadd.f32 %v1059, %v1139
      %v1145 = vadd.f32 %v1060, %v1141
      %s1146 = sld [smem:[#allocation5 + $0x2c]]
      %v1147 = vstv %s1146
      %v1148 = vmul.f32 %v1147, %v311
      %v1149 = vmul.f32 %v1147, %v312
      %v1150 = vmul.f32 %v1147, %v313
      %v1154 = vrot.slane %v1148, 6
      %v1155 = vrot.slane %v1149, 6
      %v1156 = vsel %vm1111, %v1154, %v1155
      %v1157 = vrot.slane %v1150, 6
      %v1158 = vsel %vm1111, %v1155, %v1157
      %1159 = vrot.lane.b32.xlu0 %v1156, 126
      %v1160 = vpop.permute.xlu0 %1159
      %1161 = vrot.lane.b32.xlu0 %v1158, 126
      %v1162 = vpop.permute.xlu0 %1161
      %v1165 = vadd.f32 %v1080, %v1160
      %v1166 = vadd.f32 %v1081, %v1162
      %s1167 = sld [smem:[#allocation5 + $0x2d]]
      %v1168 = vstv %s1167
      %v1169 = vmul.f32 %v1168, %v311
      %v1170 = vmul.f32 %v1168, %v312
      %v1171 = vmul.f32 %v1168, %v313
      %v1175 = vrot.slane %v1169, 6
      %v1176 = vrot.slane %v1170, 6
      %v1177 = vsel %vm1111, %v1175, %v1176
      %v1178 = vrot.slane %v1171, 6
      %v1179 = vsel %vm1111, %v1176, %v1178
      %1180 = vrot.lane.b32.xlu0 %v1177, 126
      %v1181 = vpop.permute.xlu0 %1180
      %1182 = vrot.lane.b32.xlu0 %v1179, 126
      %v1183 = vpop.permute.xlu0 %1182
      %v1186 = vadd.f32 %v1101, %v1181
      %v1187 = vadd.f32 %v1102, %v1183
      %s1188 = sld [smem:[#allocation5 + $0x2e]]
      %v1189 = vstv %s1188
      %v1190 = vmul.f32 %v1189, %v311
      %v1191 = vmul.f32 %v1189, %v312
      %v1192 = vmul.f32 %v1189, %v313
      %v1196 = vrot.slane %v1190, 6
      %v1197 = vrot.slane %v1191, 6
      %v1198 = vsel %vm1111, %v1196, %v1197
      %v1199 = vrot.slane %v1192, 6
      %v1200 = vsel %vm1111, %v1197, %v1199
      %1201 = vrot.lane.b32.xlu0 %v1198, 126
      %v1202 = vpop.permute.xlu0 %1201
      %1203 = vrot.lane.b32.xlu0 %v1200, 126
      %v1204 = vpop.permute.xlu0 %1203
      %v1207 = vadd.f32 %v1123, %v1202
      %v1208 = vadd.f32 %v1124, %v1204
      %s1209 = sld [smem:[#allocation5 + $0x2f]]
      %v1210 = vstv %s1209
      %v1211 = vmul.f32 %v1210, %v311
      %v1212 = vmul.f32 %v1210, %v312
      %v1213 = vmul.f32 %v1210, %v313
      %v1217 = vrot.slane %v1211, 6
      %v1218 = vrot.slane %v1212, 6
      %v1219 = vsel %vm1111, %v1217, %v1218
      %v1220 = vrot.slane %v1213, 6
      %v1221 = vsel %vm1111, %v1218, %v1220
      %1222 = vrot.lane.b32.xlu0 %v1219, 126
      %v1223 = vpop.permute.xlu0 %1222
      %1224 = vrot.lane.b32.xlu0 %v1221, 126
      %v1225 = vpop.permute.xlu0 %1224
      %v1228 = vadd.f32 %v1144, %v1223
      %v1229 = vadd.f32 %v1145, %v1225
      %s1230 = sld [smem:[#allocation5 + $0x30]]
      %v1231 = vstv %s1230
      %v1232 = vmul.f32 %v1231, %v311
      %v1233 = vmul.f32 %v1231, %v312
      %v1234 = vmul.f32 %v1231, %v313
      %v1238 = vrot.slane %v1232, 6
      %v1239 = vrot.slane %v1233, 6
      %v1240 = vsel %vm1111, %v1238, %v1239
      %v1241 = vrot.slane %v1234, 6
      %v1242 = vsel %vm1111, %v1239, %v1241
      %1243 = vrot.lane.b32.xlu0 %v1240, 122
      %v1244 = vpop.permute.xlu0 %1243
      %1245 = vrot.lane.b32.xlu0 %v1242, 122
      %v1246 = vpop.permute.xlu0 %1245
      %v1249 = vadd.f32 %v1165, %v1244
      %v1250 = vadd.f32 %v1166, %v1246
      %v1251 = vld [vmem:[%s248] sm:$0xff]
      %v1252 = vld [vmem:[%s248 + $0x8] sm:$0xff]
      %v1253 = vld [vmem:[%s248 + $0x10] sm:$0x3f]
      %s1254 = sld [smem:[#allocation5 + $0x31]]
      %v1255 = vstv %s1254
      %v1256 = vmul.f32 %v1255, %v1251
      %v1257 = vmul.f32 %v1255, %v1252
      %1260 = vrot.lane.b32.xlu0 %v1256, 1
      %v1261 = vpop.permute.xlu0 %1260
      %1262 = vrot.lane.b32.xlu0 %v1257, 1
      %v1263 = vpop.permute.xlu0 %1262
      %v1266 = vadd.f32 %v1186, %v1261
      %v1267 = vadd.f32 %v1187, %v1263
      %s1268 = sld [smem:[#allocation5 + $0x32]]
      %v1269 = vstv %s1268
      %v1270 = vmul.f32 %v1269, %v1251
      %v1271 = vmul.f32 %v1269, %v1252
      %1274 = vrot.lane.b32.xlu0 %v1270, 1
      %v1275 = vpop.permute.xlu0 %1274
      %1276 = vrot.lane.b32.xlu0 %v1271, 1
      %v1277 = vpop.permute.xlu0 %1276
      %v1280 = vadd.f32 %v1207, %v1275
      %v1281 = vadd.f32 %v1208, %v1277
      %s1282 = sld [smem:[#allocation5 + $0x33]]
      %v1283 = vstv %s1282
      %v1284 = vmul.f32 %v1283, %v1251
      %v1285 = vmul.f32 %v1283, %v1252
      %1288 = vrot.lane.b32.xlu0 %v1284, 1
      %v1289 = vpop.permute.xlu0 %1288
      %1290 = vrot.lane.b32.xlu0 %v1285, 1
      %v1291 = vpop.permute.xlu0 %1290
      %v1294 = vadd.f32 %v1228, %v1289
      %v1295 = vadd.f32 %v1229, %v1291
      %s1296 = sld [smem:[#allocation5 + $0x34]]
      %v1297 = vstv %s1296
      %v1298 = vmul.f32 %v1297, %v1251
      %v1299 = vmul.f32 %v1297, %v1252
      %1302 = vrot.lane.b32.xlu0 %v1298, 125
      %v1303 = vpop.permute.xlu0 %1302
      %1304 = vrot.lane.b32.xlu0 %v1299, 125
      %v1305 = vpop.permute.xlu0 %1304
      %v1308 = vadd.f32 %v1249, %v1303
      %v1309 = vadd.f32 %v1250, %v1305
      %s1310 = sld [smem:[#allocation5 + $0x35]]
      %v1311 = vstv %s1310
      %v1312 = vmul.f32 %v1311, %v1251
      %v1313 = vmul.f32 %v1311, %v1252
      %1316 = vrot.lane.b32.xlu0 %v1312, 125
      %v1317 = vpop.permute.xlu0 %1316
      %1318 = vrot.lane.b32.xlu0 %v1313, 125
      %v1319 = vpop.permute.xlu0 %1318
      %v1322 = vadd.f32 %v1266, %v1317
      %v1323 = vadd.f32 %v1267, %v1319
      %s1324 = sld [smem:[#allocation5 + $0x36]]
      %v1325 = vstv %s1324
      %v1326 = vmul.f32 %v1325, %v1251
      %v1327 = vmul.f32 %v1325, %v1252
      %1330 = vrot.lane.b32.xlu0 %v1326, 125
      %v1331 = vpop.permute.xlu0 %1330
      %1332 = vrot.lane.b32.xlu0 %v1327, 125
      %v1333 = vpop.permute.xlu0 %1332
      %v1336 = vadd.f32 %v1280, %v1331
      %v1337 = vadd.f32 %v1281, %v1333
      %s1338 = sld [smem:[#allocation5 + $0x37]]
      %v1339 = vstv %s1338
      %v1340 = vmul.f32 %v1339, %v1251
      %v1341 = vmul.f32 %v1339, %v1252
      %1344 = vrot.lane.b32.xlu0 %v1340, 125
      %v1345 = vpop.permute.xlu0 %1344
      %1346 = vrot.lane.b32.xlu0 %v1341, 125
      %v1347 = vpop.permute.xlu0 %1346
      %v1350 = vadd.f32 %v1294, %v1345
      %v1351 = vadd.f32 %v1295, %v1347
      %s1352 = sld [smem:[#allocation5 + $0x38]]
      %v1353 = vstv %s1352
      %v1354 = vmul.f32 %v1353, %v1251
      %v1355 = vmul.f32 %v1353, %v1252
      %v1356 = vmul.f32 %v1353, %v1253
      %v1360 = vrot.slane %v1354, 1
      %v1361 = vrot.slane %v1355, 1
      %v1362 = vsel %vm388, %v1360, %v1361
      %v1363 = vrot.slane %v1356, 1
      %v1364 = vsel %vm388, %v1361, %v1363
      %v1367 = vadd.f32 %v1308, %v1362
      %v1368 = vadd.f32 %v1309, %v1364
      %s1369 = sld [smem:[#allocation5 + $0x39]]
      %v1370 = vstv %s1369
      %v1371 = vmul.f32 %v1370, %v1251
      %v1372 = vmul.f32 %v1370, %v1252
      %v1373 = vmul.f32 %v1370, %v1253
      %v1377 = vrot.slane %v1371, 1
      %v1378 = vrot.slane %v1372, 1
      %v1379 = vsel %vm388, %v1377, %v1378
      %v1380 = vrot.slane %v1373, 1
      %v1381 = vsel %vm388, %v1378, %v1380
      %v1384 = vadd.f32 %v1322, %v1379
      %v1385 = vadd.f32 %v1323, %v1381
      %s1386 = sld [smem:[#allocation5 + $0x3a]]
      %v1387 = vstv %s1386
      %v1388 = vmul.f32 %v1387, %v1251
      %v1389 = vmul.f32 %v1387, %v1252
      %v1390 = vmul.f32 %v1387, %v1253
      %v1394 = vrot.slane %v1388, 1
      %v1395 = vrot.slane %v1389, 1
      %v1396 = vsel %vm388, %v1394, %v1395
      %v1397 = vrot.slane %v1390, 1
      %v1398 = vsel %vm388, %v1395, %v1397
      %v1401 = vadd.f32 %v1336, %v1396
      %v1402 = vadd.f32 %v1337, %v1398
      %s1403 = sld [smem:[#allocation5 + $0x3b]]
      %v1404 = vstv %s1403
      %v1405 = vmul.f32 %v1404, %v1251
      %v1406 = vmul.f32 %v1404, %v1252
      %v1407 = vmul.f32 %v1404, %v1253
      %v1411 = vrot.slane %v1405, 1
      %v1412 = vrot.slane %v1406, 1
      %v1413 = vsel %vm388, %v1411, %v1412
      %v1414 = vrot.slane %v1407, 1
      %v1415 = vsel %vm388, %v1412, %v1414
      %v1418 = vadd.f32 %v1350, %v1413
      %v1419 = vadd.f32 %v1351, %v1415
      %s1420 = sld [smem:[#allocation5 + $0x3c]]
      %v1421 = vstv %s1420
      %v1422 = vmul.f32 %v1421, %v1251
      %v1423 = vmul.f32 %v1421, %v1252
      %v1424 = vmul.f32 %v1421, %v1253
      %v1428 = vrot.slane %v1422, 1
      %v1429 = vrot.slane %v1423, 1
      %v1430 = vsel %vm388, %v1428, %v1429
      %v1431 = vrot.slane %v1424, 1
      %v1432 = vsel %vm388, %v1429, %v1431
      %1433 = vrot.lane.b32.xlu0 %v1430, 124
      %v1434 = vpop.permute.xlu0 %1433
      %1435 = vrot.lane.b32.xlu0 %v1432, 124
      %v1436 = vpop.permute.xlu0 %1435
      %v1439 = vadd.f32 %v1367, %v1434
      %v1440 = vadd.f32 %v1368, %v1436
      %s1441 = sld [smem:[#allocation5 + $0x3d]]
      %v1442 = vstv %s1441
      %v1443 = vmul.f32 %v1442, %v1251
      %v1444 = vmul.f32 %v1442, %v1252
      %v1445 = vmul.f32 %v1442, %v1253
      %v1449 = vrot.slane %v1443, 1
      %v1450 = vrot.slane %v1444, 1
      %v1451 = vsel %vm388, %v1449, %v1450
      %v1452 = vrot.slane %v1445, 1
      %v1453 = vsel %vm388, %v1450, %v1452
      %1454 = vrot.lane.b32.xlu0 %v1451, 124
      %v1455 = vpop.permute.xlu0 %1454
      %1456 = vrot.lane.b32.xlu0 %v1453, 124
      %v1457 = vpop.permute.xlu0 %1456
      %v1460 = vadd.f32 %v1384, %v1455
      %v1461 = vadd.f32 %v1385, %v1457
      %s1462 = sld [smem:[#allocation5 + $0x3e]]
      %v1463 = vstv %s1462
      %v1464 = vmul.f32 %v1463, %v1251
      %v1465 = vmul.f32 %v1463, %v1252
      %v1466 = vmul.f32 %v1463, %v1253
      %v1470 = vrot.slane %v1464, 1
      %v1471 = vrot.slane %v1465, 1
      %v1472 = vsel %vm388, %v1470, %v1471
      %v1473 = vrot.slane %v1466, 1
      %v1474 = vsel %vm388, %v1471, %v1473
      %1475 = vrot.lane.b32.xlu0 %v1472, 124
      %v1476 = vpop.permute.xlu0 %1475
      %1477 = vrot.lane.b32.xlu0 %v1474, 124
      %v1478 = vpop.permute.xlu0 %1477
      %v1481 = vadd.f32 %v1401, %v1476
      %v1482 = vadd.f32 %v1402, %v1478
      %s1483 = sld [smem:[#allocation5 + $0x3f]]
      %v1484 = vstv %s1483
      %v1485 = vmul.f32 %v1484, %v1251
      %v1486 = vmul.f32 %v1484, %v1252
      %v1487 = vmul.f32 %v1484, %v1253
      %v1491 = vrot.slane %v1485, 2
      %v1492 = vrot.slane %v1486, 2
      %v1493 = vsel %vm536, %v1491, %v1492
      %v1494 = vrot.slane %v1487, 2
      %v1495 = vsel %vm536, %v1492, %v1494
      %1496 = vrot.lane.b32.xlu0 %v1493, 3
      %v1497 = vpop.permute.xlu0 %1496
      %1498 = vrot.lane.b32.xlu0 %v1495, 3
      %v1499 = vpop.permute.xlu0 %1498
      %v1502 = vadd.f32 %v1418, %v1497
      %v1503 = vadd.f32 %v1419, %v1499
      %s1504 = sld [smem:[#allocation5 + $0x40]]
      %v1505 = vstv %s1504
      %v1506 = vmul.f32 %v1505, %v1251
      %v1507 = vmul.f32 %v1505, %v1252
      %v1508 = vmul.f32 %v1505, %v1253
      %v1512 = vrot.slane %v1506, 2
      %v1513 = vrot.slane %v1507, 2
      %v1514 = vsel %vm536, %v1512, %v1513
      %v1515 = vrot.slane %v1508, 2
      %v1516 = vsel %vm536, %v1513, %v1515
      %1517 = vrot.lane.b32.xlu0 %v1514, 127
      %v1518 = vpop.permute.xlu0 %1517
      %1519 = vrot.lane.b32.xlu0 %v1516, 127
      %v1520 = vpop.permute.xlu0 %1519
      %v1523 = vadd.f32 %v1439, %v1518
      %v1524 = vadd.f32 %v1440, %v1520
      %s1525 = sld [smem:[#allocation5 + $0x41]]
      %v1526 = vstv %s1525
      %v1527 = vmul.f32 %v1526, %v1251
      %v1528 = vmul.f32 %v1526, %v1252
      %v1529 = vmul.f32 %v1526, %v1253
      %v1533 = vrot.slane %v1527, 2
      %v1534 = vrot.slane %v1528, 2
      %v1535 = vsel %vm536, %v1533, %v1534
      %v1536 = vrot.slane %v1529, 2
      %v1537 = vsel %vm536, %v1534, %v1536
      %1538 = vrot.lane.b32.xlu0 %v1535, 127
      %v1539 = vpop.permute.xlu0 %1538
      %1540 = vrot.lane.b32.xlu0 %v1537, 127
      %v1541 = vpop.permute.xlu0 %1540
      %v1544 = vadd.f32 %v1460, %v1539
      %v1545 = vadd.f32 %v1461, %v1541
      %s1546 = sld [smem:[#allocation5 + $0x42]]
      %v1547 = vstv %s1546
      %v1548 = vmul.f32 %v1547, %v1251
      %v1549 = vmul.f32 %v1547, %v1252
      %v1550 = vmul.f32 %v1547, %v1253
      %v1554 = vrot.slane %v1548, 2
      %v1555 = vrot.slane %v1549, 2
      %v1556 = vsel %vm536, %v1554, %v1555
      %v1557 = vrot.slane %v1550, 2
      %v1558 = vsel %vm536, %v1555, %v1557
      %1559 = vrot.lane.b32.xlu0 %v1556, 127
      %v1560 = vpop.permute.xlu0 %1559
      %1561 = vrot.lane.b32.xlu0 %v1558, 127
      %v1562 = vpop.permute.xlu0 %1561
      %v1565 = vadd.f32 %v1481, %v1560
      %v1566 = vadd.f32 %v1482, %v1562
      %s1567 = sld [smem:[#allocation5 + $0x43]]
      %v1568 = vstv %s1567
      %v1569 = vmul.f32 %v1568, %v1251
      %v1570 = vmul.f32 %v1568, %v1252
      %v1571 = vmul.f32 %v1568, %v1253
      %v1575 = vrot.slane %v1569, 2
      %v1576 = vrot.slane %v1570, 2
      %v1577 = vsel %vm536, %v1575, %v1576
      %v1578 = vrot.slane %v1571, 2
      %v1579 = vsel %vm536, %v1576, %v1578
      %1580 = vrot.lane.b32.xlu0 %v1577, 127
      %v1581 = vpop.permute.xlu0 %1580
      %1582 = vrot.lane.b32.xlu0 %v1579, 127
      %v1583 = vpop.permute.xlu0 %1582
      %v1586 = vadd.f32 %v1502, %v1581
      %v1587 = vadd.f32 %v1503, %v1583
      %s1588 = sld [smem:[#allocation5 + $0x44]]
      %v1589 = vstv %s1588
      %v1590 = vmul.f32 %v1589, %v1251
      %v1591 = vmul.f32 %v1589, %v1252
      %v1592 = vmul.f32 %v1589, %v1253
      %v1596 = vrot.slane %v1590, 2
      %v1597 = vrot.slane %v1591, 2
      %v1598 = vsel %vm536, %v1596, %v1597
      %v1599 = vrot.slane %v1592, 2
      %v1600 = vsel %vm536, %v1597, %v1599
      %1601 = vrot.lane.b32.xlu0 %v1598, 123
      %v1602 = vpop.permute.xlu0 %1601
      %1603 = vrot.lane.b32.xlu0 %v1600, 123
      %v1604 = vpop.permute.xlu0 %1603
      %v1607 = vadd.f32 %v1523, %v1602
      %v1608 = vadd.f32 %v1524, %v1604
      %s1609 = sld [smem:[#allocation5 + $0x45]]
      %v1610 = vstv %s1609
      %v1611 = vmul.f32 %v1610, %v1251
      %v1612 = vmul.f32 %v1610, %v1252
      %v1613 = vmul.f32 %v1610, %v1253
      %v1617 = vrot.slane %v1611, 2
      %v1618 = vrot.slane %v1612, 2
      %v1619 = vsel %vm536, %v1617, %v1618
      %v1620 = vrot.slane %v1613, 2
      %v1621 = vsel %vm536, %v1618, %v1620
      %1622 = vrot.lane.b32.xlu0 %v1619, 123
      %v1623 = vpop.permute.xlu0 %1622
      %1624 = vrot.lane.b32.xlu0 %v1621, 123
      %v1625 = vpop.permute.xlu0 %1624
      %v1628 = vadd.f32 %v1544, %v1623
      %v1629 = vadd.f32 %v1545, %v1625
      %s1630 = sld [smem:[#allocation5 + $0x46]]
      %v1631 = vstv %s1630
      %v1632 = vmul.f32 %v1631, %v1251
      %v1633 = vmul.f32 %v1631, %v1252
      %v1634 = vmul.f32 %v1631, %v1253
      %v1638 = vrot.slane %v1632, 3
      %v1639 = vrot.slane %v1633, 3
      %v1640 = vsel %vm684, %v1638, %v1639
      %v1641 = vrot.slane %v1634, 3
      %v1642 = vsel %vm684, %v1639, %v1641
      %1643 = vrot.lane.b32.xlu0 %v1640, 2
      %v1644 = vpop.permute.xlu0 %1643
      %1645 = vrot.lane.b32.xlu0 %v1642, 2
      %v1646 = vpop.permute.xlu0 %1645
      %v1649 = vadd.f32 %v1565, %v1644
      %v1650 = vadd.f32 %v1566, %v1646
      %s1651 = sld [smem:[#allocation5 + $0x47]]
      %v1652 = vstv %s1651
      %v1653 = vmul.f32 %v1652, %v1251
      %v1654 = vmul.f32 %v1652, %v1252
      %v1655 = vmul.f32 %v1652, %v1253
      %v1659 = vrot.slane %v1653, 3
      %v1660 = vrot.slane %v1654, 3
      %v1661 = vsel %vm684, %v1659, %v1660
      %v1662 = vrot.slane %v1655, 3
      %v1663 = vsel %vm684, %v1660, %v1662
      %1664 = vrot.lane.b32.xlu0 %v1661, 2
      %v1665 = vpop.permute.xlu0 %1664
      %1666 = vrot.lane.b32.xlu0 %v1663, 2
      %v1667 = vpop.permute.xlu0 %1666
      %v1670 = vadd.f32 %v1586, %v1665
      %v1671 = vadd.f32 %v1587, %v1667
      %s1672 = sld [smem:[#allocation5 + $0x48]]
      %v1673 = vstv %s1672
      %v1674 = vmul.f32 %v1673, %v1251
      %v1675 = vmul.f32 %v1673, %v1252
      %v1676 = vmul.f32 %v1673, %v1253
      %v1680 = vrot.slane %v1674, 3
      %v1681 = vrot.slane %v1675, 3
      %v1682 = vsel %vm684, %v1680, %v1681
      %v1683 = vrot.slane %v1676, 3
      %v1684 = vsel %vm684, %v1681, %v1683
      %1685 = vrot.lane.b32.xlu0 %v1682, 126
      %v1686 = vpop.permute.xlu0 %1685
      %1687 = vrot.lane.b32.xlu0 %v1684, 126
      %v1688 = vpop.permute.xlu0 %1687
      %v1691 = vadd.f32 %v1607, %v1686
      %v1692 = vadd.f32 %v1608, %v1688
      %s1693 = sld [smem:[#allocation5 + $0x49]]
      %v1694 = vstv %s1693
      %v1695 = vmul.f32 %v1694, %v1251
      %v1696 = vmul.f32 %v1694, %v1252
      %v1697 = vmul.f32 %v1694, %v1253
      %v1701 = vrot.slane %v1695, 3
      %v1702 = vrot.slane %v1696, 3
      %v1703 = vsel %vm684, %v1701, %v1702
      %v1704 = vrot.slane %v1697, 3
      %v1705 = vsel %vm684, %v1702, %v1704
      %1706 = vrot.lane.b32.xlu0 %v1703, 126
      %v1707 = vpop.permute.xlu0 %1706
      %1708 = vrot.lane.b32.xlu0 %v1705, 126
      %v1709 = vpop.permute.xlu0 %1708
      %v1712 = vadd.f32 %v1628, %v1707
      %v1713 = vadd.f32 %v1629, %v1709
      %s1714 = sld [smem:[#allocation5 + $0x4a]]
      %v1715 = vstv %s1714
      %v1716 = vmul.f32 %v1715, %v1251
      %v1717 = vmul.f32 %v1715, %v1252
      %v1718 = vmul.f32 %v1715, %v1253
      %v1722 = vrot.slane %v1716, 3
      %v1723 = vrot.slane %v1717, 3
      %v1724 = vsel %vm684, %v1722, %v1723
      %v1725 = vrot.slane %v1718, 3
      %v1726 = vsel %vm684, %v1723, %v1725
      %1727 = vrot.lane.b32.xlu0 %v1724, 126
      %v1728 = vpop.permute.xlu0 %1727
      %1729 = vrot.lane.b32.xlu0 %v1726, 126
      %v1730 = vpop.permute.xlu0 %1729
      %v1733 = vadd.f32 %v1649, %v1728
      %v1734 = vadd.f32 %v1650, %v1730
      %s1735 = sld [smem:[#allocation5 + $0x4b]]
      %v1736 = vstv %s1735
      %v1737 = vmul.f32 %v1736, %v1251
      %v1738 = vmul.f32 %v1736, %v1252
      %v1739 = vmul.f32 %v1736, %v1253
      %v1743 = vrot.slane %v1737, 3
      %v1744 = vrot.slane %v1738, 3
      %v1745 = vsel %vm684, %v1743, %v1744
      %v1746 = vrot.slane %v1739, 3
      %v1747 = vsel %vm684, %v1744, %v1746
      %1748 = vrot.lane.b32.xlu0 %v1745, 126
      %v1749 = vpop.permute.xlu0 %1748
      %1750 = vrot.lane.b32.xlu0 %v1747, 126
      %v1751 = vpop.permute.xlu0 %1750
      %v1754 = vadd.f32 %v1670, %v1749
      %v1755 = vadd.f32 %v1671, %v1751
      %s1756 = sld [smem:[#allocation5 + $0x4c]]
      %v1757 = vstv %s1756
      %v1758 = vmul.f32 %v1757, %v1251
      %v1759 = vmul.f32 %v1757, %v1252
      %v1760 = vmul.f32 %v1757, %v1253
      %v1764 = vrot.slane %v1758, 3
      %v1765 = vrot.slane %v1759, 3
      %v1766 = vsel %vm684, %v1764, %v1765
      %v1767 = vrot.slane %v1760, 3
      %v1768 = vsel %vm684, %v1765, %v1767
      %1769 = vrot.lane.b32.xlu0 %v1766, 122
      %v1770 = vpop.permute.xlu0 %1769
      %1771 = vrot.lane.b32.xlu0 %v1768, 122
      %v1772 = vpop.permute.xlu0 %1771
      %v1775 = vadd.f32 %v1691, %v1770
      %v1776 = vadd.f32 %v1692, %v1772
      %s1777 = sld [smem:[#allocation5 + $0x4d]]
      %v1778 = vstv %s1777
      %v1779 = vmul.f32 %v1778, %v1251
      %v1780 = vmul.f32 %v1778, %v1252
      %v1781 = vmul.f32 %v1778, %v1253
      %v1785 = vrot.slane %v1779, 4
      %v1786 = vrot.slane %v1780, 4
      %v1787 = vsel %vm133, %v1785, %v1786
      %v1788 = vrot.slane %v1781, 4
      %v1789 = vsel %vm133, %v1786, %v1788
      %1790 = vrot.lane.b32.xlu0 %v1787, 1
      %v1791 = vpop.permute.xlu0 %1790
      %1792 = vrot.lane.b32.xlu0 %v1789, 1
      %v1793 = vpop.permute.xlu0 %1792
      %v1796 = vadd.f32 %v1712, %v1791
      %v1797 = vadd.f32 %v1713, %v1793
      %s1798 = sld [smem:[#allocation5 + $0x4e]]
      %v1799 = vstv %s1798
      %v1800 = vmul.f32 %v1799, %v1251
      %v1801 = vmul.f32 %v1799, %v1252
      %v1802 = vmul.f32 %v1799, %v1253
      %v1806 = vrot.slane %v1800, 4
      %v1807 = vrot.slane %v1801, 4
      %v1808 = vsel %vm133, %v1806, %v1807
      %v1809 = vrot.slane %v1802, 4
      %v1810 = vsel %vm133, %v1807, %v1809
      %1811 = vrot.lane.b32.xlu0 %v1808, 1
      %v1812 = vpop.permute.xlu0 %1811
      %1813 = vrot.lane.b32.xlu0 %v1810, 1
      %v1814 = vpop.permute.xlu0 %1813
      %v1817 = vadd.f32 %v1733, %v1812
      %v1818 = vadd.f32 %v1734, %v1814
      %s1819 = sld [smem:[#allocation5 + $0x4f]]
      %v1820 = vstv %s1819
      %v1821 = vmul.f32 %v1820, %v1251
      %v1822 = vmul.f32 %v1820, %v1252
      %v1823 = vmul.f32 %v1820, %v1253
      %v1827 = vrot.slane %v1821, 4
      %v1828 = vrot.slane %v1822, 4
      %v1829 = vsel %vm133, %v1827, %v1828
      %v1830 = vrot.slane %v1823, 4
      %v1831 = vsel %vm133, %v1828, %v1830
      %1832 = vrot.lane.b32.xlu0 %v1829, 1
      %v1833 = vpop.permute.xlu0 %1832
      %1834 = vrot.lane.b32.xlu0 %v1831, 1
      %v1835 = vpop.permute.xlu0 %1834
      %v1838 = vadd.f32 %v1754, %v1833
      %v1839 = vadd.f32 %v1755, %v1835
      %s1840 = sld [smem:[#allocation5 + $0x50]]
      %v1841 = vstv %s1840
      %v1842 = vmul.f32 %v1841, %v1251
      %v1843 = vmul.f32 %v1841, %v1252
      %v1844 = vmul.f32 %v1841, %v1253
      %v1848 = vrot.slane %v1842, 4
      %v1849 = vrot.slane %v1843, 4
      %v1850 = vsel %vm133, %v1848, %v1849
      %v1851 = vrot.slane %v1844, 4
      %v1852 = vsel %vm133, %v1849, %v1851
      %1853 = vrot.lane.b32.xlu0 %v1850, 125
      %v1854 = vpop.permute.xlu0 %1853
      %1855 = vrot.lane.b32.xlu0 %v1852, 125
      %v1856 = vpop.permute.xlu0 %1855
      %v1859 = vadd.f32 %v1775, %v1854
      %v1860 = vadd.f32 %v1776, %v1856
      %s1861 = sld [smem:[#allocation5 + $0x51]]
      %v1862 = vstv %s1861
      %v1863 = vmul.f32 %v1862, %v1251
      %v1864 = vmul.f32 %v1862, %v1252
      %v1865 = vmul.f32 %v1862, %v1253
      %v1869 = vrot.slane %v1863, 4
      %v1870 = vrot.slane %v1864, 4
      %v1871 = vsel %vm133, %v1869, %v1870
      %v1872 = vrot.slane %v1865, 4
      %v1873 = vsel %vm133, %v1870, %v1872
      %1874 = vrot.lane.b32.xlu0 %v1871, 125
      %v1875 = vpop.permute.xlu0 %1874
      %1876 = vrot.lane.b32.xlu0 %v1873, 125
      %v1877 = vpop.permute.xlu0 %1876
      %v1880 = vadd.f32 %v1796, %v1875
      %v1881 = vadd.f32 %v1797, %v1877
      %s1882 = sld [smem:[#allocation5 + $0x52]]
      %v1883 = vstv %s1882
      %v1884 = vmul.f32 %v1883, %v1251
      %v1885 = vmul.f32 %v1883, %v1252
      %v1886 = vmul.f32 %v1883, %v1253
      %v1890 = vrot.slane %v1884, 4
      %v1891 = vrot.slane %v1885, 4
      %v1892 = vsel %vm133, %v1890, %v1891
      %v1893 = vrot.slane %v1886, 4
      %v1894 = vsel %vm133, %v1891, %v1893
      %1895 = vrot.lane.b32.xlu0 %v1892, 125
      %v1896 = vpop.permute.xlu0 %1895
      %1897 = vrot.lane.b32.xlu0 %v1894, 125
      %v1898 = vpop.permute.xlu0 %1897
      %v1901 = vadd.f32 %v1817, %v1896
      %v1902 = vadd.f32 %v1818, %v1898
      %s1903 = sld [smem:[#allocation5 + $0x53]]
      %v1904 = vstv %s1903
      %v1905 = vmul.f32 %v1904, %v1251
      %v1906 = vmul.f32 %v1904, %v1252
      %v1907 = vmul.f32 %v1904, %v1253
      %v1911 = vrot.slane %v1905, 4
      %v1912 = vrot.slane %v1906, 4
      %v1913 = vsel %vm133, %v1911, %v1912
      %v1914 = vrot.slane %v1907, 4
      %v1915 = vsel %vm133, %v1912, %v1914
      %1916 = vrot.lane.b32.xlu0 %v1913, 125
      %v1917 = vpop.permute.xlu0 %1916
      %1918 = vrot.lane.b32.xlu0 %v1915, 125
      %v1919 = vpop.permute.xlu0 %1918
      %v1922 = vadd.f32 %v1838, %v1917
      %v1923 = vadd.f32 %v1839, %v1919
      %s1924 = sld [smem:[#allocation5 + $0x54]]
      %v1925 = vstv %s1924
      %v1926 = vmul.f32 %v1925, %v1251
      %v1927 = vmul.f32 %v1925, %v1252
      %v1928 = vmul.f32 %v1925, %v1253
      %v1932 = vrot.slane %v1926, 5
      %v1933 = vrot.slane %v1927, 5
      %v1934 = vsel %vm963, %v1932, %v1933
      %v1935 = vrot.slane %v1928, 5
      %v1936 = vsel %vm963, %v1933, %v1935
      %v1939 = vadd.f32 %v1859, %v1934
      %v1940 = vadd.f32 %v1860, %v1936
      %s1941 = sld [smem:[#allocation5 + $0x55]]
      %v1942 = vstv %s1941
      %v1943 = vmul.f32 %v1942, %v1251
      %v1944 = vmul.f32 %v1942, %v1252
      %v1945 = vmul.f32 %v1942, %v1253
      %v1949 = vrot.slane %v1943, 5
      %v1950 = vrot.slane %v1944, 5
      %v1951 = vsel %vm963, %v1949, %v1950
      %v1952 = vrot.slane %v1945, 5
      %v1953 = vsel %vm963, %v1950, %v1952
      %v1956 = vadd.f32 %v1880, %v1951
      %v1957 = vadd.f32 %v1881, %v1953
      %s1958 = sld [smem:[#allocation5 + $0x56]]
      %v1959 = vstv %s1958
      %v1960 = vmul.f32 %v1959, %v1251
      %v1961 = vmul.f32 %v1959, %v1252
      %v1962 = vmul.f32 %v1959, %v1253
      %v1966 = vrot.slane %v1960, 5
      %v1967 = vrot.slane %v1961, 5
      %v1968 = vsel %vm963, %v1966, %v1967
      %v1969 = vrot.slane %v1962, 5
      %v1970 = vsel %vm963, %v1967, %v1969
      %v1973 = vadd.f32 %v1901, %v1968
      %v1974 = vadd.f32 %v1902, %v1970
      %s1975 = sld [smem:[#allocation5 + $0x57]]
      %v1976 = vstv %s1975
      %v1977 = vmul.f32 %v1976, %v1251
      %v1978 = vmul.f32 %v1976, %v1252
      %v1979 = vmul.f32 %v1976, %v1253
      %v1983 = vrot.slane %v1977, 5
      %v1984 = vrot.slane %v1978, 5
      %v1985 = vsel %vm963, %v1983, %v1984
      %v1986 = vrot.slane %v1979, 5
      %v1987 = vsel %vm963, %v1984, %v1986
      %v1990 = vadd.f32 %v1922, %v1985
      %v1991 = vadd.f32 %v1923, %v1987
      %s1992 = sld [smem:[#allocation5 + $0x58]]
      %v1993 = vstv %s1992
      %v1994 = vmul.f32 %v1993, %v1251
      %v1995 = vmul.f32 %v1993, %v1252
      %v1996 = vmul.f32 %v1993, %v1253
      %v2000 = vrot.slane %v1994, 5
      %v2001 = vrot.slane %v1995, 5
      %v2002 = vsel %vm963, %v2000, %v2001
      %v2003 = vrot.slane %v1996, 5
      %v2004 = vsel %vm963, %v2001, %v2003
      %2005 = vrot.lane.b32.xlu0 %v2002, 124
      %v2006 = vpop.permute.xlu0 %2005
      %2007 = vrot.lane.b32.xlu0 %v2004, 124
      %v2008 = vpop.permute.xlu0 %2007
      %v2011 = vadd.f32 %v1939, %v2006
      %v2012 = vadd.f32 %v1940, %v2008
      %s2013 = sld [smem:[#allocation5 + $0x59]]
      %v2014 = vstv %s2013
      %v2015 = vmul.f32 %v2014, %v1251
      %v2016 = vmul.f32 %v2014, %v1252
      %v2017 = vmul.f32 %v2014, %v1253
      %v2021 = vrot.slane %v2015, 5
      %v2022 = vrot.slane %v2016, 5
      %v2023 = vsel %vm963, %v2021, %v2022
      %v2024 = vrot.slane %v2017, 5
      %v2025 = vsel %vm963, %v2022, %v2024
      %2026 = vrot.lane.b32.xlu0 %v2023, 124
      %v2027 = vpop.permute.xlu0 %2026
      %2028 = vrot.lane.b32.xlu0 %v2025, 124
      %v2029 = vpop.permute.xlu0 %2028
      %v2032 = vadd.f32 %v1956, %v2027
      %v2033 = vadd.f32 %v1957, %v2029
      %s2034 = sld [smem:[#allocation5 + $0x5a]]
      %v2035 = vstv %s2034
      %v2036 = vmul.f32 %v2035, %v1251
      %v2037 = vmul.f32 %v2035, %v1252
      %v2038 = vmul.f32 %v2035, %v1253
      %v2042 = vrot.slane %v2036, 5
      %v2043 = vrot.slane %v2037, 5
      %v2044 = vsel %vm963, %v2042, %v2043
      %v2045 = vrot.slane %v2038, 5
      %v2046 = vsel %vm963, %v2043, %v2045
      %2047 = vrot.lane.b32.xlu0 %v2044, 124
      %v2048 = vpop.permute.xlu0 %2047
      %2049 = vrot.lane.b32.xlu0 %v2046, 124
      %v2050 = vpop.permute.xlu0 %2049
      %v2053 = vadd.f32 %v1973, %v2048
      %v2054 = vadd.f32 %v1974, %v2050
      %s2055 = sld [smem:[#allocation5 + $0x5b]]
      %v2056 = vstv %s2055
      %v2057 = vmul.f32 %v2056, %v1251
      %v2058 = vmul.f32 %v2056, %v1252
      %v2059 = vmul.f32 %v2056, %v1253
      %v2063 = vrot.slane %v2057, 6
      %v2064 = vrot.slane %v2058, 6
      %v2065 = vsel %vm1111, %v2063, %v2064
      %v2066 = vrot.slane %v2059, 6
      %v2067 = vsel %vm1111, %v2064, %v2066
      %2068 = vrot.lane.b32.xlu0 %v2065, 3
      %v2069 = vpop.permute.xlu0 %2068
      %2070 = vrot.lane.b32.xlu0 %v2067, 3
      %v2071 = vpop.permute.xlu0 %2070
      %v2074 = vadd.f32 %v1990, %v2069
      %v2075 = vadd.f32 %v1991, %v2071
      %s2076 = sld [smem:[#allocation5 + $0x5c]]
      %v2077 = vstv %s2076
      %v2078 = vmul.f32 %v2077, %v1251
      %v2079 = vmul.f32 %v2077, %v1252
      %v2080 = vmul.f32 %v2077, %v1253
      %v2084 = vrot.slane %v2078, 6
      %v2085 = vrot.slane %v2079, 6
      %v2086 = vsel %vm1111, %v2084, %v2085
      %v2087 = vrot.slane %v2080, 6
      %v2088 = vsel %vm1111, %v2085, %v2087
      %2089 = vrot.lane.b32.xlu0 %v2086, 127
      %v2090 = vpop.permute.xlu0 %2089
      %2091 = vrot.lane.b32.xlu0 %v2088, 127
      %v2092 = vpop.permute.xlu0 %2091
      %v2095 = vadd.f32 %v2011, %v2090
      %v2096 = vadd.f32 %v2012, %v2092
      %s2097 = sld [smem:[#allocation5 + $0x5d]]
      %v2098 = vstv %s2097
      %v2099 = vmul.f32 %v2098, %v1251
      %v2100 = vmul.f32 %v2098, %v1252
      %v2101 = vmul.f32 %v2098, %v1253
      %v2105 = vrot.slane %v2099, 6
      %v2106 = vrot.slane %v2100, 6
      %v2107 = vsel %vm1111, %v2105, %v2106
      %v2108 = vrot.slane %v2101, 6
      %v2109 = vsel %vm1111, %v2106, %v2108
      %2110 = vrot.lane.b32.xlu0 %v2107, 127
      %v2111 = vpop.permute.xlu0 %2110
      %2112 = vrot.lane.b32.xlu0 %v2109, 127
      %v2113 = vpop.permute.xlu0 %2112
      %v2116 = vadd.f32 %v2032, %v2111
      %v2117 = vadd.f32 %v2033, %v2113
      %s2118 = sld [smem:[#allocation5 + $0x5e]]
      %v2119 = vstv %s2118
      %v2120 = vmul.f32 %v2119, %v1251
      %v2121 = vmul.f32 %v2119, %v1252
      %v2122 = vmul.f32 %v2119, %v1253
      %v2126 = vrot.slane %v2120, 6
      %v2127 = vrot.slane %v2121, 6
      %v2128 = vsel %vm1111, %v2126, %v2127
      %v2129 = vrot.slane %v2122, 6
      %v2130 = vsel %vm1111, %v2127, %v2129
      %2131 = vrot.lane.b32.xlu0 %v2128, 127
      %v2132 = vpop.permute.xlu0 %2131
      %2133 = vrot.lane.b32.xlu0 %v2130, 127
      %v2134 = vpop.permute.xlu0 %2133
      %v2137 = vadd.f32 %v2053, %v2132
      %v2138 = vadd.f32 %v2054, %v2134
      %s2139 = sld [smem:[#allocation5 + $0x5f]]
      %v2140 = vstv %s2139
      %v2141 = vmul.f32 %v2140, %v1251
      %v2142 = vmul.f32 %v2140, %v1252
      %v2143 = vmul.f32 %v2140, %v1253
      %v2147 = vrot.slane %v2141, 6
      %v2148 = vrot.slane %v2142, 6
      %v2149 = vsel %vm1111, %v2147, %v2148
      %v2150 = vrot.slane %v2143, 6
      %v2151 = vsel %vm1111, %v2148, %v2150
      %2152 = vrot.lane.b32.xlu0 %v2149, 127
      %v2153 = vpop.permute.xlu0 %2152
      %2154 = vrot.lane.b32.xlu0 %v2151, 127
      %v2155 = vpop.permute.xlu0 %2154
      %v2158 = vadd.f32 %v2074, %v2153
      %v2159 = vadd.f32 %v2075, %v2155
      %s2160 = sld [smem:[#allocation5 + $0x60]]
      %v2161 = vstv %s2160
      %v2162 = vmul.f32 %v2161, %v1251
      %v2163 = vmul.f32 %v2161, %v1252
      %v2164 = vmul.f32 %v2161, %v1253
      %v2168 = vrot.slane %v2162, 6
      %v2169 = vrot.slane %v2163, 6
      %v2170 = vsel %vm1111, %v2168, %v2169
      %v2171 = vrot.slane %v2164, 6
      %v2172 = vsel %vm1111, %v2169, %v2171
      %2173 = vrot.lane.b32.xlu0 %v2170, 123
      %v2174 = vpop.permute.xlu0 %2173
      %2175 = vrot.lane.b32.xlu0 %v2172, 123
      %v2176 = vpop.permute.xlu0 %2175
      %v2179 = vadd.f32 %v2095, %v2174
      %v2180 = vadd.f32 %v2096, %v2176
      %s2181 = sld [smem:[#allocation5 + $0x61]]
      %v2182 = vstv %s2181
      %v2183 = vmul.f32 %v2182, %v1251
      %v2184 = vmul.f32 %v2182, %v1252
      %v2185 = vmul.f32 %v2182, %v1253
      %v2189 = vrot.slane %v2183, 6
      %v2190 = vrot.slane %v2184, 6
      %v2191 = vsel %vm1111, %v2189, %v2190
      %v2192 = vrot.slane %v2185, 6
      %v2193 = vsel %vm1111, %v2190, %v2192
      %2194 = vrot.lane.b32.xlu0 %v2191, 123
      %v2195 = vpop.permute.xlu0 %2194
      %2196 = vrot.lane.b32.xlu0 %v2193, 123
      %v2197 = vpop.permute.xlu0 %2196
      %v2200 = vadd.f32 %v2116, %v2195
      %v2201 = vadd.f32 %v2117, %v2197
      %2204 = vrot.lane.b32.xlu0 %v2200, 127
      %v2205 = vpop.permute.xlu0 %2204
      %2206 = vrot.lane.b32.xlu0 %v2201, 127
      %v2207 = vpop.permute.xlu0 %2206
      %v2210 = vadd.f32 %v2179, %v2205
      %v2211 = vadd.f32 %v2180, %v2207
      %2214 = vrot.lane.b32.xlu0 %v2158, 127
      %v2215 = vpop.permute.xlu0 %2214
      %2216 = vrot.lane.b32.xlu0 %v2159, 127
      %v2217 = vpop.permute.xlu0 %2216
      %v2220 = vadd.f32 %v2137, %v2215
      %v2221 = vadd.f32 %v2138, %v2217
      %2224 = vrot.lane.b32.xlu0 %v2220, 126
      %v2225 = vpop.permute.xlu0 %2224
      %2226 = vrot.lane.b32.xlu0 %v2221, 126
      %v2227 = vpop.permute.xlu0 %2226
      %v2230 = vadd.f32 %v2210, %v2225
      %v2231 = vadd.f32 %v2211, %v2227
      %s2232 = sld [smem:[#allocation5 + $0x62]]
      %v2233 = vstv %s2232
      %v2234 = vadd.f32 %v2230, %v2233
      %v2235 = vadd.f32 %v2231, %v2233
      %v2236 = vsub.f32 0.0, %v2234
      %v2237 = vsub.f32 0.0, %v2235
      %v2238 = vmul.f32 %v2236, 1.442695
      %v2239 = vpow.pop %v2238
      %v2240 = vmul.f32 %v2237, 1.442695
      %v2241 = vpow.pop %v2240
      %v2242 = vadd.f32 %v2239, 1.0
      %v2243 = vadd.f32 %v2241, 1.0
      %v2244 = vrcp.pop %v2242
      %v2245 = vmul.f32 %v2242, %v2244
      %v2246 = vsub.f32 1.0, %v2245
      %v2247 = vmul.f32 %v2244, %v2246
      %v2248 = vadd.f32 %v2244, %v2247
      %vm2249 = vweird.f32 %v2242
      %vm2250 = vweird.f32 %v2244
      %vm2251 = vmor %vm2249, %vm2250
      %v2252 = vsel %vm2251, %v2244, %v2248
      %v2253 = vand.u32 2147483647, %v2242
      %vm2254 = vcmp.eq.f32.partialorder %v2253, 8.507059e+37
      %v2255 = vand.u32 %v2242, 2147483648
      %v2256 = vor.u32 1.1754944e-38, %v2255
      %v2257 = vsel %vm2254, %v2256, %v2252
      %v2258 = vrcp.pop %v2243
      %v2259 = vmul.f32 %v2243, %v2258
      %v2260 = vsub.f32 1.0, %v2259
      %v2261 = vmul.f32 %v2258, %v2260
      %v2262 = vadd.f32 %v2258, %v2261
      %vm2263 = vweird.f32 %v2243
      %vm2264 = vweird.f32 %v2258
      %vm2265 = vmor %vm2263, %vm2264
      %v2266 = vsel %vm2265, %v2258, %v2262
      %v2267 = vand.u32 2147483647, %v2243
      %vm2268 = vcmp.eq.f32.partialorder %v2267, 8.507059e+37
      %v2269 = vand.u32 %v2243, 2147483648
      %v2270 = vor.u32 1.1754944e-38, %v2269
      %v2271 = vsel %vm2268, %v2270, %v2266
      %v2272 = vlaneseq
      %vm2273 = vcmp.ge.s32.totalorder %v2272, 0
      %vm2274 = vcmp.lt.s32.totalorder %v2272, 16
      %vm2275 = vmand %vm2273, %vm2274
      %2276 = vst.msk [vmem:[#allocation3] sm:$0x1] %vm2275, %v2257
      %2278 = vst [vmem:[#allocation1] sm:$0xff] %v2257
      %s2279 = scalar_lea.vmem [#allocation1], 1
      %v2280 = vld [vmem:[%s2279] ss:$9 sm:$0xff]
      %2281 = vrot.lane.b32.xlu0 %v2280, 16
      %v2282 = vpop.permute.xlu0 %2281
      %vm2284 = vcmp.ge.s32.totalorder %v2272, 16
      %vm2285 = vcmp.lt.s32.totalorder %v2272, 32
      %vm2286 = vmand %vm2284, %vm2285
      %2287 = vst.msk [vmem:[#allocation3] sm:$0x1] %vm2286, %v2282
      %2288 = vst [vmem:[#allocation1] sm:$0xff] %v2257
      %s2289 = scalar_lea.vmem [#allocation1], 2
      %v2290 = vld [vmem:[%s2289] ss:$9 sm:$0xff]
      %2291 = vrot.lane.b32.xlu0 %v2290, 32
      %v2292 = vpop.permute.xlu0 %2291
      %vm2294 = vcmp.ge.s32.totalorder %v2272, 32
      %vm2295 = vcmp.lt.s32.totalorder %v2272, 48
      %vm2296 = vmand %vm2294, %vm2295
      %2297 = vst.msk [vmem:[#allocation3] sm:$0x1] %vm2296, %v2292
      %2298 = vst [vmem:[#allocation1] sm:$0xff] %v2257
      %s2299 = scalar_lea.vmem [#allocation1], 3
      %v2300 = vld [vmem:[%s2299] ss:$9 sm:$0xff]
      %2301 = vrot.lane.b32.xlu0 %v2300, 48
      %v2302 = vpop.permute.xlu0 %2301
      %vm2304 = vcmp.ge.s32.totalorder %v2272, 48
      %vm2305 = vcmp.lt.s32.totalorder %v2272, 64
      %vm2306 = vmand %vm2304, %vm2305
      %2307 = vst.msk [vmem:[#allocation3] sm:$0x1] %vm2306, %v2302
      %2308 = vst [vmem:[#allocation1] sm:$0xff] %v2257
      %s2309 = scalar_lea.vmem [#allocation1], 4
      %v2310 = vld [vmem:[%s2309] ss:$9 sm:$0xff]
      %2311 = vrot.lane.b32.xlu0 %v2310, 64
      %v2312 = vpop.permute.xlu0 %2311
      %vm2314 = vcmp.ge.s32.totalorder %v2272, 64
      %vm2315 = vcmp.lt.s32.totalorder %v2272, 80
      %vm2316 = vmand %vm2314, %vm2315
      %2317 = vst.msk [vmem:[#allocation3] sm:$0x1] %vm2316, %v2312
      %2318 = vst [vmem:[#allocation1] sm:$0xff] %v2257
      %s2319 = scalar_lea.vmem [#allocation1], 5
      %v2320 = vld [vmem:[%s2319] ss:$9 sm:$0xff]
      %2321 = vrot.lane.b32.xlu0 %v2320, 80
      %v2322 = vpop.permute.xlu0 %2321
      %vm2324 = vcmp.ge.s32.totalorder %v2272, 80
      %vm2325 = vcmp.lt.s32.totalorder %v2272, 96
      %vm2326 = vmand %vm2324, %vm2325
      %2327 = vst.msk [vmem:[#allocation3] sm:$0x1] %vm2326, %v2322
      %2328 = vst [vmem:[#allocation1] sm:$0xff] %v2257
      %s2329 = scalar_lea.vmem [#allocation1], 6
      %v2330 = vld [vmem:[%s2329] ss:$9 sm:$0xff]
      %2331 = vrot.lane.b32.xlu0 %v2330, 96
      %v2332 = vpop.permute.xlu0 %2331
      %vm2334 = vcmp.ge.s32.totalorder %v2272, 96
      %vm2335 = vcmp.lt.s32.totalorder %v2272, 112
      %vm2336 = vmand %vm2334, %vm2335
      %2337 = vst.msk [vmem:[#allocation3] sm:$0x1] %vm2336, %v2332
      %2338 = vst [vmem:[#allocation1] sm:$0xff] %v2257
      %s2339 = scalar_lea.vmem [#allocation1], 7
      %v2340 = vld [vmem:[%s2339] ss:$9 sm:$0xff]
      %2341 = vrot.lane.b32.xlu0 %v2340, 112
      %v2342 = vpop.permute.xlu0 %2341
      %vm2344 = vcmp.ge.s32.totalorder %v2272, 112
      %vm2345 = vcmp.lt.s32.totalorder %v2272, 128
      %vm2346 = vmand %vm2344, %vm2345
      %2347 = vst.msk [vmem:[#allocation3] sm:$0x1] %vm2346, %v2342
      %2348 = vst.msk [vmem:[#allocation3 + $0x1] sm:$0x1] %vm2275, %v2271
      %2350 = vst [vmem:[#allocation1] sm:$0xff] %v2271
      %s2351 = scalar_lea.vmem [#allocation1], 1
      %v2352 = vld [vmem:[%s2351] ss:$9 sm:$0xff]
      %2353 = vrot.lane.b32.xlu0 %v2352, 16
      %v2354 = vpop.permute.xlu0 %2353
      %2356 = vst.msk [vmem:[#allocation3 + $0x1] sm:$0x1] %vm2286, %v2354
      %2357 = vst [vmem:[#allocation1] sm:$0xff] %v2271
      %s2358 = scalar_lea.vmem [#allocation1], 2
      %v2359 = vld [vmem:[%s2358] ss:$9 sm:$0xff]
      %2360 = vrot.lane.b32.xlu0 %v2359, 32
      %v2361 = vpop.permute.xlu0 %2360
      %2363 = vst.msk [vmem:[#allocation3 + $0x1] sm:$0x1] %vm2296, %v2361
      %2364 = vst [vmem:[#allocation1] sm:$0xff] %v2271
      %s2365 = scalar_lea.vmem [#allocation1], 3
      %v2366 = vld [vmem:[%s2365] ss:$9 sm:$0xff]
      %2367 = vrot.lane.b32.xlu0 %v2366, 48
      %v2368 = vpop.permute.xlu0 %2367
      %2370 = vst.msk [vmem:[#allocation3 + $0x1] sm:$0x1] %vm2306, %v2368
      %2371 = vst [vmem:[#allocation1] sm:$0xff] %v2271
      %s2372 = scalar_lea.vmem [#allocation1], 4
      %v2373 = vld [vmem:[%s2372] ss:$9 sm:$0xff]
      %2374 = vrot.lane.b32.xlu0 %v2373, 64
      %v2375 = vpop.permute.xlu0 %2374
      %2377 = vst.msk [vmem:[#allocation3 + $0x1] sm:$0x1] %vm2316, %v2375
      %2378 = vst [vmem:[#allocation1] sm:$0xff] %v2271
      %s2379 = scalar_lea.vmem [#allocation1], 5
      %v2380 = vld [vmem:[%s2379] ss:$9 sm:$0xff]
      %2381 = vrot.lane.b32.xlu0 %v2380, 80
      %v2382 = vpop.permute.xlu0 %2381
      %2384 = vst.msk [vmem:[#allocation3 + $0x1] sm:$0x1] %vm2326, %v2382
      %2385 = vst [vmem:[#allocation1] sm:$0xff] %v2271
      %s2386 = scalar_lea.vmem [#allocation1], 6
      %v2387 = vld [vmem:[%s2386] ss:$9 sm:$0xff]
      %2388 = vrot.lane.b32.xlu0 %v2387, 96
      %v2389 = vpop.permute.xlu0 %2388
      %2391 = vst.msk [vmem:[#allocation3 + $0x1] sm:$0x1] %vm2336, %v2389
      %2392 = vst [vmem:[#allocation1] sm:$0xff] %v2271
      %s2393 = scalar_lea.vmem [#allocation1], 7
      %v2394 = vld [vmem:[%s2393] ss:$9 sm:$0xff]
      %2395 = vrot.lane.b32.xlu0 %v2394, 112
      %v2396 = vpop.permute.xlu0 %2395
      %2398 = vst.msk [vmem:[#allocation3 + $0x1] sm:$0x1] %vm2346, %v2396
      %v2399 = vld [vmem:[#allocation3] sm:$0x3]
      %v2400 = vld [vmem:[%s120] sm:$0xff]
      %v2402 = vperm.slane %v2399, 0
      %v2403 = vperm.slane %v2399, 1
      %v2404 = vrot.slane %v2403, 4
      %v2405 = vsel %vm133, %v2402, %v2404
      %v2407 = vmul.f32 %v2400, %v2405
      %2408 = vst [vmem:[%s125] sm:$0xff] %v2407
      %p2409 = scmp.lt.s32.totalorder %s21, 1
      %s2410 = scalar_select %p2409, %s21, 1
      %s2411 = smul.addr %s2410, 2
      %s2412 = smul.addr %s2411, 4
      %s2413 = scalar_lea.vmem %s2, %s2412
      // Predicated region
      $region25: #{spatial_gate_forward.1} parent=23 // pred_check
        %p2414 = pneg %p65
      $region26: #{spatial_gate_forward.1} parent=23 // pred_check_branch
        %2416 = sbr.rel (%p2414) target = $region28
      $region27: #{spatial_gate_forward.1} parent=23 // pred_region
        _
      $region28: #{spatial_gate_forward.1} parent=23 // pred_fallthru
        _
    $region24: #{spatial_gate_forward.1} parent=5 // pred_fallthru
      _
    %p2417 = scmp.le.s32.totalorder 2, %s16
    // Predicated region
    $region29: #{spatial_gate_forward.1} parent=5 // pred_check
      %p2418 = pneg %p2417
    $region30: #{spatial_gate_forward.1} parent=5 // pred_check_branch
      %2420 = sbr.rel (%p2418) target = $region32
    $region31: #{spatial_gate_forward.1} parent=5 // pred_region
      %s2421 = ssub.s32 %s16, 2
      // Predicated region
      $region33: #{spatial_gate_forward.1} parent=31 // pred_check
        %p2422 = pneg %p71
      $region34: #{spatial_gate_forward.1} parent=31 // pred_check_branch
        %2424 = sbr.rel (%p2422) target = $region36
      $region35: #{spatial_gate_forward.1} parent=31 // pred_region
        %p2425 = scmp.lt.s32.totalorder %s22, 1
        %s2426 = scalar_select %p2425, %s22, 1
        %s2427 = smul.addr %s2426, 2
        %s2428 = smul.addr %s2427, 4
        %s2429 = scalar_lea.vmem %s2, %s2428
      $region36: #{spatial_gate_forward.1} parent=31 // pred_fallthru
        _
    $region32: #{spatial_gate_forward.1} parent=5 // pred_fallthru
      _
  $region6: #{spatial_gate_forward.1} parent=0 // loop_footer
    %s20 = sadd.s32 1, %s16
  $region7: #{spatial_gate_forward.1} parent=0 // loop_footer_branch
    %15 = sbr.rel target = $region3
  $region8: #{spatial_gate_forward.1} parent=0 // loop_exit
    _

</llo_original>
